<compile_context>
chip_gen: v6e
topology: v6e:2x2x1
jax: 0.10.0
libtpu: 0.0.40
codegen_flags: <defaults>
</compile_context>

<pallas_src>
import jax
import jax.numpy as jnp
import numpy as np
from jax import lax
from jax.experimental import pallas as pl
from jax.experimental.pallas import tpu as pltpu


def seq2seq_forward_kernel(
    action_ids_ref,   # SMEM (S,)        int32  gold production id per step
    lstm_ref,         # VMEM (2H+1, 4H)  f32    [w_ih^T(pad E->H) ; w_hh^T ; b_ih+b_hh], gates [i,f,o,g]
    misc_ref,         # VMEM (4H+T+2, H) f32    [w1^T ; w2^T(pad) ; enc ; enc^T(pad) ; b1 ; b2(pad)]
    step_ref,         # VMEM (2S, H)     f32    [prev-action embeds (pad) ; additive cand mask]
    out_ref,          # VMEM (1, 1)      f32    sum of per-step gold log-likelihoods
):
    S = step_ref.shape[0] // 2
    H = step_ref.shape[1]
    T = misc_ref.shape[0] - (4 * H + 2)

    # ---- one-time loads (everything reused across all unrolled steps) ----
    w_ih_T = lstm_ref[0:H, :]                    # (H, 4H)  rows >= E are zero
    w_hh_T = lstm_ref[H:2 * H, :]                # (H, 4H)
    b_lstm = lstm_ref[2 * H:2 * H + 1, :]        # (1, 4H)

    r = 0
    w1a = misc_ref[r:r + H, :]; r += H           # (H, H)  = w1^T[:H]
    w1b = misc_ref[r:r + H, :]; r += H           # (H, H)  = w1^T[H:]
    w2t = misc_ref[r:r + H, :]; r += H           # (H, H)  lanes >= P are zero
    enc = misc_ref[r:r + T, :]; r += T           # (T, H)
    enc_T = misc_ref[r:r + H, :][:, 0:T]; r += H  # (H, T)  pre-transposed on host, hoisted
    b1 = misc_ref[r:r + 1, :]; r += 1            # (1, H)
    b2 = misc_ref[r:r + 1, :]; r += 1            # (1, H)  lanes >= P are zero

    emb_all = step_ref[0:S, :]                   # (S, H)  prev-action embeddings (zero pad past E)
    addmask = step_ref[S:2 * S, :]               # (S, H)  0 = candidate, -1e30 otherwise

    # Input-side LSTM projection for ALL steps in one MXU op (off the h->h chain).
    x_proj = jnp.dot(emb_all, w_ih_T, preferred_element_type=jnp.float32) + b_lstm  # (S, 4H)

    # Hoisted: JAX does not CSE broadcast_in_dim, keep the iota out of the loop.
    prod_iota = lax.broadcasted_iota(jnp.int32, (1, H), 1)

    h = jnp.zeros((1, H), jnp.float32)
    c = jnp.zeros((1, H), jnp.float32)
    total = jnp.zeros((1, 1), jnp.float32)

    # S is small and static: fully unroll so adjacent steps' MXU pushes / EUP
    # passes / VPU filler can be interleaved into the same bundles.
    for t in range(S):
        aid = action_ids_ref[t]                                   # SMEM scalar

        # ---- LSTMCell recurrence: only the hidden-side matmul per step ----
        gates = x_proj[t:t + 1, :] + jnp.dot(h, w_hh_T,
                                             preferred_element_type=jnp.float32)  # (1, 4H)
        sig = jax.nn.sigmoid(gates[:, 0:3 * H])   # gates packed [i,f,o,g]: one sigmoid pass
        g_g = jnp.tanh(gates[:, 3 * H:4 * H])     # tanh only on the g slice
        i_g = sig[:, 0:H]
        f_g = sig[:, H:2 * H]
        o_g = sig[:, 2 * H:3 * H]
        c = f_g * c + i_g * g_g
        h = o_g * jnp.tanh(c)

        # ---- attention over encoder tokens (lane-dense (1,T); transpose hoisted) ----
        s = jnp.dot(h, enc_T, preferred_element_type=jnp.float32)   # (1, T)
        m = jnp.max(s, axis=1, keepdims=True)
        e = jnp.exp(s - m)
        att = e / jnp.sum(e, axis=1, keepdims=True)                 # exact reciprocal (scalar)
        att_ret = jnp.dot(att, enc, preferred_element_type=jnp.float32)  # (1, H)

        # ---- scoring MLP, concat-free: [h ; att_ret] @ w1^T == h@w1a + att_ret@w1b ----
        hid = jnp.tanh(jnp.dot(h, w1a, preferred_element_type=jnp.float32)
                       + jnp.dot(att_ret, w1b, preferred_element_type=jnp.float32)
                       + b1)
        scores = jnp.dot(hid, w2t, preferred_element_type=jnp.float32) + b2   # (1, H)

        # ---- candidate-masked log-softmax; gold term read from UNMASKED scores ----
        masked = scores + addmask[t:t + 1, :]
        mm = jnp.max(masked, axis=1, keepdims=True)
        lse = mm + jnp.log(jnp.sum(jnp.exp(masked - mm), axis=1, keepdims=True))
        gold = jnp.sum(jnp.where(prod_iota == aid, scores, 0.0), axis=1, keepdims=True)
        total = total + (gold - lse)

    out_ref[...] = total


def seq2seq_forward(params, token_rep, token_encodes, action_ids, cand_mask_bool):
    """Wrapper: reorders/packs weights into 3 contiguous f32 arrays + SMEM ids."""
    H = params["w_hh"].shape[1]
    E = params["w_ih"].shape[1]
    P = params["w2"].shape[0]
    T = token_encodes.shape[0]
    S = int(action_ids.shape[0])
    assert E <= H and P <= H and T <= H, "lane packing assumes E, P, T <= H"

    f32 = jnp.float32

    def reorder(w):  # gate axis 0: PyTorch [i,f,g,o] -> packed [i,f,o,g]
        return jnp.concatenate([w[:2 * H], w[3 * H:], w[2 * H:3 * H]], axis=0)

    def pad_lanes(x, width, fill=0.0):
        out = jnp.full((x.shape[0], width), fill, f32)
        return out.at[:, :x.shape[1]].set(x.astype(f32))

    # LSTM pack (lane width 4H): [w_ih^T padded E->H rows ; w_hh^T ; b_ih+b_hh].
    w_ih_T = jnp.zeros((H, 4 * H), f32).at[:E, :].set(reorder(params["w_ih"]).T.astype(f32))
    w_hh_T = reorder(params["w_hh"]).T.astype(f32)
    b_lstm = reorder(params["b_ih"] + params["b_hh"])[None, :].astype(f32)
    lstm_pack = jnp.concatenate([w_ih_T, w_hh_T, b_lstm], axis=0)          # (2H+1, 4H)

    # Misc pack (lane width H); multi-row sections are 8-row aligned.
    enc = token_encodes.astype(f32)                                        # (T, H)
    misc_pack = jnp.concatenate([
        params["w1"].T.astype(f32),                                        # (2H, H)
        pad_lanes(params["w2"].T, H),                                      # (H, H)
        enc,                                                               # (T, H)
        pad_lanes(enc.T, H),                                               # (H, H) lanes>=T unused
        params["b1"][None, :].astype(f32),                                 # (1, H)
        pad_lanes(params["b2"][None, :], H),                               # (1, H)
    ], axis=0)                                                             # (4H+T+2, H)

    # Per-step pack: all prev-action embeddings are known up front
    # (token_rep for t=0, embed[action_ids[t-1]] for t>0) + additive mask.
    emb_prev = jnp.concatenate(
        [token_rep[None, :].astype(f32),
         params["embed_w"][action_ids[:-1]].astype(f32)], axis=0)          # (S, E)
    addmask = jnp.where(cand_mask_bool, 0.0, -1e30).astype(f32)            # (S, P)
    step_pack = jnp.concatenate([
        pad_lanes(emb_prev, H),                                            # (S, H)
        pad_lanes(addmask, H, fill=-1e30),                                 # (S, H)
    ], axis=0)                                                             # (2S, H)

    vmem = pl.BlockSpec(memory_space=pltpu.MemorySpace.VMEM)
    smem = pl.BlockSpec(memory_space=pltpu.MemorySpace.SMEM)

    out = pl.pallas_call(
        seq2seq_forward_kernel,
        out_shape=jax.ShapeDtypeStruct((1, 1), jnp.float32),
        in_specs=[smem, vmem, vmem, vmem],
        out_specs=vmem,
    )(action_ids.astype(jnp.int32), lstm_pack, misc_pack, step_pack)
    return out[0, 0]


def reference_forward(params, token_rep, token_encodes, action_ids, cand_mask_bool):
    """Pure-JAX re-implementation mirroring the PyTorch forward exactly
    (explicit candidate gather + log_softmax + gold index)."""
    H = params["w_hh"].shape[1]
    h = jnp.zeros((1, H), jnp.float32)
    c = jnp.zeros((1, H), jnp.float32)
    emb = token_rep[None, :]
    total = 0.0
    action_ids_np = np.asarray(action_ids)
    mask_np = np.asarray(cand_mask_bool)
    for t in range(action_ids_np.shape[0]):
        gates = (emb @ params["w_ih"].T + params["b_ih"]
                 + h @ params["w_hh"].T + params["b_hh"])
        i_g, f_g, g_g, o_g = jnp.split(gates, 4, axis=1)
        c = jax.nn.sigmoid(f_g) * c + jax.nn.sigmoid(i_g) * jnp.tanh(g_g)
        h = jax.nn.sigmoid(o_g) * jnp.tanh(c)
        att_feat = token_encodes @ h.T
        att = jax.nn.softmax(att_feat, axis=0)
        att_ret = att.T @ token_encodes
        feat = jnp.concatenate([h, att_ret], axis=1)
        scores = jnp.tanh(feat @ params["w1"].T + params["b1"]) @ params["w2"].T \
            + params["b2"]
        scores = scores[0]
        candidate_ids = [int(j) for j in np.nonzero(mask_np[t])[0]]
        filt = jnp.stack([scores[j] for j in candidate_ids])
        logp = jax.nn.log_softmax(filt, axis=0)
        gold_pos = candidate_ids.index(int(action_ids_np[t]))
        total = total + logp[gold_pos]
        emb = params["embed_w"][int(action_ids_np[t])][None, :]
    return total


if __name__ == "__main__":
    # Small shapes consistent with the module:
    #   H = encode_hidden_size = sketch_decoder_rnn_size
    #   E = sketch_embed.embedding_dim, P = len(sketch_prod2id)
    #   T = input sequence length, S = number of sketch actions
    H, E, P, T, S = 32, 16, 16, 8, 5

    key = jax.random.PRNGKey(0)
    ks = jax.random.split(key, 12)
    scale = 0.1
    params = {
        "embed_w": scale * jax.random.normal(ks[0], (P, E), jnp.float32),
        "w_ih": scale * jax.random.normal(ks[1], (4 * H, E), jnp.float32),
        "w_hh": scale * jax.random.normal(ks[2], (4 * H, H), jnp.float32),
        "b_ih": scale * jax.random.normal(ks[3], (4 * H,), jnp.float32),
        "b_hh": scale * jax.random.normal(ks[4], (4 * H,), jnp.float32),
        "w1": scale * jax.random.normal(ks[5], (H, 2 * H), jnp.float32),
        "b1": scale * jax.random.normal(ks[6], (H,), jnp.float32),
        "w2": scale * jax.random.normal(ks[7], (P, H), jnp.float32),
        "b2": scale * jax.random.normal(ks[8], (P,), jnp.float32),
    }

    token_rep = jax.random.normal(ks[9], (E,), jnp.float32)
    token_encodes = jax.random.normal(ks[10], (T, H), jnp.float32)

    # Synthetic grammar info: gold action ids + candidate sets per step
    # (in the original module these come from world._get_sketch_productions).
    rng = np.random.RandomState(0)
    action_ids = jnp.asarray(rng.randint(0, P, size=(S,)), dtype=jnp.int32)
    cand_mask = rng.rand(S, P) < 0.6
    for t in range(S):
        cand_mask[t, int(action_ids[t])] = True  # gold is always a candidate
    cand_mask = jnp.asarray(cand_mask)

    out = seq2seq_forward(params, token_rep, token_encodes, action_ids, cand_mask)
    out = jax.block_until_ready(out)

    ref = reference_forward(params, token_rep, token_encodes, action_ids, cand_mask)
    # exact-reciprocal softmax -> tolerance tightened vs. the previous version
    np.testing.assert_allclose(np.asarray(out), np.asarray(ref), atol=1e-4, rtol=1e-4)

    print("KERNEL_OK")
</pallas_src>

<mosaic_0001>
module attributes {stable_mosaic.version = 11 : i64} {
  func.func @seq2seq_forward_kernel(%arg0: memref<5xi32, #tpu.memory_space<smem>>, %arg1: memref<65x128xf32, #tpu.memory_space<vmem>>, %arg2: memref<138x32xf32, #tpu.memory_space<vmem>>, %arg3: memref<10x32xf32, #tpu.memory_space<vmem>>, %arg4: memref<1x1xf32, #tpu.memory_space<vmem>>) attributes {dimension_semantics = [], scalar_prefetch = 0 : i64, scratch_operands = 0 : i64, tpu.core_type = #tpu.core_type<tc>} {
    %c0 = arith.constant 0 : index
    %c0_0 = arith.constant 0 : index
    %0 = vector.load %arg1[%c0, %c0_0] : memref<65x128xf32, #tpu.memory_space<vmem>>, vector<32x128xf32>
    %c32 = arith.constant 32 : index
    %c0_1 = arith.constant 0 : index
    %1 = vector.load %arg1[%c32, %c0_1] : memref<65x128xf32, #tpu.memory_space<vmem>>, vector<32x128xf32>
    %c64 = arith.constant 64 : index
    %c0_2 = arith.constant 0 : index
    %2 = vector.load %arg1[%c64, %c0_2] : memref<65x128xf32, #tpu.memory_space<vmem>>, vector<1x128xf32>
    %c0_3 = arith.constant 0 : index
    %c0_4 = arith.constant 0 : index
    %3 = vector.load %arg2[%c0_3, %c0_4] : memref<138x32xf32, #tpu.memory_space<vmem>>, vector<32x32xf32>
    %c32_5 = arith.constant 32 : index
    %c0_6 = arith.constant 0 : index
    %4 = vector.load %arg2[%c32_5, %c0_6] : memref<138x32xf32, #tpu.memory_space<vmem>>, vector<32x32xf32>
    %c64_7 = arith.constant 64 : index
    %c0_8 = arith.constant 0 : index
    %5 = vector.load %arg2[%c64_7, %c0_8] : memref<138x32xf32, #tpu.memory_space<vmem>>, vector<32x32xf32>
    %c96 = arith.constant 96 : index
    %c0_9 = arith.constant 0 : index
    %6 = vector.load %arg2[%c96, %c0_9] : memref<138x32xf32, #tpu.memory_space<vmem>>, vector<8x32xf32>
    %c104 = arith.constant 104 : index
    %c0_10 = arith.constant 0 : index
    %7 = vector.load %arg2[%c104, %c0_10] : memref<138x32xf32, #tpu.memory_space<vmem>>, vector<32x32xf32>
    %8 = vector.extract_strided_slice %7 {offsets = [0, 0], sizes = [32, 8], strides = [1, 1]} : vector<32x32xf32> to vector<32x8xf32>
    %c136 = arith.constant 136 : index
    %c0_11 = arith.constant 0 : index
    %9 = vector.load %arg2[%c136, %c0_11] : memref<138x32xf32, #tpu.memory_space<vmem>>, vector<1x32xf32>
    %c137 = arith.constant 137 : index
    %c0_12 = arith.constant 0 : index
    %10 = vector.load %arg2[%c137, %c0_12] : memref<138x32xf32, #tpu.memory_space<vmem>>, vector<1x32xf32>
    %c0_13 = arith.constant 0 : index
    %c0_14 = arith.constant 0 : index
    %11 = vector.load %arg3[%c0_13, %c0_14] : memref<10x32xf32, #tpu.memory_space<vmem>>, vector<5x32xf32>
    %c5 = arith.constant 5 : index
    %c0_15 = arith.constant 0 : index
    %12 = vector.load %arg3[%c5, %c0_15] : memref<10x32xf32, #tpu.memory_space<vmem>>, vector<5x32xf32>
    %cst = arith.constant dense<0.000000e+00> : vector<5x128xf32>
    %13 = tpu.matmul %11, %0, %cst {dimension_numbers = #tpu.dot_dimension_numbers<[1], [0], [0], [1], [0, 0, 1, 1], [], []>} : vector<5x32xf32>, vector<32x128xf32>, vector<5x128xf32> -> vector<5x128xf32>
    %14 = vector.broadcast %2 : vector<1x128xf32> to vector<5x128xf32>
    %15 = arith.addf %13, %14 : vector<5x128xf32>
    %16 = tpu.iota {dimensions = array<i32: 1>} : vector<1x32xi32>
    %cst_16 = arith.constant 0.000000e+00 : f32
    %17 = vector.broadcast %cst_16 : f32 to vector<1x32xf32>
    %cst_17 = arith.constant 0.000000e+00 : f32
    %18 = vector.broadcast %cst_17 : f32 to vector<1x32xf32>
    %cst_18 = arith.constant 0.000000e+00 : f32
    %19 = vector.broadcast %cst_18 : f32 to vector<1x1xf32>
    %c0_19 = arith.constant 0 : index
    %20 = memref.load %arg0[%c0_19] : memref<5xi32, #tpu.memory_space<smem>>
    %21 = vector.extract_strided_slice %15 {offsets = [0, 0], sizes = [1, 128], strides = [1, 1]} : vector<5x128xf32> to vector<1x128xf32>
    %cst_20 = arith.constant dense<0.000000e+00> : vector<1x128xf32>
    %22 = tpu.matmul %17, %1, %cst_20 {dimension_numbers = #tpu.dot_dimension_numbers<[1], [0], [0], [1], [0, 0, 1, 1], [], []>} : vector<1x32xf32>, vector<32x128xf32>, vector<1x128xf32> -> vector<1x128xf32>
    %23 = arith.addf %21, %22 : vector<1x128xf32>
    %24 = vector.extract_strided_slice %23 {offsets = [0, 0], sizes = [1, 96], strides = [1, 1]} : vector<1x128xf32> to vector<1x96xf32>
    %25 = arith.negf %24 : vector<1x96xf32>
    %26 = math.exp %25 : vector<1x96xf32>
    %cst_21 = arith.constant 1.000000e+00 : f32
    %27 = vector.broadcast %cst_21 : f32 to vector<1x96xf32>
    %28 = arith.addf %27, %26 : vector<1x96xf32>
    %29 = arith.divf %27, %28 : vector<1x96xf32>
    %30 = vector.extract_strided_slice %23 {offsets = [0, 96], sizes = [1, 32], strides = [1, 1]} : vector<1x128xf32> to vector<1x32xf32>
    %31 = math.tanh %30 : vector<1x32xf32>
    %32 = vector.extract_strided_slice %29 {offsets = [0, 0], sizes = [1, 32], strides = [1, 1]} : vector<1x96xf32> to vector<1x32xf32>
    %33 = vector.extract_strided_slice %29 {offsets = [0, 32], sizes = [1, 32], strides = [1, 1]} : vector<1x96xf32> to vector<1x32xf32>
    %34 = vector.extract_strided_slice %29 {offsets = [0, 64], sizes = [1, 32], strides = [1, 1]} : vector<1x96xf32> to vector<1x32xf32>
    %35 = arith.mulf %33, %18 : vector<1x32xf32>
    %36 = arith.mulf %32, %31 : vector<1x32xf32>
    %37 = arith.addf %35, %36 : vector<1x32xf32>
    %38 = math.tanh %37 : vector<1x32xf32>
    %39 = arith.mulf %34, %38 : vector<1x32xf32>
    %cst_22 = arith.constant dense<0.000000e+00> : vector<1x8xf32>
    %40 = tpu.matmul %39, %8, %cst_22 {dimension_numbers = #tpu.dot_dimension_numbers<[1], [0], [0], [1], [0, 0, 1, 1], [], []>} : vector<1x32xf32>, vector<32x8xf32>, vector<1x8xf32> -> vector<1x8xf32>
    %cst_23 = arith.constant dense<0xFF800000> : vector<1xf32>
    %41 = vector.multi_reduction <maximumf>, %40, %cst_23 [1] : vector<1x8xf32> to vector<1xf32>
    %42 = vector.shape_cast %41 : vector<1xf32> to vector<1x1xf32>
    %43 = vector.broadcast %42 : vector<1x1xf32> to vector<1x8xf32>
    %44 = arith.subf %40, %43 : vector<1x8xf32>
    %45 = math.exp %44 : vector<1x8xf32>
    %cst_24 = arith.constant dense<0.000000e+00> : vector<1xf32>
    %46 = vector.multi_reduction <add>, %45, %cst_24 [1] : vector<1x8xf32> to vector<1xf32>
    %47 = vector.shape_cast %46 : vector<1xf32> to vector<1x1xf32>
    %48 = vector.broadcast %47 : vector<1x1xf32> to vector<1x8xf32>
    %49 = arith.divf %45, %48 : vector<1x8xf32>
    %cst_25 = arith.constant dense<0.000000e+00> : vector<1x32xf32>
    %50 = tpu.matmul %49, %6, %cst_25 {dimension_numbers = #tpu.dot_dimension_numbers<[1], [0], [0], [1], [0, 0, 1, 1], [], []>} : vector<1x8xf32>, vector<8x32xf32>, vector<1x32xf32> -> vector<1x32xf32>
    %cst_26 = arith.constant dense<0.000000e+00> : vector<1x32xf32>
    %51 = tpu.matmul %39, %3, %cst_26 {dimension_numbers = #tpu.dot_dimension_numbers<[1], [0], [0], [1], [0, 0, 1, 1], [], []>} : vector<1x32xf32>, vector<32x32xf32>, vector<1x32xf32> -> vector<1x32xf32>
    %cst_27 = arith.constant dense<0.000000e+00> : vector<1x32xf32>
    %52 = tpu.matmul %50, %4, %cst_27 {dimension_numbers = #tpu.dot_dimension_numbers<[1], [0], [0], [1], [0, 0, 1, 1], [], []>} : vector<1x32xf32>, vector<32x32xf32>, vector<1x32xf32> -> vector<1x32xf32>
    %53 = arith.addf %51, %52 : vector<1x32xf32>
    %54 = arith.addf %53, %9 : vector<1x32xf32>
    %55 = math.tanh %54 : vector<1x32xf32>
    %cst_28 = arith.constant dense<0.000000e+00> : vector<1x32xf32>
    %56 = tpu.matmul %55, %5, %cst_28 {dimension_numbers = #tpu.dot_dimension_numbers<[1], [0], [0], [1], [0, 0, 1, 1], [], []>} : vector<1x32xf32>, vector<32x32xf32>, vector<1x32xf32> -> vector<1x32xf32>
    %57 = arith.addf %56, %10 : vector<1x32xf32>
    %58 = vector.extract_strided_slice %12 {offsets = [0, 0], sizes = [1, 32], strides = [1, 1]} : vector<5x32xf32> to vector<1x32xf32>
    %59 = arith.addf %57, %58 : vector<1x32xf32>
    %cst_29 = arith.constant dense<0xFF800000> : vector<1xf32>
    %60 = vector.multi_reduction <maximumf>, %59, %cst_29 [1] : vector<1x32xf32> to vector<1xf32>
    %61 = vector.shape_cast %60 : vector<1xf32> to vector<1x1xf32>
    %62 = vector.broadcast %61 : vector<1x1xf32> to vector<1x32xf32>
    %63 = arith.subf %59, %62 : vector<1x32xf32>
    %64 = math.exp %63 : vector<1x32xf32>
    %cst_30 = arith.constant dense<0.000000e+00> : vector<1xf32>
    %65 = vector.multi_reduction <add>, %64, %cst_30 [1] : vector<1x32xf32> to vector<1xf32>
    %66 = vector.shape_cast %65 : vector<1xf32> to vector<1x1xf32>
    %67 = math.log %66 : vector<1x1xf32>
    %68 = arith.addf %61, %67 : vector<1x1xf32>
    %69 = vector.broadcast %20 : i32 to vector<1x32xi32>
    %70 = arith.cmpi eq, %16, %69 : vector<1x32xi32>
    %cst_31 = arith.constant 0.000000e+00 : f32
    %71 = vector.broadcast %cst_31 : f32 to vector<1x32xf32>
    %72 = arith.select %70, %57, %71 : vector<1x32xi1>, vector<1x32xf32>
    %cst_32 = arith.constant dense<0.000000e+00> : vector<1xf32>
    %73 = vector.multi_reduction <add>, %72, %cst_32 [1] : vector<1x32xf32> to vector<1xf32>
    %74 = vector.shape_cast %73 : vector<1xf32> to vector<1x1xf32>
    %75 = arith.subf %74, %68 : vector<1x1xf32>
    %76 = arith.addf %19, %75 : vector<1x1xf32>
    %c1 = arith.constant 1 : index
    %77 = memref.load %arg0[%c1] : memref<5xi32, #tpu.memory_space<smem>>
    %78 = vector.extract_strided_slice %15 {offsets = [1, 0], sizes = [1, 128], strides = [1, 1]} : vector<5x128xf32> to vector<1x128xf32>
    %cst_33 = arith.constant dense<0.000000e+00> : vector<1x128xf32>
    %79 = tpu.matmul %39, %1, %cst_33 {dimension_numbers = #tpu.dot_dimension_numbers<[1], [0], [0], [1], [0, 0, 1, 1], [], []>} : vector<1x32xf32>, vector<32x128xf32>, vector<1x128xf32> -> vector<1x128xf32>
    %80 = arith.addf %78, %79 : vector<1x128xf32>
    %81 = vector.extract_strided_slice %80 {offsets = [0, 0], sizes = [1, 96], strides = [1, 1]} : vector<1x128xf32> to vector<1x96xf32>
    %82 = arith.negf %81 : vector<1x96xf32>
    %83 = math.exp %82 : vector<1x96xf32>
    %cst_34 = arith.constant 1.000000e+00 : f32
    %84 = vector.broadcast %cst_34 : f32 to vector<1x96xf32>
    %85 = arith.addf %84, %83 : vector<1x96xf32>
    %86 = arith.divf %84, %85 : vector<1x96xf32>
    %87 = vector.extract_strided_slice %80 {offsets = [0, 96], sizes = [1, 32], strides = [1, 1]} : vector<1x128xf32> to vector<1x32xf32>
    %88 = math.tanh %87 : vector<1x32xf32>
    %89 = vector.extract_strided_slice %86 {offsets = [0, 0], sizes = [1, 32], strides = [1, 1]} : vector<1x96xf32> to vector<1x32xf32>
    %90 = vector.extract_strided_slice %86 {offsets = [0, 32], sizes = [1, 32], strides = [1, 1]} : vector<1x96xf32> to vector<1x32xf32>
    %91 = vector.extract_strided_slice %86 {offsets = [0, 64], sizes = [1, 32], strides = [1, 1]} : vector<1x96xf32> to vector<1x32xf32>
    %92 = arith.mulf %90, %37 : vector<1x32xf32>
    %93 = arith.mulf %89, %88 : vector<1x32xf32>
    %94 = arith.addf %92, %93 : vector<1x32xf32>
    %95 = math.tanh %94 : vector<1x32xf32>
    %96 = arith.mulf %91, %95 : vector<1x32xf32>
    %cst_35 = arith.constant dense<0.000000e+00> : vector<1x8xf32>
    %97 = tpu.matmul %96, %8, %cst_35 {dimension_numbers = #tpu.dot_dimension_numbers<[1], [0], [0], [1], [0, 0, 1, 1], [], []>} : vector<1x32xf32>, vector<32x8xf32>, vector<1x8xf32> -> vector<1x8xf32>
    %cst_36 = arith.constant dense<0xFF800000> : vector<1xf32>
    %98 = vector.multi_reduction <maximumf>, %97, %cst_36 [1] : vector<1x8xf32> to vector<1xf32>
    %99 = vector.shape_cast %98 : vector<1xf32> to vector<1x1xf32>
    %100 = vector.broadcast %99 : vector<1x1xf32> to vector<1x8xf32>
    %101 = arith.subf %97, %100 : vector<1x8xf32>
    %102 = math.exp %101 : vector<1x8xf32>
    %cst_37 = arith.constant dense<0.000000e+00> : vector<1xf32>
    %103 = vector.multi_reduction <add>, %102, %cst_37 [1] : vector<1x8xf32> to vector<1xf32>
    %104 = vector.shape_cast %103 : vector<1xf32> to vector<1x1xf32>
    %105 = vector.broadcast %104 : vector<1x1xf32> to vector<1x8xf32>
    %106 = arith.divf %102, %105 : vector<1x8xf32>
    %cst_38 = arith.constant dense<0.000000e+00> : vector<1x32xf32>
    %107 = tpu.matmul %106, %6, %cst_38 {dimension_numbers = #tpu.dot_dimension_numbers<[1], [0], [0], [1], [0, 0, 1, 1], [], []>} : vector<1x8xf32>, vector<8x32xf32>, vector<1x32xf32> -> vector<1x32xf32>
    %cst_39 = arith.constant dense<0.000000e+00> : vector<1x32xf32>
    %108 = tpu.matmul %96, %3, %cst_39 {dimension_numbers = #tpu.dot_dimension_numbers<[1], [0], [0], [1], [0, 0, 1, 1], [], []>} : vector<1x32xf32>, vector<32x32xf32>, vector<1x32xf32> -> vector<1x32xf32>
    %cst_40 = arith.constant dense<0.000000e+00> : vector<1x32xf32>
    %109 = tpu.matmul %107, %4, %cst_40 {dimension_numbers = #tpu.dot_dimension_numbers<[1], [0], [0], [1], [0, 0, 1, 1], [], []>} : vector<1x32xf32>, vector<32x32xf32>, vector<1x32xf32> -> vector<1x32xf32>
    %110 = arith.addf %108, %109 : vector<1x32xf32>
    %111 = arith.addf %110, %9 : vector<1x32xf32>
    %112 = math.tanh %111 : vector<1x32xf32>
    %cst_41 = arith.constant dense<0.000000e+00> : vector<1x32xf32>
    %113 = tpu.matmul %112, %5, %cst_41 {dimension_numbers = #tpu.dot_dimension_numbers<[1], [0], [0], [1], [0, 0, 1, 1], [], []>} : vector<1x32xf32>, vector<32x32xf32>, vector<1x32xf32> -> vector<1x32xf32>
    %114 = arith.addf %113, %10 : vector<1x32xf32>
    %115 = vector.extract_strided_slice %12 {offsets = [1, 0], sizes = [1, 32], strides = [1, 1]} : vector<5x32xf32> to vector<1x32xf32>
    %116 = arith.addf %114, %115 : vector<1x32xf32>
    %cst_42 = arith.constant dense<0xFF800000> : vector<1xf32>
    %117 = vector.multi_reduction <maximumf>, %116, %cst_42 [1] : vector<1x32xf32> to vector<1xf32>
    %118 = vector.shape_cast %117 : vector<1xf32> to vector<1x1xf32>
    %119 = vector.broadcast %118 : vector<1x1xf32> to vector<1x32xf32>
    %120 = arith.subf %116, %119 : vector<1x32xf32>
    %121 = math.exp %120 : vector<1x32xf32>
    %cst_43 = arith.constant dense<0.000000e+00> : vector<1xf32>
    %122 = vector.multi_reduction <add>, %121, %cst_43 [1] : vector<1x32xf32> to vector<1xf32>
    %123 = vector.shape_cast %122 : vector<1xf32> to vector<1x1xf32>
    %124 = math.log %123 : vector<1x1xf32>
    %125 = arith.addf %118, %124 : vector<1x1xf32>
    %126 = vector.broadcast %77 : i32 to vector<1x32xi32>
    %127 = arith.cmpi eq, %16, %126 : vector<1x32xi32>
    %cst_44 = arith.constant 0.000000e+00 : f32
    %128 = vector.broadcast %cst_44 : f32 to vector<1x32xf32>
    %129 = arith.select %127, %114, %128 : vector<1x32xi1>, vector<1x32xf32>
    %cst_45 = arith.constant dense<0.000000e+00> : vector<1xf32>
    %130 = vector.multi_reduction <add>, %129, %cst_45 [1] : vector<1x32xf32> to vector<1xf32>
    %131 = vector.shape_cast %130 : vector<1xf32> to vector<1x1xf32>
    %132 = arith.subf %131, %125 : vector<1x1xf32>
    %133 = arith.addf %76, %132 : vector<1x1xf32>
    %c2 = arith.constant 2 : index
    %134 = memref.load %arg0[%c2] : memref<5xi32, #tpu.memory_space<smem>>
    %135 = vector.extract_strided_slice %15 {offsets = [2, 0], sizes = [1, 128], strides = [1, 1]} : vector<5x128xf32> to vector<1x128xf32>
    %cst_46 = arith.constant dense<0.000000e+00> : vector<1x128xf32>
    %136 = tpu.matmul %96, %1, %cst_46 {dimension_numbers = #tpu.dot_dimension_numbers<[1], [0], [0], [1], [0, 0, 1, 1], [], []>} : vector<1x32xf32>, vector<32x128xf32>, vector<1x128xf32> -> vector<1x128xf32>
    %137 = arith.addf %135, %136 : vector<1x128xf32>
    %138 = vector.extract_strided_slice %137 {offsets = [0, 0], sizes = [1, 96], strides = [1, 1]} : vector<1x128xf32> to vector<1x96xf32>
    %139 = arith.negf %138 : vector<1x96xf32>
    %140 = math.exp %139 : vector<1x96xf32>
    %cst_47 = arith.constant 1.000000e+00 : f32
    %141 = vector.broadcast %cst_47 : f32 to vector<1x96xf32>
    %142 = arith.addf %141, %140 : vector<1x96xf32>
    %143 = arith.divf %141, %142 : vector<1x96xf32>
    %144 = vector.extract_strided_slice %137 {offsets = [0, 96], sizes = [1, 32], strides = [1, 1]} : vector<1x128xf32> to vector<1x32xf32>
    %145 = math.tanh %144 : vector<1x32xf32>
    %146 = vector.extract_strided_slice %143 {offsets = [0, 0], sizes = [1, 32], strides = [1, 1]} : vector<1x96xf32> to vector<1x32xf32>
    %147 = vector.extract_strided_slice %143 {offsets = [0, 32], sizes = [1, 32], strides = [1, 1]} : vector<1x96xf32> to vector<1x32xf32>
    %148 = vector.extract_strided_slice %143 {offsets = [0, 64], sizes = [1, 32], strides = [1, 1]} : vector<1x96xf32> to vector<1x32xf32>
    %149 = arith.mulf %147, %94 : vector<1x32xf32>
    %150 = arith.mulf %146, %145 : vector<1x32xf32>
    %151 = arith.addf %149, %150 : vector<1x32xf32>
    %152 = math.tanh %151 : vector<1x32xf32>
    %153 = arith.mulf %148, %152 : vector<1x32xf32>
    %cst_48 = arith.constant dense<0.000000e+00> : vector<1x8xf32>
    %154 = tpu.matmul %153, %8, %cst_48 {dimension_numbers = #tpu.dot_dimension_numbers<[1], [0], [0], [1], [0, 0, 1, 1], [], []>} : vector<1x32xf32>, vector<32x8xf32>, vector<1x8xf32> -> vector<1x8xf32>
    %cst_49 = arith.constant dense<0xFF800000> : vector<1xf32>
    %155 = vector.multi_reduction <maximumf>, %154, %cst_49 [1] : vector<1x8xf32> to vector<1xf32>
    %156 = vector.shape_cast %155 : vector<1xf32> to vector<1x1xf32>
    %157 = vector.broadcast %156 : vector<1x1xf32> to vector<1x8xf32>
    %158 = arith.subf %154, %157 : vector<1x8xf32>
    %159 = math.exp %158 : vector<1x8xf32>
    %cst_50 = arith.constant dense<0.000000e+00> : vector<1xf32>
    %160 = vector.multi_reduction <add>, %159, %cst_50 [1] : vector<1x8xf32> to vector<1xf32>
    %161 = vector.shape_cast %160 : vector<1xf32> to vector<1x1xf32>
    %162 = vector.broadcast %161 : vector<1x1xf32> to vector<1x8xf32>
    %163 = arith.divf %159, %162 : vector<1x8xf32>
    %cst_51 = arith.constant dense<0.000000e+00> : vector<1x32xf32>
    %164 = tpu.matmul %163, %6, %cst_51 {dimension_numbers = #tpu.dot_dimension_numbers<[1], [0], [0], [1], [0, 0, 1, 1], [], []>} : vector<1x8xf32>, vector<8x32xf32>, vector<1x32xf32> -> vector<1x32xf32>
    %cst_52 = arith.constant dense<0.000000e+00> : vector<1x32xf32>
    %165 = tpu.matmul %153, %3, %cst_52 {dimension_numbers = #tpu.dot_dimension_numbers<[1], [0], [0], [1], [0, 0, 1, 1], [], []>} : vector<1x32xf32>, vector<32x32xf32>, vector<1x32xf32> -> vector<1x32xf32>
    %cst_53 = arith.constant dense<0.000000e+00> : vector<1x32xf32>
    %166 = tpu.matmul %164, %4, %cst_53 {dimension_numbers = #tpu.dot_dimension_numbers<[1], [0], [0], [1], [0, 0, 1, 1], [], []>} : vector<1x32xf32>, vector<32x32xf32>, vector<1x32xf32> -> vector<1x32xf32>
    %167 = arith.addf %165, %166 : vector<1x32xf32>
    %168 = arith.addf %167, %9 : vector<1x32xf32>
    %169 = math.tanh %168 : vector<1x32xf32>
    %cst_54 = arith.constant dense<0.000000e+00> : vector<1x32xf32>
    %170 = tpu.matmul %169, %5, %cst_54 {dimension_numbers = #tpu.dot_dimension_numbers<[1], [0], [0], [1], [0, 0, 1, 1], [], []>} : vector<1x32xf32>, vector<32x32xf32>, vector<1x32xf32> -> vector<1x32xf32>
    %171 = arith.addf %170, %10 : vector<1x32xf32>
    %172 = vector.extract_strided_slice %12 {offsets = [2, 0], sizes = [1, 32], strides = [1, 1]} : vector<5x32xf32> to vector<1x32xf32>
    %173 = arith.addf %171, %172 : vector<1x32xf32>
    %cst_55 = arith.constant dense<0xFF800000> : vector<1xf32>
    %174 = vector.multi_reduction <maximumf>, %173, %cst_55 [1] : vector<1x32xf32> to vector<1xf32>
    %175 = vector.shape_cast %174 : vector<1xf32> to vector<1x1xf32>
    %176 = vector.broadcast %175 : vector<1x1xf32> to vector<1x32xf32>
    %177 = arith.subf %173, %176 : vector<1x32xf32>
    %178 = math.exp %177 : vector<1x32xf32>
    %cst_56 = arith.constant dense<0.000000e+00> : vector<1xf32>
    %179 = vector.multi_reduction <add>, %178, %cst_56 [1] : vector<1x32xf32> to vector<1xf32>
    %180 = vector.shape_cast %179 : vector<1xf32> to vector<1x1xf32>
    %181 = math.log %180 : vector<1x1xf32>
    %182 = arith.addf %175, %181 : vector<1x1xf32>
    %183 = vector.broadcast %134 : i32 to vector<1x32xi32>
    %184 = arith.cmpi eq, %16, %183 : vector<1x32xi32>
    %cst_57 = arith.constant 0.000000e+00 : f32
    %185 = vector.broadcast %cst_57 : f32 to vector<1x32xf32>
    %186 = arith.select %184, %171, %185 : vector<1x32xi1>, vector<1x32xf32>
    %cst_58 = arith.constant dense<0.000000e+00> : vector<1xf32>
    %187 = vector.multi_reduction <add>, %186, %cst_58 [1] : vector<1x32xf32> to vector<1xf32>
    %188 = vector.shape_cast %187 : vector<1xf32> to vector<1x1xf32>
    %189 = arith.subf %188, %182 : vector<1x1xf32>
    %190 = arith.addf %133, %189 : vector<1x1xf32>
    %c3 = arith.constant 3 : index
    %191 = memref.load %arg0[%c3] : memref<5xi32, #tpu.memory_space<smem>>
    %192 = vector.extract_strided_slice %15 {offsets = [3, 0], sizes = [1, 128], strides = [1, 1]} : vector<5x128xf32> to vector<1x128xf32>
    %cst_59 = arith.constant dense<0.000000e+00> : vector<1x128xf32>
    %193 = tpu.matmul %153, %1, %cst_59 {dimension_numbers = #tpu.dot_dimension_numbers<[1], [0], [0], [1], [0, 0, 1, 1], [], []>} : vector<1x32xf32>, vector<32x128xf32>, vector<1x128xf32> -> vector<1x128xf32>
    %194 = arith.addf %192, %193 : vector<1x128xf32>
    %195 = vector.extract_strided_slice %194 {offsets = [0, 0], sizes = [1, 96], strides = [1, 1]} : vector<1x128xf32> to vector<1x96xf32>
    %196 = arith.negf %195 : vector<1x96xf32>
    %197 = math.exp %196 : vector<1x96xf32>
    %cst_60 = arith.constant 1.000000e+00 : f32
    %198 = vector.broadcast %cst_60 : f32 to vector<1x96xf32>
    %199 = arith.addf %198, %197 : vector<1x96xf32>
    %200 = arith.divf %198, %199 : vector<1x96xf32>
    %201 = vector.extract_strided_slice %194 {offsets = [0, 96], sizes = [1, 32], strides = [1, 1]} : vector<1x128xf32> to vector<1x32xf32>
    %202 = math.tanh %201 : vector<1x32xf32>
    %203 = vector.extract_strided_slice %200 {offsets = [0, 0], sizes = [1, 32], strides = [1, 1]} : vector<1x96xf32> to vector<1x32xf32>
    %204 = vector.extract_strided_slice %200 {offsets = [0, 32], sizes = [1, 32], strides = [1, 1]} : vector<1x96xf32> to vector<1x32xf32>
    %205 = vector.extract_strided_slice %200 {offsets = [0, 64], sizes = [1, 32], strides = [1, 1]} : vector<1x96xf32> to vector<1x32xf32>
    %206 = arith.mulf %204, %151 : vector<1x32xf32>
    %207 = arith.mulf %203, %202 : vector<1x32xf32>
    %208 = arith.addf %206, %207 : vector<1x32xf32>
    %209 = math.tanh %208 : vector<1x32xf32>
    %210 = arith.mulf %205, %209 : vector<1x32xf32>
    %cst_61 = arith.constant dense<0.000000e+00> : vector<1x8xf32>
    %211 = tpu.matmul %210, %8, %cst_61 {dimension_numbers = #tpu.dot_dimension_numbers<[1], [0], [0], [1], [0, 0, 1, 1], [], []>} : vector<1x32xf32>, vector<32x8xf32>, vector<1x8xf32> -> vector<1x8xf32>
    %cst_62 = arith.constant dense<0xFF800000> : vector<1xf32>
    %212 = vector.multi_reduction <maximumf>, %211, %cst_62 [1] : vector<1x8xf32> to vector<1xf32>
    %213 = vector.shape_cast %212 : vector<1xf32> to vector<1x1xf32>
    %214 = vector.broadcast %213 : vector<1x1xf32> to vector<1x8xf32>
    %215 = arith.subf %211, %214 : vector<1x8xf32>
    %216 = math.exp %215 : vector<1x8xf32>
    %cst_63 = arith.constant dense<0.000000e+00> : vector<1xf32>
    %217 = vector.multi_reduction <add>, %216, %cst_63 [1] : vector<1x8xf32> to vector<1xf32>
    %218 = vector.shape_cast %217 : vector<1xf32> to vector<1x1xf32>
    %219 = vector.broadcast %218 : vector<1x1xf32> to vector<1x8xf32>
    %220 = arith.divf %216, %219 : vector<1x8xf32>
    %cst_64 = arith.constant dense<0.000000e+00> : vector<1x32xf32>
    %221 = tpu.matmul %220, %6, %cst_64 {dimension_numbers = #tpu.dot_dimension_numbers<[1], [0], [0], [1], [0, 0, 1, 1], [], []>} : vector<1x8xf32>, vector<8x32xf32>, vector<1x32xf32> -> vector<1x32xf32>
    %cst_65 = arith.constant dense<0.000000e+00> : vector<1x32xf32>
    %222 = tpu.matmul %210, %3, %cst_65 {dimension_numbers = #tpu.dot_dimension_numbers<[1], [0], [0], [1], [0, 0, 1, 1], [], []>} : vector<1x32xf32>, vector<32x32xf32>, vector<1x32xf32> -> vector<1x32xf32>
    %cst_66 = arith.constant dense<0.000000e+00> : vector<1x32xf32>
    %223 = tpu.matmul %221, %4, %cst_66 {dimension_numbers = #tpu.dot_dimension_numbers<[1], [0], [0], [1], [0, 0, 1, 1], [], []>} : vector<1x32xf32>, vector<32x32xf32>, vector<1x32xf32> -> vector<1x32xf32>
    %224 = arith.addf %222, %223 : vector<1x32xf32>
    %225 = arith.addf %224, %9 : vector<1x32xf32>
    %226 = math.tanh %225 : vector<1x32xf32>
    %cst_67 = arith.constant dense<0.000000e+00> : vector<1x32xf32>
    %227 = tpu.matmul %226, %5, %cst_67 {dimension_numbers = #tpu.dot_dimension_numbers<[1], [0], [0], [1], [0, 0, 1, 1], [], []>} : vector<1x32xf32>, vector<32x32xf32>, vector<1x32xf32> -> vector<1x32xf32>
    %228 = arith.addf %227, %10 : vector<1x32xf32>
    %229 = vector.extract_strided_slice %12 {offsets = [3, 0], sizes = [1, 32], strides = [1, 1]} : vector<5x32xf32> to vector<1x32xf32>
    %230 = arith.addf %228, %229 : vector<1x32xf32>
    %cst_68 = arith.constant dense<0xFF800000> : vector<1xf32>
    %231 = vector.multi_reduction <maximumf>, %230, %cst_68 [1] : vector<1x32xf32> to vector<1xf32>
    %232 = vector.shape_cast %231 : vector<1xf32> to vector<1x1xf32>
    %233 = vector.broadcast %232 : vector<1x1xf32> to vector<1x32xf32>
    %234 = arith.subf %230, %233 : vector<1x32xf32>
    %235 = math.exp %234 : vector<1x32xf32>
    %cst_69 = arith.constant dense<0.000000e+00> : vector<1xf32>
    %236 = vector.multi_reduction <add>, %235, %cst_69 [1] : vector<1x32xf32> to vector<1xf32>
    %237 = vector.shape_cast %236 : vector<1xf32> to vector<1x1xf32>
    %238 = math.log %237 : vector<1x1xf32>
    %239 = arith.addf %232, %238 : vector<1x1xf32>
    %240 = vector.broadcast %191 : i32 to vector<1x32xi32>
    %241 = arith.cmpi eq, %16, %240 : vector<1x32xi32>
    %cst_70 = arith.constant 0.000000e+00 : f32
    %242 = vector.broadcast %cst_70 : f32 to vector<1x32xf32>
    %243 = arith.select %241, %228, %242 : vector<1x32xi1>, vector<1x32xf32>
    %cst_71 = arith.constant dense<0.000000e+00> : vector<1xf32>
    %244 = vector.multi_reduction <add>, %243, %cst_71 [1] : vector<1x32xf32> to vector<1xf32>
    %245 = vector.shape_cast %244 : vector<1xf32> to vector<1x1xf32>
    %246 = arith.subf %245, %239 : vector<1x1xf32>
    %247 = arith.addf %190, %246 : vector<1x1xf32>
    %c4 = arith.constant 4 : index
    %248 = memref.load %arg0[%c4] : memref<5xi32, #tpu.memory_space<smem>>
    %249 = vector.extract_strided_slice %15 {offsets = [4, 0], sizes = [1, 128], strides = [1, 1]} : vector<5x128xf32> to vector<1x128xf32>
    %cst_72 = arith.constant dense<0.000000e+00> : vector<1x128xf32>
    %250 = tpu.matmul %210, %1, %cst_72 {dimension_numbers = #tpu.dot_dimension_numbers<[1], [0], [0], [1], [0, 0, 1, 1], [], []>} : vector<1x32xf32>, vector<32x128xf32>, vector<1x128xf32> -> vector<1x128xf32>
    %251 = arith.addf %249, %250 : vector<1x128xf32>
    %252 = vector.extract_strided_slice %251 {offsets = [0, 0], sizes = [1, 96], strides = [1, 1]} : vector<1x128xf32> to vector<1x96xf32>
    %253 = arith.negf %252 : vector<1x96xf32>
    %254 = math.exp %253 : vector<1x96xf32>
    %cst_73 = arith.constant 1.000000e+00 : f32
    %255 = vector.broadcast %cst_73 : f32 to vector<1x96xf32>
    %256 = arith.addf %255, %254 : vector<1x96xf32>
    %257 = arith.divf %255, %256 : vector<1x96xf32>
    %258 = vector.extract_strided_slice %251 {offsets = [0, 96], sizes = [1, 32], strides = [1, 1]} : vector<1x128xf32> to vector<1x32xf32>
    %259 = math.tanh %258 : vector<1x32xf32>
    %260 = vector.extract_strided_slice %257 {offsets = [0, 0], sizes = [1, 32], strides = [1, 1]} : vector<1x96xf32> to vector<1x32xf32>
    %261 = vector.extract_strided_slice %257 {offsets = [0, 32], sizes = [1, 32], strides = [1, 1]} : vector<1x96xf32> to vector<1x32xf32>
    %262 = vector.extract_strided_slice %257 {offsets = [0, 64], sizes = [1, 32], strides = [1, 1]} : vector<1x96xf32> to vector<1x32xf32>
    %263 = arith.mulf %261, %208 : vector<1x32xf32>
    %264 = arith.mulf %260, %259 : vector<1x32xf32>
    %265 = arith.addf %263, %264 : vector<1x32xf32>
    %266 = math.tanh %265 : vector<1x32xf32>
    %267 = arith.mulf %262, %266 : vector<1x32xf32>
    %cst_74 = arith.constant dense<0.000000e+00> : vector<1x8xf32>
    %268 = tpu.matmul %267, %8, %cst_74 {dimension_numbers = #tpu.dot_dimension_numbers<[1], [0], [0], [1], [0, 0, 1, 1], [], []>} : vector<1x32xf32>, vector<32x8xf32>, vector<1x8xf32> -> vector<1x8xf32>
    %cst_75 = arith.constant dense<0xFF800000> : vector<1xf32>
    %269 = vector.multi_reduction <maximumf>, %268, %cst_75 [1] : vector<1x8xf32> to vector<1xf32>
    %270 = vector.shape_cast %269 : vector<1xf32> to vector<1x1xf32>
    %271 = vector.broadcast %270 : vector<1x1xf32> to vector<1x8xf32>
    %272 = arith.subf %268, %271 : vector<1x8xf32>
    %273 = math.exp %272 : vector<1x8xf32>
    %cst_76 = arith.constant dense<0.000000e+00> : vector<1xf32>
    %274 = vector.multi_reduction <add>, %273, %cst_76 [1] : vector<1x8xf32> to vector<1xf32>
    %275 = vector.shape_cast %274 : vector<1xf32> to vector<1x1xf32>
    %276 = vector.broadcast %275 : vector<1x1xf32> to vector<1x8xf32>
    %277 = arith.divf %273, %276 : vector<1x8xf32>
    %cst_77 = arith.constant dense<0.000000e+00> : vector<1x32xf32>
    %278 = tpu.matmul %277, %6, %cst_77 {dimension_numbers = #tpu.dot_dimension_numbers<[1], [0], [0], [1], [0, 0, 1, 1], [], []>} : vector<1x8xf32>, vector<8x32xf32>, vector<1x32xf32> -> vector<1x32xf32>
    %cst_78 = arith.constant dense<0.000000e+00> : vector<1x32xf32>
    %279 = tpu.matmul %267, %3, %cst_78 {dimension_numbers = #tpu.dot_dimension_numbers<[1], [0], [0], [1], [0, 0, 1, 1], [], []>} : vector<1x32xf32>, vector<32x32xf32>, vector<1x32xf32> -> vector<1x32xf32>
    %cst_79 = arith.constant dense<0.000000e+00> : vector<1x32xf32>
    %280 = tpu.matmul %278, %4, %cst_79 {dimension_numbers = #tpu.dot_dimension_numbers<[1], [0], [0], [1], [0, 0, 1, 1], [], []>} : vector<1x32xf32>, vector<32x32xf32>, vector<1x32xf32> -> vector<1x32xf32>
    %281 = arith.addf %279, %280 : vector<1x32xf32>
    %282 = arith.addf %281, %9 : vector<1x32xf32>
    %283 = math.tanh %282 : vector<1x32xf32>
    %cst_80 = arith.constant dense<0.000000e+00> : vector<1x32xf32>
    %284 = tpu.matmul %283, %5, %cst_80 {dimension_numbers = #tpu.dot_dimension_numbers<[1], [0], [0], [1], [0, 0, 1, 1], [], []>} : vector<1x32xf32>, vector<32x32xf32>, vector<1x32xf32> -> vector<1x32xf32>
    %285 = arith.addf %284, %10 : vector<1x32xf32>
    %286 = vector.extract_strided_slice %12 {offsets = [4, 0], sizes = [1, 32], strides = [1, 1]} : vector<5x32xf32> to vector<1x32xf32>
    %287 = arith.addf %285, %286 : vector<1x32xf32>
    %cst_81 = arith.constant dense<0xFF800000> : vector<1xf32>
    %288 = vector.multi_reduction <maximumf>, %287, %cst_81 [1] : vector<1x32xf32> to vector<1xf32>
    %289 = vector.shape_cast %288 : vector<1xf32> to vector<1x1xf32>
    %290 = vector.broadcast %289 : vector<1x1xf32> to vector<1x32xf32>
    %291 = arith.subf %287, %290 : vector<1x32xf32>
    %292 = math.exp %291 : vector<1x32xf32>
    %cst_82 = arith.constant dense<0.000000e+00> : vector<1xf32>
    %293 = vector.multi_reduction <add>, %292, %cst_82 [1] : vector<1x32xf32> to vector<1xf32>
    %294 = vector.shape_cast %293 : vector<1xf32> to vector<1x1xf32>
    %295 = math.log %294 : vector<1x1xf32>
    %296 = arith.addf %289, %295 : vector<1x1xf32>
    %297 = vector.broadcast %248 : i32 to vector<1x32xi32>
    %298 = arith.cmpi eq, %16, %297 : vector<1x32xi32>
    %cst_83 = arith.constant 0.000000e+00 : f32
    %299 = vector.broadcast %cst_83 : f32 to vector<1x32xf32>
    %300 = arith.select %298, %285, %299 : vector<1x32xi1>, vector<1x32xf32>
    %cst_84 = arith.constant dense<0.000000e+00> : vector<1xf32>
    %301 = vector.multi_reduction <add>, %300, %cst_84 [1] : vector<1x32xf32> to vector<1xf32>
    %302 = vector.shape_cast %301 : vector<1xf32> to vector<1x1xf32>
    %303 = arith.subf %302, %296 : vector<1x1xf32>
    %304 = arith.addf %247, %303 : vector<1x1xf32>
    %c0_85 = arith.constant 0 : index
    %c0_86 = arith.constant 0 : index
    %305 = vector.load %arg4[%c0_85, %c0_86] : memref<1x1xf32, #tpu.memory_space<vmem>>, vector<1x1xf32>
    tpu.vector_store %arg4[%c0_85, %c0_86], %304 {strides = array<i32>} : memref<1x1xf32, #tpu.memory_space<vmem>>, vector<1x1xf32>,
    return
  }
}

</mosaic_0001>

<llo_original>
// kernel: tpu_custom_call.1
$region0: #{tpu_custom_call.1}
  #allocation0 [shape = 'u32[]', space=smem, size = 0x4, offset = 0x4, fixed_abs, tag = 'smem constant byte address 0x4 - core index']
  #allocation1 [shape = 'u32[144,128]{1,0:T(1,128)}', space=vmem, size = 0x12000, scoped, tag = 'internal scratch']
  %s0 = inlined_call_operand.vmem [shape: s32[5], index: 0, kind: input, shape index: {}]
  %s1 = inlined_call_operand.vmem [shape: f32[65,128], index: 1, kind: input, shape index: {}]
  %s2 = inlined_call_operand.vmem [shape: f32[138,32], index: 2, kind: input, shape index: {}]
  %s3 = inlined_call_operand.vmem [shape: f32[10,32], index: 3, kind: input, shape index: {}]
  %s4 = inlined_call_operand.hbm [shape: f32[1,1], index: 4, kind: output, shape index: {}]
  %s5 = sld [smem:[#allocation0]]
  $region30: #{tpu_custom_call.1} parent=0
    _
  %s7 = ssub.s32 1, %s5
  %s8 = scalar_select 0, %s7, %s5
  $region1: #{tpu_custom_call.1} parent=0
    #allocation2 [shape = 'u8[512]{0}', space=smem, size = 0x200, scoped, tag = 'input window, operand 0, single buffered']
    #allocation3 [shape = 's32[1]{0}', space=sflag, size = 0x4, scoped, tag = 'scoped memory for tpu_custom_call.1']
    #allocation4 [shape = 's32[1]{0}', space=sflag, size = 0x4, scoped, tag = 'scoped memory for tpu_custom_call.1']
    #allocation5 [shape = 'u8[512]{0}', space=vmem, size = 0x400, scoped, tag = 'output window, operand 0, single buffered']
    %9 = vsyncpa [#allocation4], 0
    %10 = vsyncpa [#allocation3], 0
    // Predicated region
    $region2: #{tpu_custom_call.1} parent=1 // pred_check
      _
    $region3: #{tpu_custom_call.1} parent=1 // pred_check_branch
      %12 = sbr.rel (0) target = $region5
    $region4: #{tpu_custom_call.1} parent=1 // pred_region
      %s14 = ssub.s32 16, 16
      %15 = vsyncadd [#allocation4], %s14
      %s17 = sshll.u32 %s0, 4
      %s18 = int_to_ptr.vmem [resolvable:$true] %s17
      %20 = dma.vmem_to_smem %s18, 16, [#allocation2], [#allocation4]
    $region5: #{tpu_custom_call.1} parent=1 // pred_fallthru
      _
    // Predicated region
    $region6: #{tpu_custom_call.1} parent=1 // pred_check
      _
    $region7: #{tpu_custom_call.1} parent=1 // pred_check_branch
      %22 = sbr.rel (0) target = $region9
    $region8: #{tpu_custom_call.1} parent=1 // pred_region
      _
    $region9: #{tpu_custom_call.1} parent=1 // pred_fallthru
      _
    // Predicated region
    $region10: #{tpu_custom_call.1} parent=1 // pred_check
      _
    $region11: #{tpu_custom_call.1} parent=1 // pred_check_branch
      %24 = sbr.rel (0) target = $region13
    $region12: #{tpu_custom_call.1} parent=1 // pred_region
      _
    $region13: #{tpu_custom_call.1} parent=1 // pred_fallthru
      _
    // Predicated region
    $region14: #{tpu_custom_call.1} parent=1 // pred_check
      _
    $region15: #{tpu_custom_call.1} parent=1 // pred_check_branch
      %26 = sbr.rel (0) target = $region17
    $region16: #{tpu_custom_call.1} parent=1 // pred_region
      _
    $region17: #{tpu_custom_call.1} parent=1 // pred_fallthru
      _
    // Predicated region
    $region18: #{tpu_custom_call.1} parent=1 // pred_check
      _
    $region19: #{tpu_custom_call.1} parent=1 // pred_check_branch
      %28 = sbr.rel (0) target = $region21
    $region20: #{tpu_custom_call.1} parent=1 // pred_region
      %29 = dma.done [#allocation4], 16
    $region21: #{tpu_custom_call.1} parent=1 // pred_fallthru
      _
    %30 = sfence
    %v31 = vld [vmem:[%s1] sm:$0xff]
    %v32 = vld [vmem:[%s1 + $0x8] sm:$0xff]
    %v33 = vld [vmem:[%s1 + $0x10] sm:$0xff]
    %v34 = vld [vmem:[%s1 + $0x18] sm:$0xff]
    %v35 = vld [vmem:[%s1 + $0x20] sm:$0xff]
    %v36 = vld [vmem:[%s1 + $0x28] sm:$0xff]
    %v37 = vld [vmem:[%s1 + $0x30] sm:$0xff]
    %v38 = vld [vmem:[%s1 + $0x38] sm:$0xff]
    %v39 = vld [vmem:[%s1 + $0x40] sm:$0x1]
    %v40 = vld [vmem:[%s2] sm:$0xff]
    %v41 = vld [vmem:[%s2 + $0x8] sm:$0xff]
    %v42 = vld [vmem:[%s2 + $0x10] sm:$0xff]
    %v43 = vld [vmem:[%s2 + $0x18] sm:$0xff]
    %v44 = vld [vmem:[%s2 + $0x20] sm:$0xff]
    %v45 = vld [vmem:[%s2 + $0x28] sm:$0xff]
    %v46 = vld [vmem:[%s2 + $0x30] sm:$0xff]
    %v47 = vld [vmem:[%s2 + $0x38] sm:$0xff]
    %v48 = vld [vmem:[%s2 + $0x40] sm:$0xff]
    %v49 = vld [vmem:[%s2 + $0x48] sm:$0xff]
    %v50 = vld [vmem:[%s2 + $0x50] sm:$0xff]
    %v51 = vld [vmem:[%s2 + $0x58] sm:$0xff]
    %v52 = vld [vmem:[%s2 + $0x60] sm:$0xff]
    %v53 = vld [vmem:[%s2 + $0x68] sm:$0xff]
    %v54 = vld [vmem:[%s2 + $0x70] sm:$0xff]
    %v55 = vld [vmem:[%s2 + $0x78] sm:$0xff]
    %v56 = vld [vmem:[%s2 + $0x80] sm:$0xff]
    %v57 = vld [vmem:[%s2 + $0x88] sm:$0x1]
    %v58 = vld [vmem:[%s2 + $0x89] sm:$0x1]
    %v59 = vld [vmem:[%s3] sm:$0x1f]
    %v60 = vld [vmem:[%s3 + $0x5] sm:$0x1f]
    %v61 = vlaneseq
    %v62 = vshrl.u32 %v61, 7
    %v63 = vsub.s32 0, %v62
    %v64 = vrot.slane %v39, %v63
    %vm65 = vcmask 261120
    %v67 = vsel %vm65, %v59, 0
    %69 = vmatprep.subr.mxu0 0.0
    %70 = vmatpush1.msra.mxu0 0.0
    %71 = vmatprep.subr.mxu0 0.0
    %72 = vmatpush1.msra.mxu0 0.0
    %73 = vmatprep.subr.mxu0 0.0
    %74 = vmatpush1.msra.mxu0 0.0
    %75 = vmatprep.subr.mxu0 0.0
    %76 = vmatpush1.msra.mxu0 0.0
    %77 = vmatprep.subr.mxu0 0.0
    %78 = vmatpush1.msra.mxu0 0.0
    %79 = vmatprep.subr.mxu0 0.0
    %80 = vmatpush1.msra.mxu0 0.0
    %81 = vmatprep.subr.mxu0 0.0
    %82 = vmatpush1.msra.mxu0 0.0
    %83 = vmatprep.subr.mxu0 0.0
    %84 = vmatpush1.msra.mxu0 0.0
    %85 = vmatprep.subr.mxu0 0.0
    %86 = vmatpush1.msra.mxu0 0.0
    %87 = vmatprep.subr.mxu0 0.0
    %88 = vmatpush1.msra.mxu0 0.0
    %89 = vmatprep.subr.mxu0 0.0
    %90 = vmatpush1.msra.mxu0 0.0
    %91 = vmatprep.subr.mxu0 0.0
    %92 = vmatpush1.msra.mxu0 0.0
    %93 = vmatprep.subr.mxu0 0.0
    %94 = vmatpush1.msra.mxu0 %v34
    %95 = vmatprep.subr.mxu0 0.0
    %96 = vmatpush1.msra.mxu0 %v33
    %97 = vmatprep.subr.mxu0 0.0
    %98 = vmatpush1.msra.mxu0 %v32
    %99 = vmatprep.subr.mxu0 0.0
    %100 = vmatpush1.msra.mxu0 %v31
    %101 = vmatprep.subr.mxu0 0.0
    %102 = vmatpush2.msra.mxu0 0.0
    %103 = vmatprep.subr.mxu0 0.0
    %104 = vmatpush2.msra.mxu0 0.0
    %105 = vmatprep.subr.mxu0 0.0
    %106 = vmatpush2.msra.mxu0 0.0
    %107 = vmatprep.subr.mxu0 0.0
    %108 = vmatpush2.msra.mxu0 0.0
    %109 = vmatprep.subr.mxu0 0.0
    %110 = vmatpush2.msra.mxu0 0.0
    %111 = vmatprep.subr.mxu0 0.0
    %112 = vmatpush2.msra.mxu0 0.0
    %113 = vmatprep.subr.mxu0 0.0
    %114 = vmatpush2.msra.mxu0 0.0
    %115 = vmatprep.subr.mxu0 0.0
    %116 = vmatpush2.msra.mxu0 0.0
    %117 = vmatprep.subr.mxu0 0.0
    %118 = vmatpush2.msra.mxu0 0.0
    %119 = vmatprep.subr.mxu0 0.0
    %120 = vmatpush2.msra.mxu0 0.0
    %121 = vmatprep.subr.mxu0 0.0
    %122 = vmatpush2.msra.mxu0 0.0
    %123 = vmatprep.subr.mxu0 0.0
    %124 = vmatpush2.msra.mxu0 0.0
    %125 = vmatprep.subr.mxu0 0.0
    %126 = vmatpush2.msra.mxu0 0.0
    %127 = vmatprep.subr.mxu0 0.0
    %128 = vmatpush2.msra.mxu0 0.0
    %129 = vmatprep.subr.mxu0 0.0
    %130 = vmatpush2.msra.mxu0 0.0
    %131 = vmatprep.subr.mxu0 0.0
    %132 = vmatpush2.msra.mxu0 0.0
    %133 = vmatprep.mubr.f32.mxu0 0.0
    %134 = vmatmul.mubr.f32.gmra.mxu0 %v67
    %v135 = vpop.f32.mrf.mxu0
    %v136 = vadd.f32 %v64, %v135
    %v137 = vpop.f32.mrf.mxu0
    %138 = vdwg.mxu0
    %v139 = vlaneseq
    %v140 = vand.u32 %v139, 127
    %s141 = sld [smem:[#allocation2]]
    %v143 = vsel %vm65, 0.0, 0
    %145 = vmatprep.subr.mxu0 0.0
    %146 = vmatpush1.msra.mxu0 0.0
    %147 = vmatprep.subr.mxu0 0.0
    %148 = vmatpush1.msra.mxu0 0.0
    %149 = vmatprep.subr.mxu0 0.0
    %150 = vmatpush1.msra.mxu0 0.0
    %151 = vmatprep.subr.mxu0 0.0
    %152 = vmatpush1.msra.mxu0 0.0
    %153 = vmatprep.subr.mxu0 0.0
    %154 = vmatpush1.msra.mxu0 0.0
    %155 = vmatprep.subr.mxu0 0.0
    %156 = vmatpush1.msra.mxu0 0.0
    %157 = vmatprep.subr.mxu0 0.0
    %158 = vmatpush1.msra.mxu0 0.0
    %159 = vmatprep.subr.mxu0 0.0
    %160 = vmatpush1.msra.mxu0 0.0
    %161 = vmatprep.subr.mxu0 0.0
    %162 = vmatpush1.msra.mxu0 0.0
    %163 = vmatprep.subr.mxu0 0.0
    %164 = vmatpush1.msra.mxu0 0.0
    %165 = vmatprep.subr.mxu0 0.0
    %166 = vmatpush1.msra.mxu0 0.0
    %167 = vmatprep.subr.mxu0 0.0
    %168 = vmatpush1.msra.mxu0 0.0
    %169 = vmatprep.subr.mxu0 0.0
    %170 = vmatpush1.msra.mxu0 %v38
    %171 = vmatprep.subr.mxu0 0.0
    %172 = vmatpush1.msra.mxu0 %v37
    %173 = vmatprep.subr.mxu0 0.0
    %174 = vmatpush1.msra.mxu0 %v36
    %175 = vmatprep.subr.mxu0 0.0
    %176 = vmatpush1.msra.mxu0 %v35
    %177 = vmatprep.subr.mxu0 0.0
    %178 = vmatpush2.msra.mxu0 0.0
    %179 = vmatprep.subr.mxu0 0.0
    %180 = vmatpush2.msra.mxu0 0.0
    %181 = vmatprep.subr.mxu0 0.0
    %182 = vmatpush2.msra.mxu0 0.0
    %183 = vmatprep.subr.mxu0 0.0
    %184 = vmatpush2.msra.mxu0 0.0
    %185 = vmatprep.subr.mxu0 0.0
    %186 = vmatpush2.msra.mxu0 0.0
    %187 = vmatprep.subr.mxu0 0.0
    %188 = vmatpush2.msra.mxu0 0.0
    %189 = vmatprep.subr.mxu0 0.0
    %190 = vmatpush2.msra.mxu0 0.0
    %191 = vmatprep.subr.mxu0 0.0
    %192 = vmatpush2.msra.mxu0 0.0
    %193 = vmatprep.subr.mxu0 0.0
    %194 = vmatpush2.msra.mxu0 0.0
    %195 = vmatprep.subr.mxu0 0.0
    %196 = vmatpush2.msra.mxu0 0.0
    %197 = vmatprep.subr.mxu0 0.0
    %198 = vmatpush2.msra.mxu0 0.0
    %199 = vmatprep.subr.mxu0 0.0
    %200 = vmatpush2.msra.mxu0 0.0
    %201 = vmatprep.subr.mxu0 0.0
    %202 = vmatpush2.msra.mxu0 0.0
    %203 = vmatprep.subr.mxu0 0.0
    %204 = vmatpush2.msra.mxu0 0.0
    %205 = vmatprep.subr.mxu0 0.0
    %206 = vmatpush2.msra.mxu0 0.0
    %207 = vmatprep.subr.mxu0 0.0
    %208 = vmatpush2.msra.mxu0 0.0
    %209 = vmatprep.mubr.f32.mxu0 0.0
    %210 = vmatmul.mubr.f32.gmra.mxu0 %v143
    %v211 = vpop.f32.mrf.mxu0
    %v212 = vadd.f32 0.0, %v211
    %v213 = vpop.f32.mrf.mxu0
    %214 = vdwg.mxu0
    %v215 = vadd.f32 %v136, %v212
    %v216 = vxor.u32 %v215, 2147483648
    %v217 = vmul.f32 %v216, 1.442695
    %v218 = vpow.pop %v217
    %v219 = vadd.f32 %v218, 1.0
    %v220 = vrcp.pop %v219
    %v221 = vmul.f32 1.0, %v220
    %v222 = vtanh.pop %v215
    %v223 = vmul.f32 %v221, 0.0
    %225 = vrot.lane.b32.xlu0 %v222, 32
    %v226 = vpop.permute.xlu0 %225
    %v228 = vmul.f32 %v221, %v226
    %230 = vrot.lane.b32.xlu0 %v228, 32
    %v231 = vpop.permute.xlu0 %230
    %v233 = vadd.f32 %v223, %v231
    %v234 = vtanh.pop %v233
    %236 = vrot.lane.b32.xlu0 %v234, 32
    %v237 = vpop.permute.xlu0 %236
    %v239 = vmul.f32 %v221, %v237
    %241 = vrot.lane.b32.xlu0 %v239, 64
    %v242 = vpop.permute.xlu0 %241
    %v243 = vsel %vm65, %v242, 0
    %245 = vmatprep.subr.mxu0 0.0
    %246 = vmatpush1.msra.mxu0 0.0
    %247 = vmatprep.subr.mxu0 0.0
    %248 = vmatpush1.msra.mxu0 0.0
    %249 = vmatprep.subr.mxu0 0.0
    %250 = vmatpush1.msra.mxu0 0.0
    %251 = vmatprep.subr.mxu0 0.0
    %252 = vmatpush1.msra.mxu0 0.0
    %253 = vmatprep.subr.mxu0 0.0
    %254 = vmatpush1.msra.mxu0 0.0
    %255 = vmatprep.subr.mxu0 0.0
    %256 = vmatpush1.msra.mxu0 0.0
    %257 = vmatprep.subr.mxu0 0.0
    %258 = vmatpush1.msra.mxu0 0.0
    %259 = vmatprep.subr.mxu0 0.0
    %260 = vmatpush1.msra.mxu0 0.0
    %261 = vmatprep.subr.mxu0 0.0
    %262 = vmatpush1.msra.mxu0 0.0
    %263 = vmatprep.subr.mxu0 0.0
    %264 = vmatpush1.msra.mxu0 0.0
    %265 = vmatprep.subr.mxu0 0.0
    %266 = vmatpush1.msra.mxu0 0.0
    %267 = vmatprep.subr.mxu0 0.0
    %268 = vmatpush1.msra.mxu0 0.0
    %269 = vmatprep.subr.mxu0 0.0
    %270 = vmatpush1.msra.mxu0 %v56
    %271 = vmatprep.subr.mxu0 0.0
    %272 = vmatpush1.msra.mxu0 %v55
    %273 = vmatprep.subr.mxu0 0.0
    %274 = vmatpush1.msra.mxu0 %v54
    %275 = vmatprep.subr.mxu0 0.0
    %276 = vmatpush1.msra.mxu0 %v53
    %277 = vmatprep.subr.mxu0 0.0
    %278 = vmatpush2.msra.mxu0 0.0
    %279 = vmatprep.subr.mxu0 0.0
    %280 = vmatpush2.msra.mxu0 0.0
    %281 = vmatprep.subr.mxu0 0.0
    %282 = vmatpush2.msra.mxu0 0.0
    %283 = vmatprep.subr.mxu0 0.0
    %284 = vmatpush2.msra.mxu0 0.0
    %285 = vmatprep.subr.mxu0 0.0
    %286 = vmatpush2.msra.mxu0 0.0
    %287 = vmatprep.subr.mxu0 0.0
    %288 = vmatpush2.msra.mxu0 0.0
    %289 = vmatprep.subr.mxu0 0.0
    %290 = vmatpush2.msra.mxu0 0.0
    %291 = vmatprep.subr.mxu0 0.0
    %292 = vmatpush2.msra.mxu0 0.0
    %293 = vmatprep.subr.mxu0 0.0
    %294 = vmatpush2.msra.mxu0 0.0
    %295 = vmatprep.subr.mxu0 0.0
    %296 = vmatpush2.msra.mxu0 0.0
    %297 = vmatprep.subr.mxu0 0.0
    %298 = vmatpush2.msra.mxu0 0.0
    %299 = vmatprep.subr.mxu0 0.0
    %300 = vmatpush2.msra.mxu0 0.0
    %301 = vmatprep.subr.mxu0 0.0
    %302 = vmatpush2.msra.mxu0 0.0
    %303 = vmatprep.subr.mxu0 0.0
    %304 = vmatpush2.msra.mxu0 0.0
    %305 = vmatprep.subr.mxu0 0.0
    %306 = vmatpush2.msra.mxu0 0.0
    %307 = vmatprep.subr.mxu0 0.0
    %308 = vmatpush2.msra.mxu0 0.0
    %309 = vmatprep.mubr.f32.mxu0 0.0
    %310 = vmatmul.mubr.f32.gmra.mxu0 %v243
    %v311 = vpop.f32.mrf.mxu0
    %v312 = vadd.f32 0.0, %v311
    %v313 = vpop.f32.mrf.mxu0
    %314 = vdwg.mxu0
    %vm315 = vcmask 57344
    %v316 = vsel %vm315, %v312, -inf
    %317 = vmax.xlane.f32.xlu0 %v316
    %v318 = vpop.xlane.xlu0 %317
    %v319 = vsub.f32 %v312, %v318
    %v320 = vmul.f32 %v319, 1.442695
    %v321 = vpow.pop %v320
    %v322 = vsel %vm315, %v321, 0.0
    %323 = vadd.xlane.f32.xlu0 %v322
    %v324 = vpop.xlane.xlu0 %323
    %v325 = vrcp.pop %v324
    %v326 = vmul.f32 %v321, %v325
    %vm327 = vcmask 64512
    %v329 = vsel %vm327, %v326, 0
    %331 = vmatprep.subr.mxu0 0.0
    %332 = vmatpush1.msra.mxu0 0.0
    %333 = vmatprep.subr.mxu0 0.0
    %334 = vmatpush1.msra.mxu0 0.0
    %335 = vmatprep.subr.mxu0 0.0
    %336 = vmatpush1.msra.mxu0 0.0
    %337 = vmatprep.subr.mxu0 0.0
    %338 = vmatpush1.msra.mxu0 0.0
    %339 = vmatprep.subr.mxu0 0.0
    %340 = vmatpush1.msra.mxu0 0.0
    %341 = vmatprep.subr.mxu0 0.0
    %342 = vmatpush1.msra.mxu0 0.0
    %343 = vmatprep.subr.mxu0 0.0
    %344 = vmatpush1.msra.mxu0 0.0
    %345 = vmatprep.subr.mxu0 0.0
    %346 = vmatpush1.msra.mxu0 0.0
    %347 = vmatprep.subr.mxu0 0.0
    %348 = vmatpush1.msra.mxu0 0.0
    %349 = vmatprep.subr.mxu0 0.0
    %350 = vmatpush1.msra.mxu0 0.0
    %351 = vmatprep.subr.mxu0 0.0
    %352 = vmatpush1.msra.mxu0 0.0
    %353 = vmatprep.subr.mxu0 0.0
    %354 = vmatpush1.msra.mxu0 0.0
    %355 = vmatprep.subr.mxu0 0.0
    %356 = vmatpush1.msra.mxu0 0.0
    %357 = vmatprep.subr.mxu0 0.0
    %358 = vmatpush1.msra.mxu0 0.0
    %359 = vmatprep.subr.mxu0 0.0
    %360 = vmatpush1.msra.mxu0 0.0
    %361 = vmatprep.subr.mxu0 0.0
    %362 = vmatpush1.msra.mxu0 %v52
    %363 = vmatprep.subr.mxu0 0.0
    %364 = vmatpush2.msra.mxu0 0.0
    %365 = vmatprep.subr.mxu0 0.0
    %366 = vmatpush2.msra.mxu0 0.0
    %367 = vmatprep.subr.mxu0 0.0
    %368 = vmatpush2.msra.mxu0 0.0
    %369 = vmatprep.subr.mxu0 0.0
    %370 = vmatpush2.msra.mxu0 0.0
    %371 = vmatprep.subr.mxu0 0.0
    %372 = vmatpush2.msra.mxu0 0.0
    %373 = vmatprep.subr.mxu0 0.0
    %374 = vmatpush2.msra.mxu0 0.0
    %375 = vmatprep.subr.mxu0 0.0
    %376 = vmatpush2.msra.mxu0 0.0
    %377 = vmatprep.subr.mxu0 0.0
    %378 = vmatpush2.msra.mxu0 0.0
    %379 = vmatprep.subr.mxu0 0.0
    %380 = vmatpush2.msra.mxu0 0.0
    %381 = vmatprep.subr.mxu0 0.0
    %382 = vmatpush2.msra.mxu0 0.0
    %383 = vmatprep.subr.mxu0 0.0
    %384 = vmatpush2.msra.mxu0 0.0
    %385 = vmatprep.subr.mxu0 0.0
    %386 = vmatpush2.msra.mxu0 0.0
    %387 = vmatprep.subr.mxu0 0.0
    %388 = vmatpush2.msra.mxu0 0.0
    %389 = vmatprep.subr.mxu0 0.0
    %390 = vmatpush2.msra.mxu0 0.0
    %391 = vmatprep.subr.mxu0 0.0
    %392 = vmatpush2.msra.mxu0 0.0
    %393 = vmatprep.subr.mxu0 0.0
    %394 = vmatpush2.msra.mxu0 0.0
    %395 = vmatprep.mubr.f32.mxu0 0.0
    %396 = vmatmul.mubr.f32.gmra.mxu0 %v329
    %v397 = vpop.f32.mrf.mxu0
    %v398 = vadd.f32 0.0, %v397
    %v399 = vpop.f32.mrf.mxu0
    %400 = vdwg.mxu0
    %v402 = vsel %vm65, %v398, 0
    %404 = vmatprep.subr.mxu0 0.0
    %405 = vmatpush1.msra.mxu0 0.0
    %406 = vmatprep.subr.mxu0 0.0
    %407 = vmatpush1.msra.mxu0 0.0
    %408 = vmatprep.subr.mxu0 0.0
    %409 = vmatpush1.msra.mxu0 0.0
    %410 = vmatprep.subr.mxu0 0.0
    %411 = vmatpush1.msra.mxu0 0.0
    %412 = vmatprep.subr.mxu0 0.0
    %413 = vmatpush1.msra.mxu0 0.0
    %414 = vmatprep.subr.mxu0 0.0
    %415 = vmatpush1.msra.mxu0 0.0
    %416 = vmatprep.subr.mxu0 0.0
    %417 = vmatpush1.msra.mxu0 0.0
    %418 = vmatprep.subr.mxu0 0.0
    %419 = vmatpush1.msra.mxu0 0.0
    %420 = vmatprep.subr.mxu0 0.0
    %421 = vmatpush1.msra.mxu0 0.0
    %422 = vmatprep.subr.mxu0 0.0
    %423 = vmatpush1.msra.mxu0 0.0
    %424 = vmatprep.subr.mxu0 0.0
    %425 = vmatpush1.msra.mxu0 0.0
    %426 = vmatprep.subr.mxu0 0.0
    %427 = vmatpush1.msra.mxu0 0.0
    %428 = vmatprep.subr.mxu0 0.0
    %429 = vmatpush1.msra.mxu0 %v47
    %430 = vmatprep.subr.mxu0 0.0
    %431 = vmatpush1.msra.mxu0 %v46
    %432 = vmatprep.subr.mxu0 0.0
    %433 = vmatpush1.msra.mxu0 %v45
    %434 = vmatprep.subr.mxu0 0.0
    %435 = vmatpush1.msra.mxu0 %v44
    %436 = vmatprep.subr.mxu0 0.0
    %437 = vmatpush2.msra.mxu0 0.0
    %438 = vmatprep.subr.mxu0 0.0
    %439 = vmatpush2.msra.mxu0 0.0
    %440 = vmatprep.subr.mxu0 0.0
    %441 = vmatpush2.msra.mxu0 0.0
    %442 = vmatprep.subr.mxu0 0.0
    %443 = vmatpush2.msra.mxu0 0.0
    %444 = vmatprep.subr.mxu0 0.0
    %445 = vmatpush2.msra.mxu0 0.0
    %446 = vmatprep.subr.mxu0 0.0
    %447 = vmatpush2.msra.mxu0 0.0
    %448 = vmatprep.subr.mxu0 0.0
    %449 = vmatpush2.msra.mxu0 0.0
    %450 = vmatprep.subr.mxu0 0.0
    %451 = vmatpush2.msra.mxu0 0.0
    %452 = vmatprep.subr.mxu0 0.0
    %453 = vmatpush2.msra.mxu0 0.0
    %454 = vmatprep.subr.mxu0 0.0
    %455 = vmatpush2.msra.mxu0 0.0
    %456 = vmatprep.subr.mxu0 0.0
    %457 = vmatpush2.msra.mxu0 0.0
    %458 = vmatprep.subr.mxu0 0.0
    %459 = vmatpush2.msra.mxu0 0.0
    %460 = vmatprep.subr.mxu0 0.0
    %461 = vmatpush2.msra.mxu0 0.0
    %462 = vmatprep.subr.mxu0 0.0
    %463 = vmatpush2.msra.mxu0 0.0
    %464 = vmatprep.subr.mxu0 0.0
    %465 = vmatpush2.msra.mxu0 0.0
    %466 = vmatprep.subr.mxu0 0.0
    %467 = vmatpush2.msra.mxu0 0.0
    %468 = vmatprep.mubr.f32.mxu0 0.0
    %469 = vmatmul.mubr.f32.gmra.mxu0 %v402
    %v470 = vpop.f32.mrf.mxu0
    %v471 = vadd.f32 0.0, %v470
    %v472 = vpop.f32.mrf.mxu0
    %473 = vdwg.mxu0
    %474 = vmatprep.subr.mxu0 0.0
    %475 = vmatpush1.msra.mxu0 0.0
    %476 = vmatprep.subr.mxu0 0.0
    %477 = vmatpush1.msra.mxu0 0.0
    %478 = vmatprep.subr.mxu0 0.0
    %479 = vmatpush1.msra.mxu0 0.0
    %480 = vmatprep.subr.mxu0 0.0
    %481 = vmatpush1.msra.mxu0 0.0
    %482 = vmatprep.subr.mxu0 0.0
    %483 = vmatpush1.msra.mxu0 0.0
    %484 = vmatprep.subr.mxu0 0.0
    %485 = vmatpush1.msra.mxu0 0.0
    %486 = vmatprep.subr.mxu0 0.0
    %487 = vmatpush1.msra.mxu0 0.0
    %488 = vmatprep.subr.mxu0 0.0
    %489 = vmatpush1.msra.mxu0 0.0
    %490 = vmatprep.subr.mxu0 0.0
    %491 = vmatpush1.msra.mxu0 0.0
    %492 = vmatprep.subr.mxu0 0.0
    %493 = vmatpush1.msra.mxu0 0.0
    %494 = vmatprep.subr.mxu0 0.0
    %495 = vmatpush1.msra.mxu0 0.0
    %496 = vmatprep.subr.mxu0 0.0
    %497 = vmatpush1.msra.mxu0 0.0
    %498 = vmatprep.subr.mxu0 0.0
    %499 = vmatpush1.msra.mxu0 %v43
    %500 = vmatprep.subr.mxu0 0.0
    %501 = vmatpush1.msra.mxu0 %v42
    %502 = vmatprep.subr.mxu0 0.0
    %503 = vmatpush1.msra.mxu0 %v41
    %504 = vmatprep.subr.mxu0 0.0
    %505 = vmatpush1.msra.mxu0 %v40
    %506 = vmatprep.subr.mxu0 0.0
    %507 = vmatpush2.msra.mxu0 0.0
    %508 = vmatprep.subr.mxu0 0.0
    %509 = vmatpush2.msra.mxu0 0.0
    %510 = vmatprep.subr.mxu0 0.0
    %511 = vmatpush2.msra.mxu0 0.0
    %512 = vmatprep.subr.mxu0 0.0
    %513 = vmatpush2.msra.mxu0 0.0
    %514 = vmatprep.subr.mxu0 0.0
    %515 = vmatpush2.msra.mxu0 0.0
    %516 = vmatprep.subr.mxu0 0.0
    %517 = vmatpush2.msra.mxu0 0.0
    %518 = vmatprep.subr.mxu0 0.0
    %519 = vmatpush2.msra.mxu0 0.0
    %520 = vmatprep.subr.mxu0 0.0
    %521 = vmatpush2.msra.mxu0 0.0
    %522 = vmatprep.subr.mxu0 0.0
    %523 = vmatpush2.msra.mxu0 0.0
    %524 = vmatprep.subr.mxu0 0.0
    %525 = vmatpush2.msra.mxu0 0.0
    %526 = vmatprep.subr.mxu0 0.0
    %527 = vmatpush2.msra.mxu0 0.0
    %528 = vmatprep.subr.mxu0 0.0
    %529 = vmatpush2.msra.mxu0 0.0
    %530 = vmatprep.subr.mxu0 0.0
    %531 = vmatpush2.msra.mxu0 0.0
    %532 = vmatprep.subr.mxu0 0.0
    %533 = vmatpush2.msra.mxu0 0.0
    %534 = vmatprep.subr.mxu0 0.0
    %535 = vmatpush2.msra.mxu0 0.0
    %536 = vmatprep.subr.mxu0 0.0
    %537 = vmatpush2.msra.mxu0 0.0
    %538 = vmatprep.mubr.f32.mxu0 0.0
    %539 = vmatmul.mubr.f32.gmra.mxu0 %v243
    %v540 = vpop.f32.mrf.mxu0
    %v541 = vadd.f32 %v471, %v540
    %v542 = vpop.f32.mrf.mxu0
    %543 = vdwg.mxu0
    %v544 = vadd.f32 %v541, %v57
    %v545 = vtanh.pop %v544
    %v547 = vsel %vm65, %v545, 0
    %549 = vmatprep.subr.mxu0 0.0
    %550 = vmatpush1.msra.mxu0 0.0
    %551 = vmatprep.subr.mxu0 0.0
    %552 = vmatpush1.msra.mxu0 0.0
    %553 = vmatprep.subr.mxu0 0.0
    %554 = vmatpush1.msra.mxu0 0.0
    %555 = vmatprep.subr.mxu0 0.0
    %556 = vmatpush1.msra.mxu0 0.0
    %557 = vmatprep.subr.mxu0 0.0
    %558 = vmatpush1.msra.mxu0 0.0
    %559 = vmatprep.subr.mxu0 0.0
    %560 = vmatpush1.msra.mxu0 0.0
    %561 = vmatprep.subr.mxu0 0.0
    %562 = vmatpush1.msra.mxu0 0.0
    %563 = vmatprep.subr.mxu0 0.0
    %564 = vmatpush1.msra.mxu0 0.0
    %565 = vmatprep.subr.mxu0 0.0
    %566 = vmatpush1.msra.mxu0 0.0
    %567 = vmatprep.subr.mxu0 0.0
    %568 = vmatpush1.msra.mxu0 0.0
    %569 = vmatprep.subr.mxu0 0.0
    %570 = vmatpush1.msra.mxu0 0.0
    %571 = vmatprep.subr.mxu0 0.0
    %572 = vmatpush1.msra.mxu0 0.0
    %573 = vmatprep.subr.mxu0 0.0
    %574 = vmatpush1.msra.mxu0 %v51
    %575 = vmatprep.subr.mxu0 0.0
    %576 = vmatpush1.msra.mxu0 %v50
    %577 = vmatprep.subr.mxu0 0.0
    %578 = vmatpush1.msra.mxu0 %v49
    %579 = vmatprep.subr.mxu0 0.0
    %580 = vmatpush1.msra.mxu0 %v48
    %581 = vmatprep.subr.mxu0 0.0
    %582 = vmatpush2.msra.mxu0 0.0
    %583 = vmatprep.subr.mxu0 0.0
    %584 = vmatpush2.msra.mxu0 0.0
    %585 = vmatprep.subr.mxu0 0.0
    %586 = vmatpush2.msra.mxu0 0.0
    %587 = vmatprep.subr.mxu0 0.0
    %588 = vmatpush2.msra.mxu0 0.0
    %589 = vmatprep.subr.mxu0 0.0
    %590 = vmatpush2.msra.mxu0 0.0
    %591 = vmatprep.subr.mxu0 0.0
    %592 = vmatpush2.msra.mxu0 0.0
    %593 = vmatprep.subr.mxu0 0.0
    %594 = vmatpush2.msra.mxu0 0.0
    %595 = vmatprep.subr.mxu0 0.0
    %596 = vmatpush2.msra.mxu0 0.0
    %597 = vmatprep.subr.mxu0 0.0
    %598 = vmatpush2.msra.mxu0 0.0
    %599 = vmatprep.subr.mxu0 0.0
    %600 = vmatpush2.msra.mxu0 0.0
    %601 = vmatprep.subr.mxu0 0.0
    %602 = vmatpush2.msra.mxu0 0.0
    %603 = vmatprep.subr.mxu0 0.0
    %604 = vmatpush2.msra.mxu0 0.0
    %605 = vmatprep.subr.mxu0 0.0
    %606 = vmatpush2.msra.mxu0 0.0
    %607 = vmatprep.subr.mxu0 0.0
    %608 = vmatpush2.msra.mxu0 0.0
    %609 = vmatprep.subr.mxu0 0.0
    %610 = vmatpush2.msra.mxu0 0.0
    %611 = vmatprep.subr.mxu0 0.0
    %612 = vmatpush2.msra.mxu0 0.0
    %613 = vmatprep.mubr.f32.mxu0 0.0
    %614 = vmatmul.mubr.f32.gmra.mxu0 %v547
    %v615 = vpop.f32.mrf.mxu0
    %v616 = vadd.f32 %v58, %v615
    %v617 = vpop.f32.mrf.mxu0
    %618 = vdwg.mxu0
    %v619 = vadd.f32 %v616, %v60
    %vm620 = vcmask 253952
    %v621 = vsel %vm620, %v619, -inf
    %622 = vmax.xlane.f32.xlu0 %v621
    %v623 = vpop.xlane.xlu0 %622
    %v624 = vsub.f32 %v619, %v623
    %v625 = vmul.f32 %v624, 1.442695
    %v626 = vpow.pop %v625
    %v627 = vsel %vm620, %v626, 0.0
    %628 = vadd.xlane.f32.xlu0 %v627
    %v629 = vpop.xlane.xlu0 %628
    %v630 = vlog2.pop %v629
    %v631 = vmul.f32 %v630, 0.6931472
    %v632 = vadd.f32 %v623, %v631
    %v633 = vstv %s141
    %vm634 = vcmp.eq.s32.totalorder %v140, %v633
    %v635 = vsel %vm634, %v616, 0.0
    %v636 = vsel %vm620, %v635, 0.0
    %637 = vadd.xlane.f32.xlu0 %v636
    %v638 = vpop.xlane.xlu0 %637
    %v639 = vsub.f32 %v638, %v632
    %v640 = vadd.f32 %v639, 0.0
    %s641 = sld [smem:[#allocation2 + $0x1]]
    %642 = vmatprep.subr.mxu0 0.0
    %643 = vmatpush1.msra.mxu0 0.0
    %644 = vmatprep.subr.mxu0 0.0
    %645 = vmatpush1.msra.mxu0 0.0
    %646 = vmatprep.subr.mxu0 0.0
    %647 = vmatpush1.msra.mxu0 0.0
    %648 = vmatprep.subr.mxu0 0.0
    %649 = vmatpush1.msra.mxu0 0.0
    %650 = vmatprep.subr.mxu0 0.0
    %651 = vmatpush1.msra.mxu0 0.0
    %652 = vmatprep.subr.mxu0 0.0
    %653 = vmatpush1.msra.mxu0 0.0
    %654 = vmatprep.subr.mxu0 0.0
    %655 = vmatpush1.msra.mxu0 0.0
    %656 = vmatprep.subr.mxu0 0.0
    %657 = vmatpush1.msra.mxu0 0.0
    %658 = vmatprep.subr.mxu0 0.0
    %659 = vmatpush1.msra.mxu0 0.0
    %660 = vmatprep.subr.mxu0 0.0
    %661 = vmatpush1.msra.mxu0 0.0
    %662 = vmatprep.subr.mxu0 0.0
    %663 = vmatpush1.msra.mxu0 0.0
    %664 = vmatprep.subr.mxu0 0.0
    %665 = vmatpush1.msra.mxu0 0.0
    %666 = vmatprep.subr.mxu0 0.0
    %667 = vmatpush1.msra.mxu0 %v38
    %668 = vmatprep.subr.mxu0 0.0
    %669 = vmatpush1.msra.mxu0 %v37
    %670 = vmatprep.subr.mxu0 0.0
    %671 = vmatpush1.msra.mxu0 %v36
    %672 = vmatprep.subr.mxu0 0.0
    %673 = vmatpush1.msra.mxu0 %v35
    %674 = vmatprep.subr.mxu0 0.0
    %675 = vmatpush2.msra.mxu0 0.0
    %676 = vmatprep.subr.mxu0 0.0
    %677 = vmatpush2.msra.mxu0 0.0
    %678 = vmatprep.subr.mxu0 0.0
    %679 = vmatpush2.msra.mxu0 0.0
    %680 = vmatprep.subr.mxu0 0.0
    %681 = vmatpush2.msra.mxu0 0.0
    %682 = vmatprep.subr.mxu0 0.0
    %683 = vmatpush2.msra.mxu0 0.0
    %684 = vmatprep.subr.mxu0 0.0
    %685 = vmatpush2.msra.mxu0 0.0
    %686 = vmatprep.subr.mxu0 0.0
    %687 = vmatpush2.msra.mxu0 0.0
    %688 = vmatprep.subr.mxu0 0.0
    %689 = vmatpush2.msra.mxu0 0.0
    %690 = vmatprep.subr.mxu0 0.0
    %691 = vmatpush2.msra.mxu0 0.0
    %692 = vmatprep.subr.mxu0 0.0
    %693 = vmatpush2.msra.mxu0 0.0
    %694 = vmatprep.subr.mxu0 0.0
    %695 = vmatpush2.msra.mxu0 0.0
    %696 = vmatprep.subr.mxu0 0.0
    %697 = vmatpush2.msra.mxu0 0.0
    %698 = vmatprep.subr.mxu0 0.0
    %699 = vmatpush2.msra.mxu0 0.0
    %700 = vmatprep.subr.mxu0 0.0
    %701 = vmatpush2.msra.mxu0 0.0
    %702 = vmatprep.subr.mxu0 0.0
    %703 = vmatpush2.msra.mxu0 0.0
    %704 = vmatprep.subr.mxu0 0.0
    %705 = vmatpush2.msra.mxu0 0.0
    %706 = vmatprep.mubr.f32.mxu0 0.0
    %707 = vmatmul.mubr.f32.gmra.mxu0 %v243
    %v708 = vpop.f32.mrf.mxu0
    %v709 = vadd.f32 0.0, %v708
    %v710 = vpop.f32.mrf.mxu0
    %711 = vdwg.mxu0
    %v713 = vrot.slane %v709, 7
    %v715 = vadd.f32 %v136, %v713
    %v716 = vxor.u32 %v715, 2147483648
    %v717 = vmul.f32 %v716, 1.442695
    %v718 = vpow.pop %v717
    %v719 = vadd.f32 %v718, 1.0
    %v720 = vrcp.pop %v719
    %v721 = vmul.f32 1.0, %v720
    %v722 = vtanh.pop %v715
    %v724 = vrot.slane %v233, 7
    %v726 = vmul.f32 %v721, %v724
    %728 = vrot.lane.b32.xlu0 %v722, 32
    %v729 = vpop.permute.xlu0 %728
    %v731 = vmul.f32 %v721, %v729
    %733 = vrot.lane.b32.xlu0 %v731, 32
    %v734 = vpop.permute.xlu0 %733
    %v736 = vadd.f32 %v726, %v734
    %v737 = vtanh.pop %v736
    %739 = vrot.lane.b32.xlu0 %v737, 32
    %v740 = vpop.permute.xlu0 %739
    %v742 = vmul.f32 %v721, %v740
    %v744 = vrot.slane %v742, 1
    %745 = vrot.lane.b32.xlu0 %v744, 64
    %v746 = vpop.permute.xlu0 %745
    %v747 = vsel %vm65, %v746, 0
    %749 = vmatprep.subr.mxu0 0.0
    %750 = vmatpush1.msra.mxu0 0.0
    %751 = vmatprep.subr.mxu0 0.0
    %752 = vmatpush1.msra.mxu0 0.0
    %753 = vmatprep.subr.mxu0 0.0
    %754 = vmatpush1.msra.mxu0 0.0
    %755 = vmatprep.subr.mxu0 0.0
    %756 = vmatpush1.msra.mxu0 0.0
    %757 = vmatprep.subr.mxu0 0.0
    %758 = vmatpush1.msra.mxu0 0.0
    %759 = vmatprep.subr.mxu0 0.0
    %760 = vmatpush1.msra.mxu0 0.0
    %761 = vmatprep.subr.mxu0 0.0
    %762 = vmatpush1.msra.mxu0 0.0
    %763 = vmatprep.subr.mxu0 0.0
    %764 = vmatpush1.msra.mxu0 0.0
    %765 = vmatprep.subr.mxu0 0.0
    %766 = vmatpush1.msra.mxu0 0.0
    %767 = vmatprep.subr.mxu0 0.0
    %768 = vmatpush1.msra.mxu0 0.0
    %769 = vmatprep.subr.mxu0 0.0
    %770 = vmatpush1.msra.mxu0 0.0
    %771 = vmatprep.subr.mxu0 0.0
    %772 = vmatpush1.msra.mxu0 0.0
    %773 = vmatprep.subr.mxu0 0.0
    %774 = vmatpush1.msra.mxu0 %v56
    %775 = vmatprep.subr.mxu0 0.0
    %776 = vmatpush1.msra.mxu0 %v55
    %777 = vmatprep.subr.mxu0 0.0
    %778 = vmatpush1.msra.mxu0 %v54
    %779 = vmatprep.subr.mxu0 0.0
    %780 = vmatpush1.msra.mxu0 %v53
    %781 = vmatprep.subr.mxu0 0.0
    %782 = vmatpush2.msra.mxu0 0.0
    %783 = vmatprep.subr.mxu0 0.0
    %784 = vmatpush2.msra.mxu0 0.0
    %785 = vmatprep.subr.mxu0 0.0
    %786 = vmatpush2.msra.mxu0 0.0
    %787 = vmatprep.subr.mxu0 0.0
    %788 = vmatpush2.msra.mxu0 0.0
    %789 = vmatprep.subr.mxu0 0.0
    %790 = vmatpush2.msra.mxu0 0.0
    %791 = vmatprep.subr.mxu0 0.0
    %792 = vmatpush2.msra.mxu0 0.0
    %793 = vmatprep.subr.mxu0 0.0
    %794 = vmatpush2.msra.mxu0 0.0
    %795 = vmatprep.subr.mxu0 0.0
    %796 = vmatpush2.msra.mxu0 0.0
    %797 = vmatprep.subr.mxu0 0.0
    %798 = vmatpush2.msra.mxu0 0.0
    %799 = vmatprep.subr.mxu0 0.0
    %800 = vmatpush2.msra.mxu0 0.0
    %801 = vmatprep.subr.mxu0 0.0
    %802 = vmatpush2.msra.mxu0 0.0
    %803 = vmatprep.subr.mxu0 0.0
    %804 = vmatpush2.msra.mxu0 0.0
    %805 = vmatprep.subr.mxu0 0.0
    %806 = vmatpush2.msra.mxu0 0.0
    %807 = vmatprep.subr.mxu0 0.0
    %808 = vmatpush2.msra.mxu0 0.0
    %809 = vmatprep.subr.mxu0 0.0
    %810 = vmatpush2.msra.mxu0 0.0
    %811 = vmatprep.subr.mxu0 0.0
    %812 = vmatpush2.msra.mxu0 0.0
    %813 = vmatprep.mubr.f32.mxu0 0.0
    %814 = vmatmul.mubr.f32.gmra.mxu0 %v747
    %v815 = vpop.f32.mrf.mxu0
    %v816 = vadd.f32 0.0, %v815
    %v817 = vpop.f32.mrf.mxu0
    %818 = vdwg.mxu0
    %v819 = vsel %vm315, %v816, -inf
    %820 = vmax.xlane.f32.xlu0 %v819
    %v821 = vpop.xlane.xlu0 %820
    %v822 = vsub.f32 %v816, %v821
    %v823 = vmul.f32 %v822, 1.442695
    %v824 = vpow.pop %v823
    %v825 = vsel %vm315, %v824, 0.0
    %826 = vadd.xlane.f32.xlu0 %v825
    %v827 = vpop.xlane.xlu0 %826
    %v828 = vrcp.pop %v827
    %v829 = vmul.f32 %v824, %v828
    %v831 = vsel %vm327, %v829, 0
    %833 = vmatprep.subr.mxu0 0.0
    %834 = vmatpush1.msra.mxu0 0.0
    %835 = vmatprep.subr.mxu0 0.0
    %836 = vmatpush1.msra.mxu0 0.0
    %837 = vmatprep.subr.mxu0 0.0
    %838 = vmatpush1.msra.mxu0 0.0
    %839 = vmatprep.subr.mxu0 0.0
    %840 = vmatpush1.msra.mxu0 0.0
    %841 = vmatprep.subr.mxu0 0.0
    %842 = vmatpush1.msra.mxu0 0.0
    %843 = vmatprep.subr.mxu0 0.0
    %844 = vmatpush1.msra.mxu0 0.0
    %845 = vmatprep.subr.mxu0 0.0
    %846 = vmatpush1.msra.mxu0 0.0
    %847 = vmatprep.subr.mxu0 0.0
    %848 = vmatpush1.msra.mxu0 0.0
    %849 = vmatprep.subr.mxu0 0.0
    %850 = vmatpush1.msra.mxu0 0.0
    %851 = vmatprep.subr.mxu0 0.0
    %852 = vmatpush1.msra.mxu0 0.0
    %853 = vmatprep.subr.mxu0 0.0
    %854 = vmatpush1.msra.mxu0 0.0
    %855 = vmatprep.subr.mxu0 0.0
    %856 = vmatpush1.msra.mxu0 0.0
    %857 = vmatprep.subr.mxu0 0.0
    %858 = vmatpush1.msra.mxu0 0.0
    %859 = vmatprep.subr.mxu0 0.0
    %860 = vmatpush1.msra.mxu0 0.0
    %861 = vmatprep.subr.mxu0 0.0
    %862 = vmatpush1.msra.mxu0 0.0
    %863 = vmatprep.subr.mxu0 0.0
    %864 = vmatpush1.msra.mxu0 %v52
    %865 = vmatprep.subr.mxu0 0.0
    %866 = vmatpush2.msra.mxu0 0.0
    %867 = vmatprep.subr.mxu0 0.0
    %868 = vmatpush2.msra.mxu0 0.0
    %869 = vmatprep.subr.mxu0 0.0
    %870 = vmatpush2.msra.mxu0 0.0
    %871 = vmatprep.subr.mxu0 0.0
    %872 = vmatpush2.msra.mxu0 0.0
    %873 = vmatprep.subr.mxu0 0.0
    %874 = vmatpush2.msra.mxu0 0.0
    %875 = vmatprep.subr.mxu0 0.0
    %876 = vmatpush2.msra.mxu0 0.0
    %877 = vmatprep.subr.mxu0 0.0
    %878 = vmatpush2.msra.mxu0 0.0
    %879 = vmatprep.subr.mxu0 0.0
    %880 = vmatpush2.msra.mxu0 0.0
    %881 = vmatprep.subr.mxu0 0.0
    %882 = vmatpush2.msra.mxu0 0.0
    %883 = vmatprep.subr.mxu0 0.0
    %884 = vmatpush2.msra.mxu0 0.0
    %885 = vmatprep.subr.mxu0 0.0
    %886 = vmatpush2.msra.mxu0 0.0
    %887 = vmatprep.subr.mxu0 0.0
    %888 = vmatpush2.msra.mxu0 0.0
    %889 = vmatprep.subr.mxu0 0.0
    %890 = vmatpush2.msra.mxu0 0.0
    %891 = vmatprep.subr.mxu0 0.0
    %892 = vmatpush2.msra.mxu0 0.0
    %893 = vmatprep.subr.mxu0 0.0
    %894 = vmatpush2.msra.mxu0 0.0
    %895 = vmatprep.subr.mxu0 0.0
    %896 = vmatpush2.msra.mxu0 0.0
    %897 = vmatprep.mubr.f32.mxu0 0.0
    %898 = vmatmul.mubr.f32.gmra.mxu0 %v831
    %v899 = vpop.f32.mrf.mxu0
    %v900 = vadd.f32 0.0, %v899
    %v901 = vpop.f32.mrf.mxu0
    %902 = vdwg.mxu0
    %v904 = vsel %vm65, %v900, 0
    %906 = vmatprep.subr.mxu0 0.0
    %907 = vmatpush1.msra.mxu0 0.0
    %908 = vmatprep.subr.mxu0 0.0
    %909 = vmatpush1.msra.mxu0 0.0
    %910 = vmatprep.subr.mxu0 0.0
    %911 = vmatpush1.msra.mxu0 0.0
    %912 = vmatprep.subr.mxu0 0.0
    %913 = vmatpush1.msra.mxu0 0.0
    %914 = vmatprep.subr.mxu0 0.0
    %915 = vmatpush1.msra.mxu0 0.0
    %916 = vmatprep.subr.mxu0 0.0
    %917 = vmatpush1.msra.mxu0 0.0
    %918 = vmatprep.subr.mxu0 0.0
    %919 = vmatpush1.msra.mxu0 0.0
    %920 = vmatprep.subr.mxu0 0.0
    %921 = vmatpush1.msra.mxu0 0.0
    %922 = vmatprep.subr.mxu0 0.0
    %923 = vmatpush1.msra.mxu0 0.0
    %924 = vmatprep.subr.mxu0 0.0
    %925 = vmatpush1.msra.mxu0 0.0
    %926 = vmatprep.subr.mxu0 0.0
    %927 = vmatpush1.msra.mxu0 0.0
    %928 = vmatprep.subr.mxu0 0.0
    %929 = vmatpush1.msra.mxu0 0.0
    %930 = vmatprep.subr.mxu0 0.0
    %931 = vmatpush1.msra.mxu0 %v47
    %932 = vmatprep.subr.mxu0 0.0
    %933 = vmatpush1.msra.mxu0 %v46
    %934 = vmatprep.subr.mxu0 0.0
    %935 = vmatpush1.msra.mxu0 %v45
    %936 = vmatprep.subr.mxu0 0.0
    %937 = vmatpush1.msra.mxu0 %v44
    %938 = vmatprep.subr.mxu0 0.0
    %939 = vmatpush2.msra.mxu0 0.0
    %940 = vmatprep.subr.mxu0 0.0
    %941 = vmatpush2.msra.mxu0 0.0
    %942 = vmatprep.subr.mxu0 0.0
    %943 = vmatpush2.msra.mxu0 0.0
    %944 = vmatprep.subr.mxu0 0.0
    %945 = vmatpush2.msra.mxu0 0.0
    %946 = vmatprep.subr.mxu0 0.0
    %947 = vmatpush2.msra.mxu0 0.0
    %948 = vmatprep.subr.mxu0 0.0
    %949 = vmatpush2.msra.mxu0 0.0
    %950 = vmatprep.subr.mxu0 0.0
    %951 = vmatpush2.msra.mxu0 0.0
    %952 = vmatprep.subr.mxu0 0.0
    %953 = vmatpush2.msra.mxu0 0.0
    %954 = vmatprep.subr.mxu0 0.0
    %955 = vmatpush2.msra.mxu0 0.0
    %956 = vmatprep.subr.mxu0 0.0
    %957 = vmatpush2.msra.mxu0 0.0
    %958 = vmatprep.subr.mxu0 0.0
    %959 = vmatpush2.msra.mxu0 0.0
    %960 = vmatprep.subr.mxu0 0.0
    %961 = vmatpush2.msra.mxu0 0.0
    %962 = vmatprep.subr.mxu0 0.0
    %963 = vmatpush2.msra.mxu0 0.0
    %964 = vmatprep.subr.mxu0 0.0
    %965 = vmatpush2.msra.mxu0 0.0
    %966 = vmatprep.subr.mxu0 0.0
    %967 = vmatpush2.msra.mxu0 0.0
    %968 = vmatprep.subr.mxu0 0.0
    %969 = vmatpush2.msra.mxu0 0.0
    %970 = vmatprep.mubr.f32.mxu0 0.0
    %971 = vmatmul.mubr.f32.gmra.mxu0 %v904
    %v972 = vpop.f32.mrf.mxu0
    %v973 = vadd.f32 0.0, %v972
    %v974 = vpop.f32.mrf.mxu0
    %975 = vdwg.mxu0
    %976 = vmatprep.subr.mxu0 0.0
    %977 = vmatpush1.msra.mxu0 0.0
    %978 = vmatprep.subr.mxu0 0.0
    %979 = vmatpush1.msra.mxu0 0.0
    %980 = vmatprep.subr.mxu0 0.0
    %981 = vmatpush1.msra.mxu0 0.0
    %982 = vmatprep.subr.mxu0 0.0
    %983 = vmatpush1.msra.mxu0 0.0
    %984 = vmatprep.subr.mxu0 0.0
    %985 = vmatpush1.msra.mxu0 0.0
    %986 = vmatprep.subr.mxu0 0.0
    %987 = vmatpush1.msra.mxu0 0.0
    %988 = vmatprep.subr.mxu0 0.0
    %989 = vmatpush1.msra.mxu0 0.0
    %990 = vmatprep.subr.mxu0 0.0
    %991 = vmatpush1.msra.mxu0 0.0
    %992 = vmatprep.subr.mxu0 0.0
    %993 = vmatpush1.msra.mxu0 0.0
    %994 = vmatprep.subr.mxu0 0.0
    %995 = vmatpush1.msra.mxu0 0.0
    %996 = vmatprep.subr.mxu0 0.0
    %997 = vmatpush1.msra.mxu0 0.0
    %998 = vmatprep.subr.mxu0 0.0
    %999 = vmatpush1.msra.mxu0 0.0
    %1000 = vmatprep.subr.mxu0 0.0
    %1001 = vmatpush1.msra.mxu0 %v43
    %1002 = vmatprep.subr.mxu0 0.0
    %1003 = vmatpush1.msra.mxu0 %v42
    %1004 = vmatprep.subr.mxu0 0.0
    %1005 = vmatpush1.msra.mxu0 %v41
    %1006 = vmatprep.subr.mxu0 0.0
    %1007 = vmatpush1.msra.mxu0 %v40
    %1008 = vmatprep.subr.mxu0 0.0
    %1009 = vmatpush2.msra.mxu0 0.0
    %1010 = vmatprep.subr.mxu0 0.0
    %1011 = vmatpush2.msra.mxu0 0.0
    %1012 = vmatprep.subr.mxu0 0.0
    %1013 = vmatpush2.msra.mxu0 0.0
    %1014 = vmatprep.subr.mxu0 0.0
    %1015 = vmatpush2.msra.mxu0 0.0
    %1016 = vmatprep.subr.mxu0 0.0
    %1017 = vmatpush2.msra.mxu0 0.0
    %1018 = vmatprep.subr.mxu0 0.0
    %1019 = vmatpush2.msra.mxu0 0.0
    %1020 = vmatprep.subr.mxu0 0.0
    %1021 = vmatpush2.msra.mxu0 0.0
    %1022 = vmatprep.subr.mxu0 0.0
    %1023 = vmatpush2.msra.mxu0 0.0
    %1024 = vmatprep.subr.mxu0 0.0
    %1025 = vmatpush2.msra.mxu0 0.0
    %1026 = vmatprep.subr.mxu0 0.0
    %1027 = vmatpush2.msra.mxu0 0.0
    %1028 = vmatprep.subr.mxu0 0.0
    %1029 = vmatpush2.msra.mxu0 0.0
    %1030 = vmatprep.subr.mxu0 0.0
    %1031 = vmatpush2.msra.mxu0 0.0
    %1032 = vmatprep.subr.mxu0 0.0
    %1033 = vmatpush2.msra.mxu0 0.0
    %1034 = vmatprep.subr.mxu0 0.0
    %1035 = vmatpush2.msra.mxu0 0.0
    %1036 = vmatprep.subr.mxu0 0.0
    %1037 = vmatpush2.msra.mxu0 0.0
    %1038 = vmatprep.subr.mxu0 0.0
    %1039 = vmatpush2.msra.mxu0 0.0
    %1040 = vmatprep.mubr.f32.mxu0 0.0
    %1041 = vmatmul.mubr.f32.gmra.mxu0 %v747
    %v1042 = vpop.f32.mrf.mxu0
    %v1043 = vadd.f32 %v973, %v1042
    %v1044 = vpop.f32.mrf.mxu0
    %1045 = vdwg.mxu0
    %v1046 = vadd.f32 %v1043, %v57
    %v1047 = vtanh.pop %v1046
    %v1049 = vsel %vm65, %v1047, 0
    %1051 = vmatprep.subr.mxu0 0.0
    %1052 = vmatpush1.msra.mxu0 0.0
    %1053 = vmatprep.subr.mxu0 0.0
    %1054 = vmatpush1.msra.mxu0 0.0
    %1055 = vmatprep.subr.mxu0 0.0
    %1056 = vmatpush1.msra.mxu0 0.0
    %1057 = vmatprep.subr.mxu0 0.0
    %1058 = vmatpush1.msra.mxu0 0.0
    %1059 = vmatprep.subr.mxu0 0.0
    %1060 = vmatpush1.msra.mxu0 0.0
    %1061 = vmatprep.subr.mxu0 0.0
    %1062 = vmatpush1.msra.mxu0 0.0
    %1063 = vmatprep.subr.mxu0 0.0
    %1064 = vmatpush1.msra.mxu0 0.0
    %1065 = vmatprep.subr.mxu0 0.0
    %1066 = vmatpush1.msra.mxu0 0.0
    %1067 = vmatprep.subr.mxu0 0.0
    %1068 = vmatpush1.msra.mxu0 0.0
    %1069 = vmatprep.subr.mxu0 0.0
    %1070 = vmatpush1.msra.mxu0 0.0
    %1071 = vmatprep.subr.mxu0 0.0
    %1072 = vmatpush1.msra.mxu0 0.0
    %1073 = vmatprep.subr.mxu0 0.0
    %1074 = vmatpush1.msra.mxu0 0.0
    %1075 = vmatprep.subr.mxu0 0.0
    %1076 = vmatpush1.msra.mxu0 %v51
    %1077 = vmatprep.subr.mxu0 0.0
    %1078 = vmatpush1.msra.mxu0 %v50
    %1079 = vmatprep.subr.mxu0 0.0
    %1080 = vmatpush1.msra.mxu0 %v49
    %1081 = vmatprep.subr.mxu0 0.0
    %1082 = vmatpush1.msra.mxu0 %v48
    %1083 = vmatprep.subr.mxu0 0.0
    %1084 = vmatpush2.msra.mxu0 0.0
    %1085 = vmatprep.subr.mxu0 0.0
    %1086 = vmatpush2.msra.mxu0 0.0
    %1087 = vmatprep.subr.mxu0 0.0
    %1088 = vmatpush2.msra.mxu0 0.0
    %1089 = vmatprep.subr.mxu0 0.0
    %1090 = vmatpush2.msra.mxu0 0.0
    %1091 = vmatprep.subr.mxu0 0.0
    %1092 = vmatpush2.msra.mxu0 0.0
    %1093 = vmatprep.subr.mxu0 0.0
    %1094 = vmatpush2.msra.mxu0 0.0
    %1095 = vmatprep.subr.mxu0 0.0
    %1096 = vmatpush2.msra.mxu0 0.0
    %1097 = vmatprep.subr.mxu0 0.0
    %1098 = vmatpush2.msra.mxu0 0.0
    %1099 = vmatprep.subr.mxu0 0.0
    %1100 = vmatpush2.msra.mxu0 0.0
    %1101 = vmatprep.subr.mxu0 0.0
    %1102 = vmatpush2.msra.mxu0 0.0
    %1103 = vmatprep.subr.mxu0 0.0
    %1104 = vmatpush2.msra.mxu0 0.0
    %1105 = vmatprep.subr.mxu0 0.0
    %1106 = vmatpush2.msra.mxu0 0.0
    %1107 = vmatprep.subr.mxu0 0.0
    %1108 = vmatpush2.msra.mxu0 0.0
    %1109 = vmatprep.subr.mxu0 0.0
    %1110 = vmatpush2.msra.mxu0 0.0
    %1111 = vmatprep.subr.mxu0 0.0
    %1112 = vmatpush2.msra.mxu0 0.0
    %1113 = vmatprep.subr.mxu0 0.0
    %1114 = vmatpush2.msra.mxu0 0.0
    %1115 = vmatprep.mubr.f32.mxu0 0.0
    %1116 = vmatmul.mubr.f32.gmra.mxu0 %v1049
    %v1117 = vpop.f32.mrf.mxu0
    %v1118 = vadd.f32 %v58, %v1117
    %v1119 = vpop.f32.mrf.mxu0
    %1120 = vdwg.mxu0
    %v1122 = vrot.slane %v60, 1
    %v1124 = vadd.f32 %v1118, %v1122
    %v1125 = vsel %vm620, %v1124, -inf
    %1126 = vmax.xlane.f32.xlu0 %v1125
    %v1127 = vpop.xlane.xlu0 %1126
    %v1128 = vsub.f32 %v1124, %v1127
    %v1129 = vmul.f32 %v1128, 1.442695
    %v1130 = vpow.pop %v1129
    %v1131 = vsel %vm620, %v1130, 0.0
    %1132 = vadd.xlane.f32.xlu0 %v1131
    %v1133 = vpop.xlane.xlu0 %1132
    %v1134 = vlog2.pop %v1133
    %v1135 = vmul.f32 %v1134, 0.6931472
    %v1136 = vadd.f32 %v1127, %v1135
    %v1137 = vstv %s641
    %vm1138 = vcmp.eq.s32.totalorder %v140, %v1137
    %v1139 = vsel %vm1138, %v1118, 0.0
    %v1140 = vsel %vm620, %v1139, 0.0
    %1141 = vadd.xlane.f32.xlu0 %v1140
    %v1142 = vpop.xlane.xlu0 %1141
    %v1143 = vsub.f32 %v1142, %v1136
    %v1144 = vadd.f32 %v640, %v1143
    %s1145 = sld [smem:[#allocation2 + $0x2]]
    %1146 = vmatprep.subr.mxu0 0.0
    %1147 = vmatpush1.msra.mxu0 0.0
    %1148 = vmatprep.subr.mxu0 0.0
    %1149 = vmatpush1.msra.mxu0 0.0
    %1150 = vmatprep.subr.mxu0 0.0
    %1151 = vmatpush1.msra.mxu0 0.0
    %1152 = vmatprep.subr.mxu0 0.0
    %1153 = vmatpush1.msra.mxu0 0.0
    %1154 = vmatprep.subr.mxu0 0.0
    %1155 = vmatpush1.msra.mxu0 0.0
    %1156 = vmatprep.subr.mxu0 0.0
    %1157 = vmatpush1.msra.mxu0 0.0
    %1158 = vmatprep.subr.mxu0 0.0
    %1159 = vmatpush1.msra.mxu0 0.0
    %1160 = vmatprep.subr.mxu0 0.0
    %1161 = vmatpush1.msra.mxu0 0.0
    %1162 = vmatprep.subr.mxu0 0.0
    %1163 = vmatpush1.msra.mxu0 0.0
    %1164 = vmatprep.subr.mxu0 0.0
    %1165 = vmatpush1.msra.mxu0 0.0
    %1166 = vmatprep.subr.mxu0 0.0
    %1167 = vmatpush1.msra.mxu0 0.0
    %1168 = vmatprep.subr.mxu0 0.0
    %1169 = vmatpush1.msra.mxu0 0.0
    %1170 = vmatprep.subr.mxu0 0.0
    %1171 = vmatpush1.msra.mxu0 %v38
    %1172 = vmatprep.subr.mxu0 0.0
    %1173 = vmatpush1.msra.mxu0 %v37
    %1174 = vmatprep.subr.mxu0 0.0
    %1175 = vmatpush1.msra.mxu0 %v36
    %1176 = vmatprep.subr.mxu0 0.0
    %1177 = vmatpush1.msra.mxu0 %v35
    %1178 = vmatprep.subr.mxu0 0.0
    %1179 = vmatpush2.msra.mxu0 0.0
    %1180 = vmatprep.subr.mxu0 0.0
    %1181 = vmatpush2.msra.mxu0 0.0
    %1182 = vmatprep.subr.mxu0 0.0
    %1183 = vmatpush2.msra.mxu0 0.0
    %1184 = vmatprep.subr.mxu0 0.0
    %1185 = vmatpush2.msra.mxu0 0.0
    %1186 = vmatprep.subr.mxu0 0.0
    %1187 = vmatpush2.msra.mxu0 0.0
    %1188 = vmatprep.subr.mxu0 0.0
    %1189 = vmatpush2.msra.mxu0 0.0
    %1190 = vmatprep.subr.mxu0 0.0
    %1191 = vmatpush2.msra.mxu0 0.0
    %1192 = vmatprep.subr.mxu0 0.0
    %1193 = vmatpush2.msra.mxu0 0.0
    %1194 = vmatprep.subr.mxu0 0.0
    %1195 = vmatpush2.msra.mxu0 0.0
    %1196 = vmatprep.subr.mxu0 0.0
    %1197 = vmatpush2.msra.mxu0 0.0
    %1198 = vmatprep.subr.mxu0 0.0
    %1199 = vmatpush2.msra.mxu0 0.0
    %1200 = vmatprep.subr.mxu0 0.0
    %1201 = vmatpush2.msra.mxu0 0.0
    %1202 = vmatprep.subr.mxu0 0.0
    %1203 = vmatpush2.msra.mxu0 0.0
    %1204 = vmatprep.subr.mxu0 0.0
    %1205 = vmatpush2.msra.mxu0 0.0
    %1206 = vmatprep.subr.mxu0 0.0
    %1207 = vmatpush2.msra.mxu0 0.0
    %1208 = vmatprep.subr.mxu0 0.0
    %1209 = vmatpush2.msra.mxu0 0.0
    %1210 = vmatprep.mubr.f32.mxu0 0.0
    %1211 = vmatmul.mubr.f32.gmra.mxu0 %v747
    %v1212 = vpop.f32.mrf.mxu0
    %v1213 = vadd.f32 0.0, %v1212
    %v1214 = vpop.f32.mrf.mxu0
    %1215 = vdwg.mxu0
    %v1217 = vrot.slane %v1213, 6
    %v1219 = vadd.f32 %v136, %v1217
    %v1220 = vxor.u32 %v1219, 2147483648
    %v1221 = vmul.f32 %v1220, 1.442695
    %v1222 = vpow.pop %v1221
    %v1223 = vadd.f32 %v1222, 1.0
    %v1224 = vrcp.pop %v1223
    %v1225 = vmul.f32 1.0, %v1224
    %v1226 = vtanh.pop %v1219
    %v1228 = vrot.slane %v736, 7
    %v1230 = vmul.f32 %v1225, %v1228
    %1232 = vrot.lane.b32.xlu0 %v1226, 32
    %v1233 = vpop.permute.xlu0 %1232
    %v1235 = vmul.f32 %v1225, %v1233
    %1237 = vrot.lane.b32.xlu0 %v1235, 32
    %v1238 = vpop.permute.xlu0 %1237
    %v1240 = vadd.f32 %v1230, %v1238
    %v1241 = vtanh.pop %v1240
    %1243 = vrot.lane.b32.xlu0 %v1241, 32
    %v1244 = vpop.permute.xlu0 %1243
    %v1246 = vmul.f32 %v1225, %v1244
    %v1248 = vrot.slane %v1246, 2
    %1249 = vrot.lane.b32.xlu0 %v1248, 64
    %v1250 = vpop.permute.xlu0 %1249
    %v1251 = vsel %vm65, %v1250, 0
    %1253 = vmatprep.subr.mxu0 0.0
    %1254 = vmatpush1.msra.mxu0 0.0
    %1255 = vmatprep.subr.mxu0 0.0
    %1256 = vmatpush1.msra.mxu0 0.0
    %1257 = vmatprep.subr.mxu0 0.0
    %1258 = vmatpush1.msra.mxu0 0.0
    %1259 = vmatprep.subr.mxu0 0.0
    %1260 = vmatpush1.msra.mxu0 0.0
    %1261 = vmatprep.subr.mxu0 0.0
    %1262 = vmatpush1.msra.mxu0 0.0
    %1263 = vmatprep.subr.mxu0 0.0
    %1264 = vmatpush1.msra.mxu0 0.0
    %1265 = vmatprep.subr.mxu0 0.0
    %1266 = vmatpush1.msra.mxu0 0.0
    %1267 = vmatprep.subr.mxu0 0.0
    %1268 = vmatpush1.msra.mxu0 0.0
    %1269 = vmatprep.subr.mxu0 0.0
    %1270 = vmatpush1.msra.mxu0 0.0
    %1271 = vmatprep.subr.mxu0 0.0
    %1272 = vmatpush1.msra.mxu0 0.0
    %1273 = vmatprep.subr.mxu0 0.0
    %1274 = vmatpush1.msra.mxu0 0.0
    %1275 = vmatprep.subr.mxu0 0.0
    %1276 = vmatpush1.msra.mxu0 0.0
    %1277 = vmatprep.subr.mxu0 0.0
    %1278 = vmatpush1.msra.mxu0 %v56
    %1279 = vmatprep.subr.mxu0 0.0
    %1280 = vmatpush1.msra.mxu0 %v55
    %1281 = vmatprep.subr.mxu0 0.0
    %1282 = vmatpush1.msra.mxu0 %v54
    %1283 = vmatprep.subr.mxu0 0.0
    %1284 = vmatpush1.msra.mxu0 %v53
    %1285 = vmatprep.subr.mxu0 0.0
    %1286 = vmatpush2.msra.mxu0 0.0
    %1287 = vmatprep.subr.mxu0 0.0
    %1288 = vmatpush2.msra.mxu0 0.0
    %1289 = vmatprep.subr.mxu0 0.0
    %1290 = vmatpush2.msra.mxu0 0.0
    %1291 = vmatprep.subr.mxu0 0.0
    %1292 = vmatpush2.msra.mxu0 0.0
    %1293 = vmatprep.subr.mxu0 0.0
    %1294 = vmatpush2.msra.mxu0 0.0
    %1295 = vmatprep.subr.mxu0 0.0
    %1296 = vmatpush2.msra.mxu0 0.0
    %1297 = vmatprep.subr.mxu0 0.0
    %1298 = vmatpush2.msra.mxu0 0.0
    %1299 = vmatprep.subr.mxu0 0.0
    %1300 = vmatpush2.msra.mxu0 0.0
    %1301 = vmatprep.subr.mxu0 0.0
    %1302 = vmatpush2.msra.mxu0 0.0
    %1303 = vmatprep.subr.mxu0 0.0
    %1304 = vmatpush2.msra.mxu0 0.0
    %1305 = vmatprep.subr.mxu0 0.0
    %1306 = vmatpush2.msra.mxu0 0.0
    %1307 = vmatprep.subr.mxu0 0.0
    %1308 = vmatpush2.msra.mxu0 0.0
    %1309 = vmatprep.subr.mxu0 0.0
    %1310 = vmatpush2.msra.mxu0 0.0
    %1311 = vmatprep.subr.mxu0 0.0
    %1312 = vmatpush2.msra.mxu0 0.0
    %1313 = vmatprep.subr.mxu0 0.0
    %1314 = vmatpush2.msra.mxu0 0.0
    %1315 = vmatprep.subr.mxu0 0.0
    %1316 = vmatpush2.msra.mxu0 0.0
    %1317 = vmatprep.mubr.f32.mxu0 0.0
    %1318 = vmatmul.mubr.f32.gmra.mxu0 %v1251
    %v1319 = vpop.f32.mrf.mxu0
    %v1320 = vadd.f32 0.0, %v1319
    %v1321 = vpop.f32.mrf.mxu0
    %1322 = vdwg.mxu0
    %v1323 = vsel %vm315, %v1320, -inf
    %1324 = vmax.xlane.f32.xlu0 %v1323
    %v1325 = vpop.xlane.xlu0 %1324
    %v1326 = vsub.f32 %v1320, %v1325
    %v1327 = vmul.f32 %v1326, 1.442695
    %v1328 = vpow.pop %v1327
    %v1329 = vsel %vm315, %v1328, 0.0
    %1330 = vadd.xlane.f32.xlu0 %v1329
    %v1331 = vpop.xlane.xlu0 %1330
    %v1332 = vrcp.pop %v1331
    %v1333 = vmul.f32 %v1328, %v1332
    %v1335 = vsel %vm327, %v1333, 0
    %1337 = vmatprep.subr.mxu0 0.0
    %1338 = vmatpush1.msra.mxu0 0.0
    %1339 = vmatprep.subr.mxu0 0.0
    %1340 = vmatpush1.msra.mxu0 0.0
    %1341 = vmatprep.subr.mxu0 0.0
    %1342 = vmatpush1.msra.mxu0 0.0
    %1343 = vmatprep.subr.mxu0 0.0
    %1344 = vmatpush1.msra.mxu0 0.0
    %1345 = vmatprep.subr.mxu0 0.0
    %1346 = vmatpush1.msra.mxu0 0.0
    %1347 = vmatprep.subr.mxu0 0.0
    %1348 = vmatpush1.msra.mxu0 0.0
    %1349 = vmatprep.subr.mxu0 0.0
    %1350 = vmatpush1.msra.mxu0 0.0
    %1351 = vmatprep.subr.mxu0 0.0
    %1352 = vmatpush1.msra.mxu0 0.0
    %1353 = vmatprep.subr.mxu0 0.0
    %1354 = vmatpush1.msra.mxu0 0.0
    %1355 = vmatprep.subr.mxu0 0.0
    %1356 = vmatpush1.msra.mxu0 0.0
    %1357 = vmatprep.subr.mxu0 0.0
    %1358 = vmatpush1.msra.mxu0 0.0
    %1359 = vmatprep.subr.mxu0 0.0
    %1360 = vmatpush1.msra.mxu0 0.0
    %1361 = vmatprep.subr.mxu0 0.0
    %1362 = vmatpush1.msra.mxu0 0.0
    %1363 = vmatprep.subr.mxu0 0.0
    %1364 = vmatpush1.msra.mxu0 0.0
    %1365 = vmatprep.subr.mxu0 0.0
    %1366 = vmatpush1.msra.mxu0 0.0
    %1367 = vmatprep.subr.mxu0 0.0
    %1368 = vmatpush1.msra.mxu0 %v52
    %1369 = vmatprep.subr.mxu0 0.0
    %1370 = vmatpush2.msra.mxu0 0.0
    %1371 = vmatprep.subr.mxu0 0.0
    %1372 = vmatpush2.msra.mxu0 0.0
    %1373 = vmatprep.subr.mxu0 0.0
    %1374 = vmatpush2.msra.mxu0 0.0
    %1375 = vmatprep.subr.mxu0 0.0
    %1376 = vmatpush2.msra.mxu0 0.0
    %1377 = vmatprep.subr.mxu0 0.0
    %1378 = vmatpush2.msra.mxu0 0.0
    %1379 = vmatprep.subr.mxu0 0.0
    %1380 = vmatpush2.msra.mxu0 0.0
    %1381 = vmatprep.subr.mxu0 0.0
    %1382 = vmatpush2.msra.mxu0 0.0
    %1383 = vmatprep.subr.mxu0 0.0
    %1384 = vmatpush2.msra.mxu0 0.0
    %1385 = vmatprep.subr.mxu0 0.0
    %1386 = vmatpush2.msra.mxu0 0.0
    %1387 = vmatprep.subr.mxu0 0.0
    %1388 = vmatpush2.msra.mxu0 0.0
    %1389 = vmatprep.subr.mxu0 0.0
    %1390 = vmatpush2.msra.mxu0 0.0
    %1391 = vmatprep.subr.mxu0 0.0
    %1392 = vmatpush2.msra.mxu0 0.0
    %1393 = vmatprep.subr.mxu0 0.0
    %1394 = vmatpush2.msra.mxu0 0.0
    %1395 = vmatprep.subr.mxu0 0.0
    %1396 = vmatpush2.msra.mxu0 0.0
    %1397 = vmatprep.subr.mxu0 0.0
    %1398 = vmatpush2.msra.mxu0 0.0
    %1399 = vmatprep.subr.mxu0 0.0
    %1400 = vmatpush2.msra.mxu0 0.0
    %1401 = vmatprep.mubr.f32.mxu0 0.0
    %1402 = vmatmul.mubr.f32.gmra.mxu0 %v1335
    %v1403 = vpop.f32.mrf.mxu0
    %v1404 = vadd.f32 0.0, %v1403
    %v1405 = vpop.f32.mrf.mxu0
    %1406 = vdwg.mxu0
    %v1408 = vsel %vm65, %v1404, 0
    %1410 = vmatprep.subr.mxu0 0.0
    %1411 = vmatpush1.msra.mxu0 0.0
    %1412 = vmatprep.subr.mxu0 0.0
    %1413 = vmatpush1.msra.mxu0 0.0
    %1414 = vmatprep.subr.mxu0 0.0
    %1415 = vmatpush1.msra.mxu0 0.0
    %1416 = vmatprep.subr.mxu0 0.0
    %1417 = vmatpush1.msra.mxu0 0.0
    %1418 = vmatprep.subr.mxu0 0.0
    %1419 = vmatpush1.msra.mxu0 0.0
    %1420 = vmatprep.subr.mxu0 0.0
    %1421 = vmatpush1.msra.mxu0 0.0
    %1422 = vmatprep.subr.mxu0 0.0
    %1423 = vmatpush1.msra.mxu0 0.0
    %1424 = vmatprep.subr.mxu0 0.0
    %1425 = vmatpush1.msra.mxu0 0.0
    %1426 = vmatprep.subr.mxu0 0.0
    %1427 = vmatpush1.msra.mxu0 0.0
    %1428 = vmatprep.subr.mxu0 0.0
    %1429 = vmatpush1.msra.mxu0 0.0
    %1430 = vmatprep.subr.mxu0 0.0
    %1431 = vmatpush1.msra.mxu0 0.0
    %1432 = vmatprep.subr.mxu0 0.0
    %1433 = vmatpush1.msra.mxu0 0.0
    %1434 = vmatprep.subr.mxu0 0.0
    %1435 = vmatpush1.msra.mxu0 %v47
    %1436 = vmatprep.subr.mxu0 0.0
    %1437 = vmatpush1.msra.mxu0 %v46
    %1438 = vmatprep.subr.mxu0 0.0
    %1439 = vmatpush1.msra.mxu0 %v45
    %1440 = vmatprep.subr.mxu0 0.0
    %1441 = vmatpush1.msra.mxu0 %v44
    %1442 = vmatprep.subr.mxu0 0.0
    %1443 = vmatpush2.msra.mxu0 0.0
    %1444 = vmatprep.subr.mxu0 0.0
    %1445 = vmatpush2.msra.mxu0 0.0
    %1446 = vmatprep.subr.mxu0 0.0
    %1447 = vmatpush2.msra.mxu0 0.0
    %1448 = vmatprep.subr.mxu0 0.0
    %1449 = vmatpush2.msra.mxu0 0.0
    %1450 = vmatprep.subr.mxu0 0.0
    %1451 = vmatpush2.msra.mxu0 0.0
    %1452 = vmatprep.subr.mxu0 0.0
    %1453 = vmatpush2.msra.mxu0 0.0
    %1454 = vmatprep.subr.mxu0 0.0
    %1455 = vmatpush2.msra.mxu0 0.0
    %1456 = vmatprep.subr.mxu0 0.0
    %1457 = vmatpush2.msra.mxu0 0.0
    %1458 = vmatprep.subr.mxu0 0.0
    %1459 = vmatpush2.msra.mxu0 0.0
    %1460 = vmatprep.subr.mxu0 0.0
    %1461 = vmatpush2.msra.mxu0 0.0
    %1462 = vmatprep.subr.mxu0 0.0
    %1463 = vmatpush2.msra.mxu0 0.0
    %1464 = vmatprep.subr.mxu0 0.0
    %1465 = vmatpush2.msra.mxu0 0.0
    %1466 = vmatprep.subr.mxu0 0.0
    %1467 = vmatpush2.msra.mxu0 0.0
    %1468 = vmatprep.subr.mxu0 0.0
    %1469 = vmatpush2.msra.mxu0 0.0
    %1470 = vmatprep.subr.mxu0 0.0
    %1471 = vmatpush2.msra.mxu0 0.0
    %1472 = vmatprep.subr.mxu0 0.0
    %1473 = vmatpush2.msra.mxu0 0.0
    %1474 = vmatprep.mubr.f32.mxu0 0.0
    %1475 = vmatmul.mubr.f32.gmra.mxu0 %v1408
    %v1476 = vpop.f32.mrf.mxu0
    %v1477 = vadd.f32 0.0, %v1476
    %v1478 = vpop.f32.mrf.mxu0
    %1479 = vdwg.mxu0
    %1480 = vmatprep.subr.mxu0 0.0
    %1481 = vmatpush1.msra.mxu0 0.0
    %1482 = vmatprep.subr.mxu0 0.0
    %1483 = vmatpush1.msra.mxu0 0.0
    %1484 = vmatprep.subr.mxu0 0.0
    %1485 = vmatpush1.msra.mxu0 0.0
    %1486 = vmatprep.subr.mxu0 0.0
    %1487 = vmatpush1.msra.mxu0 0.0
    %1488 = vmatprep.subr.mxu0 0.0
    %1489 = vmatpush1.msra.mxu0 0.0
    %1490 = vmatprep.subr.mxu0 0.0
    %1491 = vmatpush1.msra.mxu0 0.0
    %1492 = vmatprep.subr.mxu0 0.0
    %1493 = vmatpush1.msra.mxu0 0.0
    %1494 = vmatprep.subr.mxu0 0.0
    %1495 = vmatpush1.msra.mxu0 0.0
    %1496 = vmatprep.subr.mxu0 0.0
    %1497 = vmatpush1.msra.mxu0 0.0
    %1498 = vmatprep.subr.mxu0 0.0
    %1499 = vmatpush1.msra.mxu0 0.0
    %1500 = vmatprep.subr.mxu0 0.0
    %1501 = vmatpush1.msra.mxu0 0.0
    %1502 = vmatprep.subr.mxu0 0.0
    %1503 = vmatpush1.msra.mxu0 0.0
    %1504 = vmatprep.subr.mxu0 0.0
    %1505 = vmatpush1.msra.mxu0 %v43
    %1506 = vmatprep.subr.mxu0 0.0
    %1507 = vmatpush1.msra.mxu0 %v42
    %1508 = vmatprep.subr.mxu0 0.0
    %1509 = vmatpush1.msra.mxu0 %v41
    %1510 = vmatprep.subr.mxu0 0.0
    %1511 = vmatpush1.msra.mxu0 %v40
    %1512 = vmatprep.subr.mxu0 0.0
    %1513 = vmatpush2.msra.mxu0 0.0
    %1514 = vmatprep.subr.mxu0 0.0
    %1515 = vmatpush2.msra.mxu0 0.0
    %1516 = vmatprep.subr.mxu0 0.0
    %1517 = vmatpush2.msra.mxu0 0.0
    %1518 = vmatprep.subr.mxu0 0.0
    %1519 = vmatpush2.msra.mxu0 0.0
    %1520 = vmatprep.subr.mxu0 0.0
    %1521 = vmatpush2.msra.mxu0 0.0
    %1522 = vmatprep.subr.mxu0 0.0
    %1523 = vmatpush2.msra.mxu0 0.0
    %1524 = vmatprep.subr.mxu0 0.0
    %1525 = vmatpush2.msra.mxu0 0.0
    %1526 = vmatprep.subr.mxu0 0.0
    %1527 = vmatpush2.msra.mxu0 0.0
    %1528 = vmatprep.subr.mxu0 0.0
    %1529 = vmatpush2.msra.mxu0 0.0
    %1530 = vmatprep.subr.mxu0 0.0
    %1531 = vmatpush2.msra.mxu0 0.0
    %1532 = vmatprep.subr.mxu0 0.0
    %1533 = vmatpush2.msra.mxu0 0.0
    %1534 = vmatprep.subr.mxu0 0.0
    %1535 = vmatpush2.msra.mxu0 0.0
    %1536 = vmatprep.subr.mxu0 0.0
    %1537 = vmatpush2.msra.mxu0 0.0
    %1538 = vmatprep.subr.mxu0 0.0
    %1539 = vmatpush2.msra.mxu0 0.0
    %1540 = vmatprep.subr.mxu0 0.0
    %1541 = vmatpush2.msra.mxu0 0.0
    %1542 = vmatprep.subr.mxu0 0.0
    %1543 = vmatpush2.msra.mxu0 0.0
    %1544 = vmatprep.mubr.f32.mxu0 0.0
    %1545 = vmatmul.mubr.f32.gmra.mxu0 %v1251
    %v1546 = vpop.f32.mrf.mxu0
    %v1547 = vadd.f32 %v1477, %v1546
    %v1548 = vpop.f32.mrf.mxu0
    %1549 = vdwg.mxu0
    %v1550 = vadd.f32 %v1547, %v57
    %v1551 = vtanh.pop %v1550
    %v1553 = vsel %vm65, %v1551, 0
    %1555 = vmatprep.subr.mxu0 0.0
    %1556 = vmatpush1.msra.mxu0 0.0
    %1557 = vmatprep.subr.mxu0 0.0
    %1558 = vmatpush1.msra.mxu0 0.0
    %1559 = vmatprep.subr.mxu0 0.0
    %1560 = vmatpush1.msra.mxu0 0.0
    %1561 = vmatprep.subr.mxu0 0.0
    %1562 = vmatpush1.msra.mxu0 0.0
    %1563 = vmatprep.subr.mxu0 0.0
    %1564 = vmatpush1.msra.mxu0 0.0
    %1565 = vmatprep.subr.mxu0 0.0
    %1566 = vmatpush1.msra.mxu0 0.0
    %1567 = vmatprep.subr.mxu0 0.0
    %1568 = vmatpush1.msra.mxu0 0.0
    %1569 = vmatprep.subr.mxu0 0.0
    %1570 = vmatpush1.msra.mxu0 0.0
    %1571 = vmatprep.subr.mxu0 0.0
    %1572 = vmatpush1.msra.mxu0 0.0
    %1573 = vmatprep.subr.mxu0 0.0
    %1574 = vmatpush1.msra.mxu0 0.0
    %1575 = vmatprep.subr.mxu0 0.0
    %1576 = vmatpush1.msra.mxu0 0.0
    %1577 = vmatprep.subr.mxu0 0.0
    %1578 = vmatpush1.msra.mxu0 0.0
    %1579 = vmatprep.subr.mxu0 0.0
    %1580 = vmatpush1.msra.mxu0 %v51
    %1581 = vmatprep.subr.mxu0 0.0
    %1582 = vmatpush1.msra.mxu0 %v50
    %1583 = vmatprep.subr.mxu0 0.0
    %1584 = vmatpush1.msra.mxu0 %v49
    %1585 = vmatprep.subr.mxu0 0.0
    %1586 = vmatpush1.msra.mxu0 %v48
    %1587 = vmatprep.subr.mxu0 0.0
    %1588 = vmatpush2.msra.mxu0 0.0
    %1589 = vmatprep.subr.mxu0 0.0
    %1590 = vmatpush2.msra.mxu0 0.0
    %1591 = vmatprep.subr.mxu0 0.0
    %1592 = vmatpush2.msra.mxu0 0.0
    %1593 = vmatprep.subr.mxu0 0.0
    %1594 = vmatpush2.msra.mxu0 0.0
    %1595 = vmatprep.subr.mxu0 0.0
    %1596 = vmatpush2.msra.mxu0 0.0
    %1597 = vmatprep.subr.mxu0 0.0
    %1598 = vmatpush2.msra.mxu0 0.0
    %1599 = vmatprep.subr.mxu0 0.0
    %1600 = vmatpush2.msra.mxu0 0.0
    %1601 = vmatprep.subr.mxu0 0.0
    %1602 = vmatpush2.msra.mxu0 0.0
    %1603 = vmatprep.subr.mxu0 0.0
    %1604 = vmatpush2.msra.mxu0 0.0
    %1605 = vmatprep.subr.mxu0 0.0
    %1606 = vmatpush2.msra.mxu0 0.0
    %1607 = vmatprep.subr.mxu0 0.0
    %1608 = vmatpush2.msra.mxu0 0.0
    %1609 = vmatprep.subr.mxu0 0.0
    %1610 = vmatpush2.msra.mxu0 0.0
    %1611 = vmatprep.subr.mxu0 0.0
    %1612 = vmatpush2.msra.mxu0 0.0
    %1613 = vmatprep.subr.mxu0 0.0
    %1614 = vmatpush2.msra.mxu0 0.0
    %1615 = vmatprep.subr.mxu0 0.0
    %1616 = vmatpush2.msra.mxu0 0.0
    %1617 = vmatprep.subr.mxu0 0.0
    %1618 = vmatpush2.msra.mxu0 0.0
    %1619 = vmatprep.mubr.f32.mxu0 0.0
    %1620 = vmatmul.mubr.f32.gmra.mxu0 %v1553
    %v1621 = vpop.f32.mrf.mxu0
    %v1622 = vadd.f32 %v58, %v1621
    %v1623 = vpop.f32.mrf.mxu0
    %1624 = vdwg.mxu0
    %v1625 = vrot.slane %v60, 2
    %v1627 = vadd.f32 %v1622, %v1625
    %v1628 = vsel %vm620, %v1627, -inf
    %1629 = vmax.xlane.f32.xlu0 %v1628
    %v1630 = vpop.xlane.xlu0 %1629
    %v1631 = vsub.f32 %v1627, %v1630
    %v1632 = vmul.f32 %v1631, 1.442695
    %v1633 = vpow.pop %v1632
    %v1634 = vsel %vm620, %v1633, 0.0
    %1635 = vadd.xlane.f32.xlu0 %v1634
    %v1636 = vpop.xlane.xlu0 %1635
    %v1637 = vlog2.pop %v1636
    %v1638 = vmul.f32 %v1637, 0.6931472
    %v1639 = vadd.f32 %v1630, %v1638
    %v1640 = vstv %s1145
    %vm1641 = vcmp.eq.s32.totalorder %v140, %v1640
    %v1642 = vsel %vm1641, %v1622, 0.0
    %v1643 = vsel %vm620, %v1642, 0.0
    %1644 = vadd.xlane.f32.xlu0 %v1643
    %v1645 = vpop.xlane.xlu0 %1644
    %v1646 = vsub.f32 %v1645, %v1639
    %v1647 = vadd.f32 %v1144, %v1646
    %s1648 = sld [smem:[#allocation2 + $0x3]]
    %1649 = vmatprep.subr.mxu0 0.0
    %1650 = vmatpush1.msra.mxu0 0.0
    %1651 = vmatprep.subr.mxu0 0.0
    %1652 = vmatpush1.msra.mxu0 0.0
    %1653 = vmatprep.subr.mxu0 0.0
    %1654 = vmatpush1.msra.mxu0 0.0
    %1655 = vmatprep.subr.mxu0 0.0
    %1656 = vmatpush1.msra.mxu0 0.0
    %1657 = vmatprep.subr.mxu0 0.0
    %1658 = vmatpush1.msra.mxu0 0.0
    %1659 = vmatprep.subr.mxu0 0.0
    %1660 = vmatpush1.msra.mxu0 0.0
    %1661 = vmatprep.subr.mxu0 0.0
    %1662 = vmatpush1.msra.mxu0 0.0
    %1663 = vmatprep.subr.mxu0 0.0
    %1664 = vmatpush1.msra.mxu0 0.0
    %1665 = vmatprep.subr.mxu0 0.0
    %1666 = vmatpush1.msra.mxu0 0.0
    %1667 = vmatprep.subr.mxu0 0.0
    %1668 = vmatpush1.msra.mxu0 0.0
    %1669 = vmatprep.subr.mxu0 0.0
    %1670 = vmatpush1.msra.mxu0 0.0
    %1671 = vmatprep.subr.mxu0 0.0
    %1672 = vmatpush1.msra.mxu0 0.0
    %1673 = vmatprep.subr.mxu0 0.0
    %1674 = vmatpush1.msra.mxu0 %v38
    %1675 = vmatprep.subr.mxu0 0.0
    %1676 = vmatpush1.msra.mxu0 %v37
    %1677 = vmatprep.subr.mxu0 0.0
    %1678 = vmatpush1.msra.mxu0 %v36
    %1679 = vmatprep.subr.mxu0 0.0
    %1680 = vmatpush1.msra.mxu0 %v35
    %1681 = vmatprep.subr.mxu0 0.0
    %1682 = vmatpush2.msra.mxu0 0.0
    %1683 = vmatprep.subr.mxu0 0.0
    %1684 = vmatpush2.msra.mxu0 0.0
    %1685 = vmatprep.subr.mxu0 0.0
    %1686 = vmatpush2.msra.mxu0 0.0
    %1687 = vmatprep.subr.mxu0 0.0
    %1688 = vmatpush2.msra.mxu0 0.0
    %1689 = vmatprep.subr.mxu0 0.0
    %1690 = vmatpush2.msra.mxu0 0.0
    %1691 = vmatprep.subr.mxu0 0.0
    %1692 = vmatpush2.msra.mxu0 0.0
    %1693 = vmatprep.subr.mxu0 0.0
    %1694 = vmatpush2.msra.mxu0 0.0
    %1695 = vmatprep.subr.mxu0 0.0
    %1696 = vmatpush2.msra.mxu0 0.0
    %1697 = vmatprep.subr.mxu0 0.0
    %1698 = vmatpush2.msra.mxu0 0.0
    %1699 = vmatprep.subr.mxu0 0.0
    %1700 = vmatpush2.msra.mxu0 0.0
    %1701 = vmatprep.subr.mxu0 0.0
    %1702 = vmatpush2.msra.mxu0 0.0
    %1703 = vmatprep.subr.mxu0 0.0
    %1704 = vmatpush2.msra.mxu0 0.0
    %1705 = vmatprep.subr.mxu0 0.0
    %1706 = vmatpush2.msra.mxu0 0.0
    %1707 = vmatprep.subr.mxu0 0.0
    %1708 = vmatpush2.msra.mxu0 0.0
    %1709 = vmatprep.subr.mxu0 0.0
    %1710 = vmatpush2.msra.mxu0 0.0
    %1711 = vmatprep.subr.mxu0 0.0
    %1712 = vmatpush2.msra.mxu0 0.0
    %1713 = vmatprep.mubr.f32.mxu0 0.0
    %1714 = vmatmul.mubr.f32.gmra.mxu0 %v1251
    %v1715 = vpop.f32.mrf.mxu0
    %v1716 = vadd.f32 0.0, %v1715
    %v1717 = vpop.f32.mrf.mxu0
    %1718 = vdwg.mxu0
    %v1720 = vrot.slane %v1716, 5
    %v1722 = vadd.f32 %v136, %v1720
    %v1723 = vxor.u32 %v1722, 2147483648
    %v1724 = vmul.f32 %v1723, 1.442695
    %v1725 = vpow.pop %v1724
    %v1726 = vadd.f32 %v1725, 1.0
    %v1727 = vrcp.pop %v1726
    %v1728 = vmul.f32 1.0, %v1727
    %v1729 = vtanh.pop %v1722
    %v1731 = vrot.slane %v1240, 7
    %v1733 = vmul.f32 %v1728, %v1731
    %1735 = vrot.lane.b32.xlu0 %v1729, 32
    %v1736 = vpop.permute.xlu0 %1735
    %v1738 = vmul.f32 %v1728, %v1736
    %1740 = vrot.lane.b32.xlu0 %v1738, 32
    %v1741 = vpop.permute.xlu0 %1740
    %v1743 = vadd.f32 %v1733, %v1741
    %v1744 = vtanh.pop %v1743
    %1746 = vrot.lane.b32.xlu0 %v1744, 32
    %v1747 = vpop.permute.xlu0 %1746
    %v1749 = vmul.f32 %v1728, %v1747
    %v1751 = vrot.slane %v1749, 3
    %1752 = vrot.lane.b32.xlu0 %v1751, 64
    %v1753 = vpop.permute.xlu0 %1752
    %v1754 = vsel %vm65, %v1753, 0
    %1756 = vmatprep.subr.mxu0 0.0
    %1757 = vmatpush1.msra.mxu0 0.0
    %1758 = vmatprep.subr.mxu0 0.0
    %1759 = vmatpush1.msra.mxu0 0.0
    %1760 = vmatprep.subr.mxu0 0.0
    %1761 = vmatpush1.msra.mxu0 0.0
    %1762 = vmatprep.subr.mxu0 0.0
    %1763 = vmatpush1.msra.mxu0 0.0
    %1764 = vmatprep.subr.mxu0 0.0
    %1765 = vmatpush1.msra.mxu0 0.0
    %1766 = vmatprep.subr.mxu0 0.0
    %1767 = vmatpush1.msra.mxu0 0.0
    %1768 = vmatprep.subr.mxu0 0.0
    %1769 = vmatpush1.msra.mxu0 0.0
    %1770 = vmatprep.subr.mxu0 0.0
    %1771 = vmatpush1.msra.mxu0 0.0
    %1772 = vmatprep.subr.mxu0 0.0
    %1773 = vmatpush1.msra.mxu0 0.0
    %1774 = vmatprep.subr.mxu0 0.0
    %1775 = vmatpush1.msra.mxu0 0.0
    %1776 = vmatprep.subr.mxu0 0.0
    %1777 = vmatpush1.msra.mxu0 0.0
    %1778 = vmatprep.subr.mxu0 0.0
    %1779 = vmatpush1.msra.mxu0 0.0
    %1780 = vmatprep.subr.mxu0 0.0
    %1781 = vmatpush1.msra.mxu0 %v56
    %1782 = vmatprep.subr.mxu0 0.0
    %1783 = vmatpush1.msra.mxu0 %v55
    %1784 = vmatprep.subr.mxu0 0.0
    %1785 = vmatpush1.msra.mxu0 %v54
    %1786 = vmatprep.subr.mxu0 0.0
    %1787 = vmatpush1.msra.mxu0 %v53
    %1788 = vmatprep.subr.mxu0 0.0
    %1789 = vmatpush2.msra.mxu0 0.0
    %1790 = vmatprep.subr.mxu0 0.0
    %1791 = vmatpush2.msra.mxu0 0.0
    %1792 = vmatprep.subr.mxu0 0.0
    %1793 = vmatpush2.msra.mxu0 0.0
    %1794 = vmatprep.subr.mxu0 0.0
    %1795 = vmatpush2.msra.mxu0 0.0
    %1796 = vmatprep.subr.mxu0 0.0
    %1797 = vmatpush2.msra.mxu0 0.0
    %1798 = vmatprep.subr.mxu0 0.0
    %1799 = vmatpush2.msra.mxu0 0.0
    %1800 = vmatprep.subr.mxu0 0.0
    %1801 = vmatpush2.msra.mxu0 0.0
    %1802 = vmatprep.subr.mxu0 0.0
    %1803 = vmatpush2.msra.mxu0 0.0
    %1804 = vmatprep.subr.mxu0 0.0
    %1805 = vmatpush2.msra.mxu0 0.0
    %1806 = vmatprep.subr.mxu0 0.0
    %1807 = vmatpush2.msra.mxu0 0.0
    %1808 = vmatprep.subr.mxu0 0.0
    %1809 = vmatpush2.msra.mxu0 0.0
    %1810 = vmatprep.subr.mxu0 0.0
    %1811 = vmatpush2.msra.mxu0 0.0
    %1812 = vmatprep.subr.mxu0 0.0
    %1813 = vmatpush2.msra.mxu0 0.0
    %1814 = vmatprep.subr.mxu0 0.0
    %1815 = vmatpush2.msra.mxu0 0.0
    %1816 = vmatprep.subr.mxu0 0.0
    %1817 = vmatpush2.msra.mxu0 0.0
    %1818 = vmatprep.subr.mxu0 0.0
    %1819 = vmatpush2.msra.mxu0 0.0
    %1820 = vmatprep.mubr.f32.mxu0 0.0
    %1821 = vmatmul.mubr.f32.gmra.mxu0 %v1754
    %v1822 = vpop.f32.mrf.mxu0
    %v1823 = vadd.f32 0.0, %v1822
    %v1824 = vpop.f32.mrf.mxu0
    %1825 = vdwg.mxu0
    %v1826 = vsel %vm315, %v1823, -inf
    %1827 = vmax.xlane.f32.xlu0 %v1826
    %v1828 = vpop.xlane.xlu0 %1827
    %v1829 = vsub.f32 %v1823, %v1828
    %v1830 = vmul.f32 %v1829, 1.442695
    %v1831 = vpow.pop %v1830
    %v1832 = vsel %vm315, %v1831, 0.0
    %1833 = vadd.xlane.f32.xlu0 %v1832
    %v1834 = vpop.xlane.xlu0 %1833
    %v1835 = vrcp.pop %v1834
    %v1836 = vmul.f32 %v1831, %v1835
    %v1838 = vsel %vm327, %v1836, 0
    %1840 = vmatprep.subr.mxu0 0.0
    %1841 = vmatpush1.msra.mxu0 0.0
    %1842 = vmatprep.subr.mxu0 0.0
    %1843 = vmatpush1.msra.mxu0 0.0
    %1844 = vmatprep.subr.mxu0 0.0
    %1845 = vmatpush1.msra.mxu0 0.0
    %1846 = vmatprep.subr.mxu0 0.0
    %1847 = vmatpush1.msra.mxu0 0.0
    %1848 = vmatprep.subr.mxu0 0.0
    %1849 = vmatpush1.msra.mxu0 0.0
    %1850 = vmatprep.subr.mxu0 0.0
    %1851 = vmatpush1.msra.mxu0 0.0
    %1852 = vmatprep.subr.mxu0 0.0
    %1853 = vmatpush1.msra.mxu0 0.0
    %1854 = vmatprep.subr.mxu0 0.0
    %1855 = vmatpush1.msra.mxu0 0.0
    %1856 = vmatprep.subr.mxu0 0.0
    %1857 = vmatpush1.msra.mxu0 0.0
    %1858 = vmatprep.subr.mxu0 0.0
    %1859 = vmatpush1.msra.mxu0 0.0
    %1860 = vmatprep.subr.mxu0 0.0
    %1861 = vmatpush1.msra.mxu0 0.0
    %1862 = vmatprep.subr.mxu0 0.0
    %1863 = vmatpush1.msra.mxu0 0.0
    %1864 = vmatprep.subr.mxu0 0.0
    %1865 = vmatpush1.msra.mxu0 0.0
    %1866 = vmatprep.subr.mxu0 0.0
    %1867 = vmatpush1.msra.mxu0 0.0
    %1868 = vmatprep.subr.mxu0 0.0
    %1869 = vmatpush1.msra.mxu0 0.0
    %1870 = vmatprep.subr.mxu0 0.0
    %1871 = vmatpush1.msra.mxu0 %v52
    %1872 = vmatprep.subr.mxu0 0.0
    %1873 = vmatpush2.msra.mxu0 0.0
    %1874 = vmatprep.subr.mxu0 0.0
    %1875 = vmatpush2.msra.mxu0 0.0
    %1876 = vmatprep.subr.mxu0 0.0
    %1877 = vmatpush2.msra.mxu0 0.0
    %1878 = vmatprep.subr.mxu0 0.0
    %1879 = vmatpush2.msra.mxu0 0.0
    %1880 = vmatprep.subr.mxu0 0.0
    %1881 = vmatpush2.msra.mxu0 0.0
    %1882 = vmatprep.subr.mxu0 0.0
    %1883 = vmatpush2.msra.mxu0 0.0
    %1884 = vmatprep.subr.mxu0 0.0
    %1885 = vmatpush2.msra.mxu0 0.0
    %1886 = vmatprep.subr.mxu0 0.0
    %1887 = vmatpush2.msra.mxu0 0.0
    %1888 = vmatprep.subr.mxu0 0.0
    %1889 = vmatpush2.msra.mxu0 0.0
    %1890 = vmatprep.subr.mxu0 0.0
    %1891 = vmatpush2.msra.mxu0 0.0
    %1892 = vmatprep.subr.mxu0 0.0
    %1893 = vmatpush2.msra.mxu0 0.0
    %1894 = vmatprep.subr.mxu0 0.0
    %1895 = vmatpush2.msra.mxu0 0.0
    %1896 = vmatprep.subr.mxu0 0.0
    %1897 = vmatpush2.msra.mxu0 0.0
    %1898 = vmatprep.subr.mxu0 0.0
    %1899 = vmatpush2.msra.mxu0 0.0
    %1900 = vmatprep.subr.mxu0 0.0
    %1901 = vmatpush2.msra.mxu0 0.0
    %1902 = vmatprep.subr.mxu0 0.0
    %1903 = vmatpush2.msra.mxu0 0.0
    %1904 = vmatprep.mubr.f32.mxu0 0.0
    %1905 = vmatmul.mubr.f32.gmra.mxu0 %v1838
    %v1906 = vpop.f32.mrf.mxu0
    %v1907 = vadd.f32 0.0, %v1906
    %v1908 = vpop.f32.mrf.mxu0
    %1909 = vdwg.mxu0
    %v1911 = vsel %vm65, %v1907, 0
    %1913 = vmatprep.subr.mxu0 0.0
    %1914 = vmatpush1.msra.mxu0 0.0
    %1915 = vmatprep.subr.mxu0 0.0
    %1916 = vmatpush1.msra.mxu0 0.0
    %1917 = vmatprep.subr.mxu0 0.0
    %1918 = vmatpush1.msra.mxu0 0.0
    %1919 = vmatprep.subr.mxu0 0.0
    %1920 = vmatpush1.msra.mxu0 0.0
    %1921 = vmatprep.subr.mxu0 0.0
    %1922 = vmatpush1.msra.mxu0 0.0
    %1923 = vmatprep.subr.mxu0 0.0
    %1924 = vmatpush1.msra.mxu0 0.0
    %1925 = vmatprep.subr.mxu0 0.0
    %1926 = vmatpush1.msra.mxu0 0.0
    %1927 = vmatprep.subr.mxu0 0.0
    %1928 = vmatpush1.msra.mxu0 0.0
    %1929 = vmatprep.subr.mxu0 0.0
    %1930 = vmatpush1.msra.mxu0 0.0
    %1931 = vmatprep.subr.mxu0 0.0
    %1932 = vmatpush1.msra.mxu0 0.0
    %1933 = vmatprep.subr.mxu0 0.0
    %1934 = vmatpush1.msra.mxu0 0.0
    %1935 = vmatprep.subr.mxu0 0.0
    %1936 = vmatpush1.msra.mxu0 0.0
    %1937 = vmatprep.subr.mxu0 0.0
    %1938 = vmatpush1.msra.mxu0 %v47
    %1939 = vmatprep.subr.mxu0 0.0
    %1940 = vmatpush1.msra.mxu0 %v46
    %1941 = vmatprep.subr.mxu0 0.0
    %1942 = vmatpush1.msra.mxu0 %v45
    %1943 = vmatprep.subr.mxu0 0.0
    %1944 = vmatpush1.msra.mxu0 %v44
    %1945 = vmatprep.subr.mxu0 0.0
    %1946 = vmatpush2.msra.mxu0 0.0
    %1947 = vmatprep.subr.mxu0 0.0
    %1948 = vmatpush2.msra.mxu0 0.0
    %1949 = vmatprep.subr.mxu0 0.0
    %1950 = vmatpush2.msra.mxu0 0.0
    %1951 = vmatprep.subr.mxu0 0.0
    %1952 = vmatpush2.msra.mxu0 0.0
    %1953 = vmatprep.subr.mxu0 0.0
    %1954 = vmatpush2.msra.mxu0 0.0
    %1955 = vmatprep.subr.mxu0 0.0
    %1956 = vmatpush2.msra.mxu0 0.0
    %1957 = vmatprep.subr.mxu0 0.0
    %1958 = vmatpush2.msra.mxu0 0.0
    %1959 = vmatprep.subr.mxu0 0.0
    %1960 = vmatpush2.msra.mxu0 0.0
    %1961 = vmatprep.subr.mxu0 0.0
    %1962 = vmatpush2.msra.mxu0 0.0
    %1963 = vmatprep.subr.mxu0 0.0
    %1964 = vmatpush2.msra.mxu0 0.0
    %1965 = vmatprep.subr.mxu0 0.0
    %1966 = vmatpush2.msra.mxu0 0.0
    %1967 = vmatprep.subr.mxu0 0.0
    %1968 = vmatpush2.msra.mxu0 0.0
    %1969 = vmatprep.subr.mxu0 0.0
    %1970 = vmatpush2.msra.mxu0 0.0
    %1971 = vmatprep.subr.mxu0 0.0
    %1972 = vmatpush2.msra.mxu0 0.0
    %1973 = vmatprep.subr.mxu0 0.0
    %1974 = vmatpush2.msra.mxu0 0.0
    %1975 = vmatprep.subr.mxu0 0.0
    %1976 = vmatpush2.msra.mxu0 0.0
    %1977 = vmatprep.mubr.f32.mxu0 0.0
    %1978 = vmatmul.mubr.f32.gmra.mxu0 %v1911
    %v1979 = vpop.f32.mrf.mxu0
    %v1980 = vadd.f32 0.0, %v1979
    %v1981 = vpop.f32.mrf.mxu0
    %1982 = vdwg.mxu0
    %1983 = vmatprep.subr.mxu0 0.0
    %1984 = vmatpush1.msra.mxu0 0.0
    %1985 = vmatprep.subr.mxu0 0.0
    %1986 = vmatpush1.msra.mxu0 0.0
    %1987 = vmatprep.subr.mxu0 0.0
    %1988 = vmatpush1.msra.mxu0 0.0
    %1989 = vmatprep.subr.mxu0 0.0
    %1990 = vmatpush1.msra.mxu0 0.0
    %1991 = vmatprep.subr.mxu0 0.0
    %1992 = vmatpush1.msra.mxu0 0.0
    %1993 = vmatprep.subr.mxu0 0.0
    %1994 = vmatpush1.msra.mxu0 0.0
    %1995 = vmatprep.subr.mxu0 0.0
    %1996 = vmatpush1.msra.mxu0 0.0
    %1997 = vmatprep.subr.mxu0 0.0
    %1998 = vmatpush1.msra.mxu0 0.0
    %1999 = vmatprep.subr.mxu0 0.0
    %2000 = vmatpush1.msra.mxu0 0.0
    %2001 = vmatprep.subr.mxu0 0.0
    %2002 = vmatpush1.msra.mxu0 0.0
    %2003 = vmatprep.subr.mxu0 0.0
    %2004 = vmatpush1.msra.mxu0 0.0
    %2005 = vmatprep.subr.mxu0 0.0
    %2006 = vmatpush1.msra.mxu0 0.0
    %2007 = vmatprep.subr.mxu0 0.0
    %2008 = vmatpush1.msra.mxu0 %v43
    %2009 = vmatprep.subr.mxu0 0.0
    %2010 = vmatpush1.msra.mxu0 %v42
    %2011 = vmatprep.subr.mxu0 0.0
    %2012 = vmatpush1.msra.mxu0 %v41
    %2013 = vmatprep.subr.mxu0 0.0
    %2014 = vmatpush1.msra.mxu0 %v40
    %2015 = vmatprep.subr.mxu0 0.0
    %2016 = vmatpush2.msra.mxu0 0.0
    %2017 = vmatprep.subr.mxu0 0.0
    %2018 = vmatpush2.msra.mxu0 0.0
    %2019 = vmatprep.subr.mxu0 0.0
    %2020 = vmatpush2.msra.mxu0 0.0
    %2021 = vmatprep.subr.mxu0 0.0
    %2022 = vmatpush2.msra.mxu0 0.0
    %2023 = vmatprep.subr.mxu0 0.0
    %2024 = vmatpush2.msra.mxu0 0.0
    %2025 = vmatprep.subr.mxu0 0.0
    %2026 = vmatpush2.msra.mxu0 0.0
    %2027 = vmatprep.subr.mxu0 0.0
    %2028 = vmatpush2.msra.mxu0 0.0
    %2029 = vmatprep.subr.mxu0 0.0
    %2030 = vmatpush2.msra.mxu0 0.0
    %2031 = vmatprep.subr.mxu0 0.0
    %2032 = vmatpush2.msra.mxu0 0.0
    %2033 = vmatprep.subr.mxu0 0.0
    %2034 = vmatpush2.msra.mxu0 0.0
    %2035 = vmatprep.subr.mxu0 0.0
    %2036 = vmatpush2.msra.mxu0 0.0
    %2037 = vmatprep.subr.mxu0 0.0
    %2038 = vmatpush2.msra.mxu0 0.0
    %2039 = vmatprep.subr.mxu0 0.0
    %2040 = vmatpush2.msra.mxu0 0.0
    %2041 = vmatprep.subr.mxu0 0.0
    %2042 = vmatpush2.msra.mxu0 0.0
    %2043 = vmatprep.subr.mxu0 0.0
    %2044 = vmatpush2.msra.mxu0 0.0
    %2045 = vmatprep.subr.mxu0 0.0
    %2046 = vmatpush2.msra.mxu0 0.0
    %2047 = vmatprep.mubr.f32.mxu0 0.0
    %2048 = vmatmul.mubr.f32.gmra.mxu0 %v1754
    %v2049 = vpop.f32.mrf.mxu0
    %v2050 = vadd.f32 %v1980, %v2049
    %v2051 = vpop.f32.mrf.mxu0
    %2052 = vdwg.mxu0
    %v2053 = vadd.f32 %v2050, %v57
    %v2054 = vtanh.pop %v2053
    %v2056 = vsel %vm65, %v2054, 0
    %2058 = vmatprep.subr.mxu0 0.0
    %2059 = vmatpush1.msra.mxu0 0.0
    %2060 = vmatprep.subr.mxu0 0.0
    %2061 = vmatpush1.msra.mxu0 0.0
    %2062 = vmatprep.subr.mxu0 0.0
    %2063 = vmatpush1.msra.mxu0 0.0
    %2064 = vmatprep.subr.mxu0 0.0
    %2065 = vmatpush1.msra.mxu0 0.0
    %2066 = vmatprep.subr.mxu0 0.0
    %2067 = vmatpush1.msra.mxu0 0.0
    %2068 = vmatprep.subr.mxu0 0.0
    %2069 = vmatpush1.msra.mxu0 0.0
    %2070 = vmatprep.subr.mxu0 0.0
    %2071 = vmatpush1.msra.mxu0 0.0
    %2072 = vmatprep.subr.mxu0 0.0
    %2073 = vmatpush1.msra.mxu0 0.0
    %2074 = vmatprep.subr.mxu0 0.0
    %2075 = vmatpush1.msra.mxu0 0.0
    %2076 = vmatprep.subr.mxu0 0.0
    %2077 = vmatpush1.msra.mxu0 0.0
    %2078 = vmatprep.subr.mxu0 0.0
    %2079 = vmatpush1.msra.mxu0 0.0
    %2080 = vmatprep.subr.mxu0 0.0
    %2081 = vmatpush1.msra.mxu0 0.0
    %2082 = vmatprep.subr.mxu0 0.0
    %2083 = vmatpush1.msra.mxu0 %v51
    %2084 = vmatprep.subr.mxu0 0.0
    %2085 = vmatpush1.msra.mxu0 %v50
    %2086 = vmatprep.subr.mxu0 0.0
    %2087 = vmatpush1.msra.mxu0 %v49
    %2088 = vmatprep.subr.mxu0 0.0
    %2089 = vmatpush1.msra.mxu0 %v48
    %2090 = vmatprep.subr.mxu0 0.0
    %2091 = vmatpush2.msra.mxu0 0.0
    %2092 = vmatprep.subr.mxu0 0.0
    %2093 = vmatpush2.msra.mxu0 0.0
    %2094 = vmatprep.subr.mxu0 0.0
    %2095 = vmatpush2.msra.mxu0 0.0
    %2096 = vmatprep.subr.mxu0 0.0
    %2097 = vmatpush2.msra.mxu0 0.0
    %2098 = vmatprep.subr.mxu0 0.0
    %2099 = vmatpush2.msra.mxu0 0.0
    %2100 = vmatprep.subr.mxu0 0.0
    %2101 = vmatpush2.msra.mxu0 0.0
    %2102 = vmatprep.subr.mxu0 0.0
    %2103 = vmatpush2.msra.mxu0 0.0
    %2104 = vmatprep.subr.mxu0 0.0
    %2105 = vmatpush2.msra.mxu0 0.0
    %2106 = vmatprep.subr.mxu0 0.0
    %2107 = vmatpush2.msra.mxu0 0.0
    %2108 = vmatprep.subr.mxu0 0.0
    %2109 = vmatpush2.msra.mxu0 0.0
    %2110 = vmatprep.subr.mxu0 0.0
    %2111 = vmatpush2.msra.mxu0 0.0
    %2112 = vmatprep.subr.mxu0 0.0
    %2113 = vmatpush2.msra.mxu0 0.0
    %2114 = vmatprep.subr.mxu0 0.0
    %2115 = vmatpush2.msra.mxu0 0.0
    %2116 = vmatprep.subr.mxu0 0.0
    %2117 = vmatpush2.msra.mxu0 0.0
    %2118 = vmatprep.subr.mxu0 0.0
    %2119 = vmatpush2.msra.mxu0 0.0
    %2120 = vmatprep.subr.mxu0 0.0
    %2121 = vmatpush2.msra.mxu0 0.0
    %2122 = vmatprep.mubr.f32.mxu0 0.0
    %2123 = vmatmul.mubr.f32.gmra.mxu0 %v2056
    %v2124 = vpop.f32.mrf.mxu0
    %v2125 = vadd.f32 %v58, %v2124
    %v2126 = vpop.f32.mrf.mxu0
    %2127 = vdwg.mxu0
    %v2128 = vrot.slane %v60, 3
    %v2130 = vadd.f32 %v2125, %v2128
    %v2131 = vsel %vm620, %v2130, -inf
    %2132 = vmax.xlane.f32.xlu0 %v2131
    %v2133 = vpop.xlane.xlu0 %2132
    %v2134 = vsub.f32 %v2130, %v2133
    %v2135 = vmul.f32 %v2134, 1.442695
    %v2136 = vpow.pop %v2135
    %v2137 = vsel %vm620, %v2136, 0.0
    %2138 = vadd.xlane.f32.xlu0 %v2137
    %v2139 = vpop.xlane.xlu0 %2138
    %v2140 = vlog2.pop %v2139
    %v2141 = vmul.f32 %v2140, 0.6931472
    %v2142 = vadd.f32 %v2133, %v2141
    %v2143 = vstv %s1648
    %vm2144 = vcmp.eq.s32.totalorder %v140, %v2143
    %v2145 = vsel %vm2144, %v2125, 0.0
    %v2146 = vsel %vm620, %v2145, 0.0
    %2147 = vadd.xlane.f32.xlu0 %v2146
    %v2148 = vpop.xlane.xlu0 %2147
    %v2149 = vsub.f32 %v2148, %v2142
    %v2150 = vadd.f32 %v1647, %v2149
    %s2151 = sld [smem:[#allocation2 + $0x4]]
    %2152 = vmatprep.subr.mxu0 0.0
    %2153 = vmatpush1.msra.mxu0 0.0
    %2154 = vmatprep.subr.mxu0 0.0
    %2155 = vmatpush1.msra.mxu0 0.0
    %2156 = vmatprep.subr.mxu0 0.0
    %2157 = vmatpush1.msra.mxu0 0.0
    %2158 = vmatprep.subr.mxu0 0.0
    %2159 = vmatpush1.msra.mxu0 0.0
    %2160 = vmatprep.subr.mxu0 0.0
    %2161 = vmatpush1.msra.mxu0 0.0
    %2162 = vmatprep.subr.mxu0 0.0
    %2163 = vmatpush1.msra.mxu0 0.0
    %2164 = vmatprep.subr.mxu0 0.0
    %2165 = vmatpush1.msra.mxu0 0.0
    %2166 = vmatprep.subr.mxu0 0.0
    %2167 = vmatpush1.msra.mxu0 0.0
    %2168 = vmatprep.subr.mxu0 0.0
    %2169 = vmatpush1.msra.mxu0 0.0
    %2170 = vmatprep.subr.mxu0 0.0
    %2171 = vmatpush1.msra.mxu0 0.0
    %2172 = vmatprep.subr.mxu0 0.0
    %2173 = vmatpush1.msra.mxu0 0.0
    %2174 = vmatprep.subr.mxu0 0.0
    %2175 = vmatpush1.msra.mxu0 0.0
    %2176 = vmatprep.subr.mxu0 0.0
    %2177 = vmatpush1.msra.mxu0 %v38
    %2178 = vmatprep.subr.mxu0 0.0
    %2179 = vmatpush1.msra.mxu0 %v37
    %2180 = vmatprep.subr.mxu0 0.0
    %2181 = vmatpush1.msra.mxu0 %v36
    %2182 = vmatprep.subr.mxu0 0.0
    %2183 = vmatpush1.msra.mxu0 %v35
    %2184 = vmatprep.subr.mxu0 0.0
    %2185 = vmatpush2.msra.mxu0 0.0
    %2186 = vmatprep.subr.mxu0 0.0
    %2187 = vmatpush2.msra.mxu0 0.0
    %2188 = vmatprep.subr.mxu0 0.0
    %2189 = vmatpush2.msra.mxu0 0.0
    %2190 = vmatprep.subr.mxu0 0.0
    %2191 = vmatpush2.msra.mxu0 0.0
    %2192 = vmatprep.subr.mxu0 0.0
    %2193 = vmatpush2.msra.mxu0 0.0
    %2194 = vmatprep.subr.mxu0 0.0
    %2195 = vmatpush2.msra.mxu0 0.0
    %2196 = vmatprep.subr.mxu0 0.0
    %2197 = vmatpush2.msra.mxu0 0.0
    %2198 = vmatprep.subr.mxu0 0.0
    %2199 = vmatpush2.msra.mxu0 0.0
    %2200 = vmatprep.subr.mxu0 0.0
    %2201 = vmatpush2.msra.mxu0 0.0
    %2202 = vmatprep.subr.mxu0 0.0
    %2203 = vmatpush2.msra.mxu0 0.0
    %2204 = vmatprep.subr.mxu0 0.0
    %2205 = vmatpush2.msra.mxu0 0.0
    %2206 = vmatprep.subr.mxu0 0.0
    %2207 = vmatpush2.msra.mxu0 0.0
    %2208 = vmatprep.subr.mxu0 0.0
    %2209 = vmatpush2.msra.mxu0 0.0
    %2210 = vmatprep.subr.mxu0 0.0
    %2211 = vmatpush2.msra.mxu0 0.0
    %2212 = vmatprep.subr.mxu0 0.0
    %2213 = vmatpush2.msra.mxu0 0.0
    %2214 = vmatprep.subr.mxu0 0.0
    %2215 = vmatpush2.msra.mxu0 0.0
    %2216 = vmatprep.mubr.f32.mxu0 0.0
    %2217 = vmatmul.mubr.f32.gmra.mxu0 %v1754
    %v2218 = vpop.f32.mrf.mxu0
    %v2219 = vadd.f32 0.0, %v2218
    %v2220 = vpop.f32.mrf.mxu0
    %2221 = vdwg.mxu0
    %v2223 = vrot.slane %v2219, 4
    %v2225 = vadd.f32 %v136, %v2223
    %v2226 = vxor.u32 %v2225, 2147483648
    %v2227 = vmul.f32 %v2226, 1.442695
    %v2228 = vpow.pop %v2227
    %v2229 = vadd.f32 %v2228, 1.0
    %v2230 = vrcp.pop %v2229
    %v2231 = vmul.f32 1.0, %v2230
    %v2232 = vtanh.pop %v2225
    %v2234 = vrot.slane %v1743, 7
    %v2236 = vmul.f32 %v2231, %v2234
    %2238 = vrot.lane.b32.xlu0 %v2232, 32
    %v2239 = vpop.permute.xlu0 %2238
    %v2241 = vmul.f32 %v2231, %v2239
    %2243 = vrot.lane.b32.xlu0 %v2241, 32
    %v2244 = vpop.permute.xlu0 %2243
    %v2246 = vadd.f32 %v2236, %v2244
    %v2247 = vtanh.pop %v2246
    %2249 = vrot.lane.b32.xlu0 %v2247, 32
    %v2250 = vpop.permute.xlu0 %2249
    %v2252 = vmul.f32 %v2231, %v2250
    %v2254 = vrot.slane %v2252, 4
    %2255 = vrot.lane.b32.xlu0 %v2254, 64
    %v2256 = vpop.permute.xlu0 %2255
    %v2257 = vsel %vm65, %v2256, 0
    %2259 = vmatprep.subr.mxu0 0.0
    %2260 = vmatpush1.msra.mxu0 0.0
    %2261 = vmatprep.subr.mxu0 0.0
    %2262 = vmatpush1.msra.mxu0 0.0
    %2263 = vmatprep.subr.mxu0 0.0
    %2264 = vmatpush1.msra.mxu0 0.0
    %2265 = vmatprep.subr.mxu0 0.0
    %2266 = vmatpush1.msra.mxu0 0.0
    %2267 = vmatprep.subr.mxu0 0.0
    %2268 = vmatpush1.msra.mxu0 0.0
    %2269 = vmatprep.subr.mxu0 0.0
    %2270 = vmatpush1.msra.mxu0 0.0
    %2271 = vmatprep.subr.mxu0 0.0
    %2272 = vmatpush1.msra.mxu0 0.0
    %2273 = vmatprep.subr.mxu0 0.0
    %2274 = vmatpush1.msra.mxu0 0.0
    %2275 = vmatprep.subr.mxu0 0.0
    %2276 = vmatpush1.msra.mxu0 0.0
    %2277 = vmatprep.subr.mxu0 0.0
    %2278 = vmatpush1.msra.mxu0 0.0
    %2279 = vmatprep.subr.mxu0 0.0
    %2280 = vmatpush1.msra.mxu0 0.0
    %2281 = vmatprep.subr.mxu0 0.0
    %2282 = vmatpush1.msra.mxu0 0.0
    %2283 = vmatprep.subr.mxu0 0.0
    %2284 = vmatpush1.msra.mxu0 %v56
    %2285 = vmatprep.subr.mxu0 0.0
    %2286 = vmatpush1.msra.mxu0 %v55
    %2287 = vmatprep.subr.mxu0 0.0
    %2288 = vmatpush1.msra.mxu0 %v54
    %2289 = vmatprep.subr.mxu0 0.0
    %2290 = vmatpush1.msra.mxu0 %v53
    %2291 = vmatprep.subr.mxu0 0.0
    %2292 = vmatpush2.msra.mxu0 0.0
    %2293 = vmatprep.subr.mxu0 0.0
    %2294 = vmatpush2.msra.mxu0 0.0
    %2295 = vmatprep.subr.mxu0 0.0
    %2296 = vmatpush2.msra.mxu0 0.0
    %2297 = vmatprep.subr.mxu0 0.0
    %2298 = vmatpush2.msra.mxu0 0.0
    %2299 = vmatprep.subr.mxu0 0.0
    %2300 = vmatpush2.msra.mxu0 0.0
    %2301 = vmatprep.subr.mxu0 0.0
    %2302 = vmatpush2.msra.mxu0 0.0
    %2303 = vmatprep.subr.mxu0 0.0
    %2304 = vmatpush2.msra.mxu0 0.0
    %2305 = vmatprep.subr.mxu0 0.0
    %2306 = vmatpush2.msra.mxu0 0.0
    %2307 = vmatprep.subr.mxu0 0.0
    %2308 = vmatpush2.msra.mxu0 0.0
    %2309 = vmatprep.subr.mxu0 0.0
    %2310 = vmatpush2.msra.mxu0 0.0
    %2311 = vmatprep.subr.mxu0 0.0
    %2312 = vmatpush2.msra.mxu0 0.0
    %2313 = vmatprep.subr.mxu0 0.0
    %2314 = vmatpush2.msra.mxu0 0.0
    %2315 = vmatprep.subr.mxu0 0.0
    %2316 = vmatpush2.msra.mxu0 0.0
    %2317 = vmatprep.subr.mxu0 0.0
    %2318 = vmatpush2.msra.mxu0 0.0
    %2319 = vmatprep.subr.mxu0 0.0
    %2320 = vmatpush2.msra.mxu0 0.0
    %2321 = vmatprep.subr.mxu0 0.0
    %2322 = vmatpush2.msra.mxu0 0.0
    %2323 = vmatprep.mubr.f32.mxu0 0.0
    %2324 = vmatmul.mubr.f32.gmra.mxu0 %v2257
    %v2325 = vpop.f32.mrf.mxu0
    %v2326 = vadd.f32 0.0, %v2325
    %v2327 = vpop.f32.mrf.mxu0
    %2328 = vdwg.mxu0
    %v2329 = vsel %vm315, %v2326, -inf
    %2330 = vmax.xlane.f32.xlu0 %v2329
    %v2331 = vpop.xlane.xlu0 %2330
    %v2332 = vsub.f32 %v2326, %v2331
    %v2333 = vmul.f32 %v2332, 1.442695
    %v2334 = vpow.pop %v2333
    %v2335 = vsel %vm315, %v2334, 0.0
    %2336 = vadd.xlane.f32.xlu0 %v2335
    %v2337 = vpop.xlane.xlu0 %2336
    %v2338 = vrcp.pop %v2337
    %v2339 = vmul.f32 %v2334, %v2338
    %v2341 = vsel %vm327, %v2339, 0
    %2343 = vmatprep.subr.mxu0 0.0
    %2344 = vmatpush1.msra.mxu0 0.0
    %2345 = vmatprep.subr.mxu0 0.0
    %2346 = vmatpush1.msra.mxu0 0.0
    %2347 = vmatprep.subr.mxu0 0.0
    %2348 = vmatpush1.msra.mxu0 0.0
    %2349 = vmatprep.subr.mxu0 0.0
    %2350 = vmatpush1.msra.mxu0 0.0
    %2351 = vmatprep.subr.mxu0 0.0
    %2352 = vmatpush1.msra.mxu0 0.0
    %2353 = vmatprep.subr.mxu0 0.0
    %2354 = vmatpush1.msra.mxu0 0.0
    %2355 = vmatprep.subr.mxu0 0.0
    %2356 = vmatpush1.msra.mxu0 0.0
    %2357 = vmatprep.subr.mxu0 0.0
    %2358 = vmatpush1.msra.mxu0 0.0
    %2359 = vmatprep.subr.mxu0 0.0
    %2360 = vmatpush1.msra.mxu0 0.0
    %2361 = vmatprep.subr.mxu0 0.0
    %2362 = vmatpush1.msra.mxu0 0.0
    %2363 = vmatprep.subr.mxu0 0.0
    %2364 = vmatpush1.msra.mxu0 0.0
    %2365 = vmatprep.subr.mxu0 0.0
    %2366 = vmatpush1.msra.mxu0 0.0
    %2367 = vmatprep.subr.mxu0 0.0
    %2368 = vmatpush1.msra.mxu0 0.0
    %2369 = vmatprep.subr.mxu0 0.0
    %2370 = vmatpush1.msra.mxu0 0.0
    %2371 = vmatprep.subr.mxu0 0.0
    %2372 = vmatpush1.msra.mxu0 0.0
    %2373 = vmatprep.subr.mxu0 0.0
    %2374 = vmatpush1.msra.mxu0 %v52
    %2375 = vmatprep.subr.mxu0 0.0
    %2376 = vmatpush2.msra.mxu0 0.0
    %2377 = vmatprep.subr.mxu0 0.0
    %2378 = vmatpush2.msra.mxu0 0.0
    %2379 = vmatprep.subr.mxu0 0.0
    %2380 = vmatpush2.msra.mxu0 0.0
    %2381 = vmatprep.subr.mxu0 0.0
    %2382 = vmatpush2.msra.mxu0 0.0
    %2383 = vmatprep.subr.mxu0 0.0
    %2384 = vmatpush2.msra.mxu0 0.0
    %2385 = vmatprep.subr.mxu0 0.0
    %2386 = vmatpush2.msra.mxu0 0.0
    %2387 = vmatprep.subr.mxu0 0.0
    %2388 = vmatpush2.msra.mxu0 0.0
    %2389 = vmatprep.subr.mxu0 0.0
    %2390 = vmatpush2.msra.mxu0 0.0
    %2391 = vmatprep.subr.mxu0 0.0
    %2392 = vmatpush2.msra.mxu0 0.0
    %2393 = vmatprep.subr.mxu0 0.0
    %2394 = vmatpush2.msra.mxu0 0.0
    %2395 = vmatprep.subr.mxu0 0.0
    %2396 = vmatpush2.msra.mxu0 0.0
    %2397 = vmatprep.subr.mxu0 0.0
    %2398 = vmatpush2.msra.mxu0 0.0
    %2399 = vmatprep.subr.mxu0 0.0
    %2400 = vmatpush2.msra.mxu0 0.0
    %2401 = vmatprep.subr.mxu0 0.0
    %2402 = vmatpush2.msra.mxu0 0.0
    %2403 = vmatprep.subr.mxu0 0.0
    %2404 = vmatpush2.msra.mxu0 0.0
    %2405 = vmatprep.subr.mxu0 0.0
    %2406 = vmatpush2.msra.mxu0 0.0
    %2407 = vmatprep.mubr.f32.mxu0 0.0
    %2408 = vmatmul.mubr.f32.gmra.mxu0 %v2341
    %v2409 = vpop.f32.mrf.mxu0
    %v2410 = vadd.f32 0.0, %v2409
    %v2411 = vpop.f32.mrf.mxu0
    %2412 = vdwg.mxu0
    %v2414 = vsel %vm65, %v2410, 0
    %2416 = vmatprep.subr.mxu0 0.0
    %2417 = vmatpush1.msra.mxu0 0.0
    %2418 = vmatprep.subr.mxu0 0.0
    %2419 = vmatpush1.msra.mxu0 0.0
    %2420 = vmatprep.subr.mxu0 0.0
    %2421 = vmatpush1.msra.mxu0 0.0
    %2422 = vmatprep.subr.mxu0 0.0
    %2423 = vmatpush1.msra.mxu0 0.0
    %2424 = vmatprep.subr.mxu0 0.0
    %2425 = vmatpush1.msra.mxu0 0.0
    %2426 = vmatprep.subr.mxu0 0.0
    %2427 = vmatpush1.msra.mxu0 0.0
    %2428 = vmatprep.subr.mxu0 0.0
    %2429 = vmatpush1.msra.mxu0 0.0
    %2430 = vmatprep.subr.mxu0 0.0
    %2431 = vmatpush1.msra.mxu0 0.0
    %2432 = vmatprep.subr.mxu0 0.0
    %2433 = vmatpush1.msra.mxu0 0.0
    %2434 = vmatprep.subr.mxu0 0.0
    %2435 = vmatpush1.msra.mxu0 0.0
    %2436 = vmatprep.subr.mxu0 0.0
    %2437 = vmatpush1.msra.mxu0 0.0
    %2438 = vmatprep.subr.mxu0 0.0
    %2439 = vmatpush1.msra.mxu0 0.0
    %2440 = vmatprep.subr.mxu0 0.0
    %2441 = vmatpush1.msra.mxu0 %v47
    %2442 = vmatprep.subr.mxu0 0.0
    %2443 = vmatpush1.msra.mxu0 %v46
    %2444 = vmatprep.subr.mxu0 0.0
    %2445 = vmatpush1.msra.mxu0 %v45
    %2446 = vmatprep.subr.mxu0 0.0
    %2447 = vmatpush1.msra.mxu0 %v44
    %2448 = vmatprep.subr.mxu0 0.0
    %2449 = vmatpush2.msra.mxu0 0.0
    %2450 = vmatprep.subr.mxu0 0.0
    %2451 = vmatpush2.msra.mxu0 0.0
    %2452 = vmatprep.subr.mxu0 0.0
    %2453 = vmatpush2.msra.mxu0 0.0
    %2454 = vmatprep.subr.mxu0 0.0
    %2455 = vmatpush2.msra.mxu0 0.0
    %2456 = vmatprep.subr.mxu0 0.0
    %2457 = vmatpush2.msra.mxu0 0.0
    %2458 = vmatprep.subr.mxu0 0.0
    %2459 = vmatpush2.msra.mxu0 0.0
    %2460 = vmatprep.subr.mxu0 0.0
    %2461 = vmatpush2.msra.mxu0 0.0
    %2462 = vmatprep.subr.mxu0 0.0
    %2463 = vmatpush2.msra.mxu0 0.0
    %2464 = vmatprep.subr.mxu0 0.0
    %2465 = vmatpush2.msra.mxu0 0.0
    %2466 = vmatprep.subr.mxu0 0.0
    %2467 = vmatpush2.msra.mxu0 0.0
    %2468 = vmatprep.subr.mxu0 0.0
    %2469 = vmatpush2.msra.mxu0 0.0
    %2470 = vmatprep.subr.mxu0 0.0
    %2471 = vmatpush2.msra.mxu0 0.0
    %2472 = vmatprep.subr.mxu0 0.0
    %2473 = vmatpush2.msra.mxu0 0.0
    %2474 = vmatprep.subr.mxu0 0.0
    %2475 = vmatpush2.msra.mxu0 0.0
    %2476 = vmatprep.subr.mxu0 0.0
    %2477 = vmatpush2.msra.mxu0 0.0
    %2478 = vmatprep.subr.mxu0 0.0
    %2479 = vmatpush2.msra.mxu0 0.0
    %2480 = vmatprep.mubr.f32.mxu0 0.0
    %2481 = vmatmul.mubr.f32.gmra.mxu0 %v2414
    %v2482 = vpop.f32.mrf.mxu0
    %v2483 = vadd.f32 0.0, %v2482
    %v2484 = vpop.f32.mrf.mxu0
    %2485 = vdwg.mxu0
    %2486 = vmatprep.subr.mxu0 0.0
    %2487 = vmatpush1.msra.mxu0 0.0
    %2488 = vmatprep.subr.mxu0 0.0
    %2489 = vmatpush1.msra.mxu0 0.0
    %2490 = vmatprep.subr.mxu0 0.0
    %2491 = vmatpush1.msra.mxu0 0.0
    %2492 = vmatprep.subr.mxu0 0.0
    %2493 = vmatpush1.msra.mxu0 0.0
    %2494 = vmatprep.subr.mxu0 0.0
    %2495 = vmatpush1.msra.mxu0 0.0
    %2496 = vmatprep.subr.mxu0 0.0
    %2497 = vmatpush1.msra.mxu0 0.0
    %2498 = vmatprep.subr.mxu0 0.0
    %2499 = vmatpush1.msra.mxu0 0.0
    %2500 = vmatprep.subr.mxu0 0.0
    %2501 = vmatpush1.msra.mxu0 0.0
    %2502 = vmatprep.subr.mxu0 0.0
    %2503 = vmatpush1.msra.mxu0 0.0
    %2504 = vmatprep.subr.mxu0 0.0
    %2505 = vmatpush1.msra.mxu0 0.0
    %2506 = vmatprep.subr.mxu0 0.0
    %2507 = vmatpush1.msra.mxu0 0.0
    %2508 = vmatprep.subr.mxu0 0.0
    %2509 = vmatpush1.msra.mxu0 0.0
    %2510 = vmatprep.subr.mxu0 0.0
    %2511 = vmatpush1.msra.mxu0 %v43
    %2512 = vmatprep.subr.mxu0 0.0
    %2513 = vmatpush1.msra.mxu0 %v42
    %2514 = vmatprep.subr.mxu0 0.0
    %2515 = vmatpush1.msra.mxu0 %v41
    %2516 = vmatprep.subr.mxu0 0.0
    %2517 = vmatpush1.msra.mxu0 %v40
    %2518 = vmatprep.subr.mxu0 0.0
    %2519 = vmatpush2.msra.mxu0 0.0
    %2520 = vmatprep.subr.mxu0 0.0
    %2521 = vmatpush2.msra.mxu0 0.0
    %2522 = vmatprep.subr.mxu0 0.0
    %2523 = vmatpush2.msra.mxu0 0.0
    %2524 = vmatprep.subr.mxu0 0.0
    %2525 = vmatpush2.msra.mxu0 0.0
    %2526 = vmatprep.subr.mxu0 0.0
    %2527 = vmatpush2.msra.mxu0 0.0
    %2528 = vmatprep.subr.mxu0 0.0
    %2529 = vmatpush2.msra.mxu0 0.0
    %2530 = vmatprep.subr.mxu0 0.0
    %2531 = vmatpush2.msra.mxu0 0.0
    %2532 = vmatprep.subr.mxu0 0.0
    %2533 = vmatpush2.msra.mxu0 0.0
    %2534 = vmatprep.subr.mxu0 0.0
    %2535 = vmatpush2.msra.mxu0 0.0
    %2536 = vmatprep.subr.mxu0 0.0
    %2537 = vmatpush2.msra.mxu0 0.0
    %2538 = vmatprep.subr.mxu0 0.0
    %2539 = vmatpush2.msra.mxu0 0.0
    %2540 = vmatprep.subr.mxu0 0.0
    %2541 = vmatpush2.msra.mxu0 0.0
    %2542 = vmatprep.subr.mxu0 0.0
    %2543 = vmatpush2.msra.mxu0 0.0
    %2544 = vmatprep.subr.mxu0 0.0
    %2545 = vmatpush2.msra.mxu0 0.0
    %2546 = vmatprep.subr.mxu0 0.0
    %2547 = vmatpush2.msra.mxu0 0.0
    %2548 = vmatprep.subr.mxu0 0.0
    %2549 = vmatpush2.msra.mxu0 0.0
    %2550 = vmatprep.mubr.f32.mxu0 0.0
    %2551 = vmatmul.mubr.f32.gmra.mxu0 %v2257
    %v2552 = vpop.f32.mrf.mxu0
    %v2553 = vadd.f32 %v2483, %v2552
    %v2554 = vpop.f32.mrf.mxu0
    %2555 = vdwg.mxu0
    %v2556 = vadd.f32 %v2553, %v57
    %v2557 = vtanh.pop %v2556
    %v2559 = vsel %vm65, %v2557, 0
    %2561 = vmatprep.subr.mxu0 0.0
    %2562 = vmatpush1.msra.mxu0 0.0
    %2563 = vmatprep.subr.mxu0 0.0
    %2564 = vmatpush1.msra.mxu0 0.0
    %2565 = vmatprep.subr.mxu0 0.0
    %2566 = vmatpush1.msra.mxu0 0.0
    %2567 = vmatprep.subr.mxu0 0.0
    %2568 = vmatpush1.msra.mxu0 0.0
    %2569 = vmatprep.subr.mxu0 0.0
    %2570 = vmatpush1.msra.mxu0 0.0
    %2571 = vmatprep.subr.mxu0 0.0
    %2572 = vmatpush1.msra.mxu0 0.0
    %2573 = vmatprep.subr.mxu0 0.0
    %2574 = vmatpush1.msra.mxu0 0.0
    %2575 = vmatprep.subr.mxu0 0.0
    %2576 = vmatpush1.msra.mxu0 0.0
    %2577 = vmatprep.subr.mxu0 0.0
    %2578 = vmatpush1.msra.mxu0 0.0
    %2579 = vmatprep.subr.mxu0 0.0
    %2580 = vmatpush1.msra.mxu0 0.0
    %2581 = vmatprep.subr.mxu0 0.0
    %2582 = vmatpush1.msra.mxu0 0.0
    %2583 = vmatprep.subr.mxu0 0.0
    %2584 = vmatpush1.msra.mxu0 0.0
    %2585 = vmatprep.subr.mxu0 0.0
    %2586 = vmatpush1.msra.mxu0 %v51
    %2587 = vmatprep.subr.mxu0 0.0
    %2588 = vmatpush1.msra.mxu0 %v50
    %2589 = vmatprep.subr.mxu0 0.0
    %2590 = vmatpush1.msra.mxu0 %v49
    %2591 = vmatprep.subr.mxu0 0.0
    %2592 = vmatpush1.msra.mxu0 %v48
    %2593 = vmatprep.subr.mxu0 0.0
    %2594 = vmatpush2.msra.mxu0 0.0
    %2595 = vmatprep.subr.mxu0 0.0
    %2596 = vmatpush2.msra.mxu0 0.0
    %2597 = vmatprep.subr.mxu0 0.0
    %2598 = vmatpush2.msra.mxu0 0.0
    %2599 = vmatprep.subr.mxu0 0.0
    %2600 = vmatpush2.msra.mxu0 0.0
    %2601 = vmatprep.subr.mxu0 0.0
    %2602 = vmatpush2.msra.mxu0 0.0
    %2603 = vmatprep.subr.mxu0 0.0
    %2604 = vmatpush2.msra.mxu0 0.0
    %2605 = vmatprep.subr.mxu0 0.0
    %2606 = vmatpush2.msra.mxu0 0.0
    %2607 = vmatprep.subr.mxu0 0.0
    %2608 = vmatpush2.msra.mxu0 0.0
    %2609 = vmatprep.subr.mxu0 0.0
    %2610 = vmatpush2.msra.mxu0 0.0
    %2611 = vmatprep.subr.mxu0 0.0
    %2612 = vmatpush2.msra.mxu0 0.0
    %2613 = vmatprep.subr.mxu0 0.0
    %2614 = vmatpush2.msra.mxu0 0.0
    %2615 = vmatprep.subr.mxu0 0.0
    %2616 = vmatpush2.msra.mxu0 0.0
    %2617 = vmatprep.subr.mxu0 0.0
    %2618 = vmatpush2.msra.mxu0 0.0
    %2619 = vmatprep.subr.mxu0 0.0
    %2620 = vmatpush2.msra.mxu0 0.0
    %2621 = vmatprep.subr.mxu0 0.0
    %2622 = vmatpush2.msra.mxu0 0.0
    %2623 = vmatprep.subr.mxu0 0.0
    %2624 = vmatpush2.msra.mxu0 0.0
    %2625 = vmatprep.mubr.f32.mxu0 0.0
    %2626 = vmatmul.mubr.f32.gmra.mxu0 %v2559
    %v2627 = vpop.f32.mrf.mxu0
    %v2628 = vadd.f32 %v58, %v2627
    %v2629 = vpop.f32.mrf.mxu0
    %2630 = vdwg.mxu0
    %v2631 = vrot.slane %v60, 4
    %v2633 = vadd.f32 %v2628, %v2631
    %v2634 = vsel %vm620, %v2633, -inf
    %2635 = vmax.xlane.f32.xlu0 %v2634
    %v2636 = vpop.xlane.xlu0 %2635
    %v2637 = vsub.f32 %v2633, %v2636
    %v2638 = vmul.f32 %v2637, 1.442695
    %v2639 = vpow.pop %v2638
    %v2640 = vsel %vm620, %v2639, 0.0
    %2641 = vadd.xlane.f32.xlu0 %v2640
    %v2642 = vpop.xlane.xlu0 %2641
    %v2643 = vlog2.pop %v2642
    %v2644 = vmul.f32 %v2643, 0.6931472
    %v2645 = vadd.f32 %v2636, %v2644
    %v2646 = vstv %s2151
    %vm2647 = vcmp.eq.s32.totalorder %v140, %v2646
    %v2648 = vsel %vm2647, %v2628, 0.0
    %v2649 = vsel %vm620, %v2648, 0.0
    %2650 = vadd.xlane.f32.xlu0 %v2649
    %v2651 = vpop.xlane.xlu0 %2650
    %v2652 = vsub.f32 %v2651, %v2645
    %v2653 = vadd.f32 %v2150, %v2652
    %vm2654 = vcmask 0
    %2655 = vst.msk [vmem:[#allocation5] sm:$0x1] %vm2654, %v2653
    // Predicated region
    $region22: #{tpu_custom_call.1} parent=1 // pred_check
      _
    $region23: #{tpu_custom_call.1} parent=1 // pred_check_branch
      %2657 = sbr.rel (0) target = $region25
    $region24: #{tpu_custom_call.1} parent=1 // pred_region
      %s2659 = ssub.s32 16, 16
      %2660 = vsyncadd [#allocation3], %s2659
      %s2662 = sshll.u32 [#allocation5], 4
      %s2663 = int_to_ptr.vmem [resolvable:$true] %s2662
      %2665 = dma.vmem_to_hbm [thread:$0]  %s2663, 16, %s4, [#allocation3]
    $region25: #{tpu_custom_call.1} parent=1 // pred_fallthru
      _
    // Predicated region
    $region26: #{tpu_custom_call.1} parent=1 // pred_check
      _
    $region27: #{tpu_custom_call.1} parent=1 // pred_check_branch
      %2667 = sbr.rel (0) target = $region29
    $region28: #{tpu_custom_call.1} parent=1 // pred_region
      %2668 = dma.done [#allocation3], 16
    $region29: #{tpu_custom_call.1} parent=1 // pred_fallthru
      _
    %2669 = vsyncpa [#allocation3], 1
    %2670 = vsyncpa [#allocation4], 1

</llo_original>
